<compile_context>
chip_gen: v7x
topology: tpu7x:2x2x1
jax: 0.10.0
libtpu: 0.0.40
codegen_flags: <defaults>
</compile_context>

<pallas_src>
import functools
import math

import numpy as np
import jax
import jax.numpy as jnp
from jax.experimental import pallas as pl
from jax.experimental.pallas import tpu as pltpu

F32 = jnp.float32
BF16 = jnp.bfloat16


def _round_up(x, m):
    return ((x + m - 1) // m) * m


# ---------------------------------------------------------------------------
# Fused GIN layer kernel (one pallas_call per layer):
#   agg   = A' @ h_prev        (block-sparse over nonzero k tiles, f32 acc)
#   h_out = relu( relu(agg @ W1 + b1) @ W2 + b2 )
# outputs: f32 h (for the module's node-embedding concat) + bf16 h (fed to the
# next layer / pooling, avoids re-casting per row tile).
# ---------------------------------------------------------------------------
def _gin_layer_kernel(max_nk,
                      kidx_ref, nk_ref,
                      a_ref, h_ref, w1_ref, b1_ref, w2_ref, b2_ref,
                      o32_ref, o16_ref, acc_ref):
    i = pl.program_id(0)
    j = pl.program_id(1)

    @pl.when(j == 0)
    def _():
        acc_ref[...] = jnp.zeros_like(acc_ref)

    # Skip padded schedule slots: their A block index repeats the previous one
    # (no DMA issued) and the matmul is not executed.
    @pl.when(j < nk_ref[i])
    def _():
        kt = kidx_ref[i * max_nk + j]                 # nonzero k-tile index
        acc_ref[...] += jnp.dot(a_ref[...], h_ref[kt],      # bf16 x bf16 MXU
                                preferred_element_type=F32)

    @pl.when(j == max_nk - 1)
    def _():
        h_in = acc_ref[...].astype(BF16)
        z = jnp.dot(h_in, w1_ref[...], preferred_element_type=F32) + b1_ref[...]
        z = jnp.maximum(z, 0.0).astype(BF16)
        h = jnp.dot(z, w2_ref[...], preferred_element_type=F32) + b2_ref[...]
        h = jnp.maximum(h, 0.0)                       # outer F.relu of Encoder_GIN
        o32_ref[...] = h
        o16_ref[...] = h.astype(BF16)


def gin_layer(a_bf16, h16, kidx, nk, w1, b1, w2, b2, *, max_nk, tm, tk):
    n_pad = a_bf16.shape[0]
    d_in = h16.shape[1]
    d_out = w2.shape[1]
    assert n_pad % tm == 0 and n_pad % tk == 0
    nkt = n_pad // tk
    h3 = h16.reshape(nkt, tk, d_in)     # contiguous view; resident in VMEM

    kernel = functools.partial(_gin_layer_kernel, max_nk)
    return pl.pallas_call(
        kernel,
        out_shape=(jax.ShapeDtypeStruct((n_pad, d_out), F32),
                   jax.ShapeDtypeStruct((n_pad, d_out), BF16)),
        grid_spec=pltpu.PrefetchScalarGridSpec(
            num_scalar_prefetch=2,                    # kidx, nk -> SMEM
            grid=(n_pad // tm, max_nk),
            in_specs=[
                # A' tile: data-dependent k-tile selection via scalar prefetch
                pl.BlockSpec((tm, tk),
                             lambda i, j, kidx, nk: (i, kidx[i * max_nk + j])),
                # h_prev: whole array resident in VMEM for the reduction
                pl.BlockSpec((nkt, tk, d_in), lambda i, j, kidx, nk: (0, 0, 0)),
                pl.BlockSpec((d_in, d_out), lambda i, j, kidx, nk: (0, 0)),   # W1 (bf16)
                pl.BlockSpec((1, d_out), lambda i, j, kidx, nk: (0, 0)),      # b1 (f32)
                pl.BlockSpec((d_out, d_out), lambda i, j, kidx, nk: (0, 0)),  # W2 (bf16)
                pl.BlockSpec((1, d_out), lambda i, j, kidx, nk: (0, 0)),      # b2 (f32)
            ],
            out_specs=[
                pl.BlockSpec((tm, d_out), lambda i, j, kidx, nk: (i, 0)),
                pl.BlockSpec((tm, d_out), lambda i, j, kidx, nk: (i, 0)),
            ],
            scratch_shapes=[pltpu.VMEM((tm, d_in), F32)],   # f32 agg accumulator
        ),
        compiler_params=pltpu.CompilerParams(
            dimension_semantics=("parallel", "arbitrary"),
            vmem_limit_bytes=32 * 1024 * 1024),       # conservative, fits v7x too
    )(kidx, nk, a_bf16, h3, w1, b1, w2, b2)


# ---------------------------------------------------------------------------
# global_mean_pool over the L per-layer bf16 node embeddings (no concat read):
#   out[:, l*dim:(l+1)*dim] = (P @ h_l) * inv_counts        P: 0/1 bf16 sum-pool
# ---------------------------------------------------------------------------
def _make_pool_kernel(num_layers, dim):
    def kernel(p_ref, inv_ref, *rest):
        h_refs = rest[:num_layers]
        o_ref = rest[num_layers]
        acc_ref = rest[num_layers + 1]
        k = pl.program_id(0)

        @pl.when(k == 0)
        def _():
            acc_ref[...] = jnp.zeros_like(acc_ref)

        p = p_ref[...]
        for l in range(num_layers):
            acc_ref[:, l * dim:(l + 1) * dim] += jnp.dot(
                p, h_refs[l][...], preferred_element_type=F32)

        @pl.when(k == pl.num_programs(0) - 1)
        def _():
            o_ref[...] = acc_ref[...] * inv_ref[...]
    return kernel


def mean_pool(pool_mat, inv_counts, hs16, *, tk):
    g_pad, n_pad = pool_mat.shape
    num_layers = len(hs16)
    dim = hs16[0].shape[1]
    assert n_pad % tk == 0
    return pl.pallas_call(
        _make_pool_kernel(num_layers, dim),
        out_shape=jax.ShapeDtypeStruct((g_pad, num_layers * dim), F32),
        grid_spec=pltpu.PrefetchScalarGridSpec(
            num_scalar_prefetch=0,
            grid=(n_pad // tk,),
            in_specs=[pl.BlockSpec((g_pad, tk), lambda k: (0, k)),
                      pl.BlockSpec((g_pad, 1), lambda k: (0, 0))]
                     + [pl.BlockSpec((tk, dim), lambda k: (k, 0))
                        for _ in range(num_layers)],
            out_specs=pl.BlockSpec((g_pad, num_layers * dim), lambda k: (0, 0)),
            scratch_shapes=[pltpu.VMEM((g_pad, num_layers * dim), F32)],
        ),
        compiler_params=pltpu.CompilerParams(
            dimension_semantics=("arbitrary",),
            vmem_limit_bytes=32 * 1024 * 1024),
    )(pool_mat, inv_counts, *hs16)


# ---------------------------------------------------------------------------
# Encoder_GIN forward
# ---------------------------------------------------------------------------
def encoder_gin_forward(kparams, x16, a_bf16, kidx, nk, pool_mat, inv_counts,
                        *, max_nk, tm, tk):
    hs32, hs16 = [], []
    h16 = x16
    for (w1, b1, w2, b2) in kparams:
        h32, h16 = gin_layer(a_bf16, h16, kidx, nk, w1, b1, w2, b2,
                             max_nk=max_nk, tm=tm, tk=tk)
        hs32.append(h32)
        hs16.append(h16)
    node_emb = jnp.concatenate(hs32, axis=1)          # required module output
    graph_emb = mean_pool(pool_mat, inv_counts, hs16, tk=tk)
    return graph_emb, node_emb


# ---------------------------------------------------------------------------
# parameters / host-side graph preprocessing
# ---------------------------------------------------------------------------
def init_params(key, num_features, dim, num_gc_layers):
    layers = []
    keys = jax.random.split(key, 2 * num_gc_layers)
    for i in range(num_gc_layers):
        fin = num_features if i == 0 else dim
        s1 = 1.0 / math.sqrt(fin)
        s2 = 1.0 / math.sqrt(dim)
        w1 = jax.random.uniform(keys[2 * i], (fin, dim), F32, -s1, s1)
        w2 = jax.random.uniform(keys[2 * i + 1], (dim, dim), F32, -s2, s2)
        layers.append((w1, jnp.zeros((1, dim), F32), w2, jnp.zeros((1, dim), F32)))
    return layers


def make_kernel_params(layers, f_pad):
    """Zero-pad the first layer's input width to f_pad and cast weights to bf16."""
    kp = []
    for i, (w1, b1, w2, b2) in enumerate(layers):
        if i == 0:
            w1p = jnp.zeros((f_pad, w1.shape[1]), F32).at[:w1.shape[0]].set(w1)
        else:
            w1p = w1
        kp.append((w1p.astype(BF16), b1, w2.astype(BF16), b2))
    return kp


def build_adjacency_np(edge_index_np, n_pad, eps):
    # message flow src -> dst aggregated at dst, plus folded self term:
    #   A' = A + (1+eps) I   so   A' @ h = (1+eps) h + sum_{(j,i) in E} h_j
    a = np.zeros((n_pad, n_pad), np.float32)
    np.add.at(a, (edge_index_np[1], edge_index_np[0]), 1.0)
    a[np.arange(n_pad), np.arange(n_pad)] += (1.0 + eps)   # eps=0 -> exact in bf16
    return a


def build_tile_schedule(a_np, tm, tk):
    """Per-row-tile list of nonzero k-tiles (padded by repeating the last one)."""
    n_pad = a_np.shape[0]
    nit, nkt = n_pad // tm, n_pad // tk
    nz = (a_np.reshape(nit, tm, nkt, tk) != 0).any(axis=(1, 3))
    counts = nz.sum(axis=1).astype(np.int32)
    max_nk = int(max(int(counts.max()), 1))
    kidx = np.zeros((nit, max_nk), np.int32)
    for i in range(nit):
        idxs = np.nonzero(nz[i])[0].astype(np.int32)
        if idxs.size == 0:                               # cannot happen (diag tile)
            idxs = np.array([(i * tm) // tk], np.int32)
        kidx[i, :idxs.size] = idxs
        kidx[i, idxs.size:] = idxs[-1]                   # repeat last -> no extra DMA
    return jnp.asarray(kidx.reshape(-1)), jnp.asarray(counts), max_nk


def build_pool(batch_np, num_graphs, g_pad, n_pad):
    n = batch_np.shape[0]
    p = np.zeros((g_pad, n_pad), np.float32)
    p[batch_np, np.arange(n)] = 1.0                      # 0/1 sum-pool matrix
    counts = p.sum(axis=1)
    inv = np.zeros((g_pad, 1), np.float32)
    inv[:num_graphs, 0] = 1.0 / np.maximum(counts[:num_graphs], 1.0)
    return jnp.asarray(p, dtype=BF16), jnp.asarray(inv)


# ---------------------------------------------------------------------------
# pure-JAX f32 reference for numerical verification
# ---------------------------------------------------------------------------
def reference_forward(layers, x, edge_index, batch, num_graphs, eps):
    n = x.shape[0]
    hp = jax.lax.Precision.HIGHEST
    a = jnp.zeros((n, n), F32).at[edge_index[1], edge_index[0]].add(1.0)
    xs, h = [], x
    for (w1, b1, w2, b2) in layers:
        h_in = (1.0 + eps) * h + jnp.dot(a, h, precision=hp)
        z = jnp.maximum(jnp.dot(h_in, w1, precision=hp) + b1, 0.0)
        h = jnp.maximum(jnp.dot(z, w2, precision=hp) + b2, 0.0)
        xs.append(h)
    node = jnp.concatenate(xs, axis=1)
    onehot = (batch[None, :] == jnp.arange(num_graphs)[:, None]).astype(F32)
    pool = onehot / jnp.sum(onehot, axis=1, keepdims=True)
    return jnp.dot(pool, node, precision=hp), node


def _max_norm_err(a, b):
    scale = jnp.maximum(jnp.max(jnp.abs(b)), 1e-6)
    return float(jnp.max(jnp.abs(a - b)) / scale)


# ---------------------------------------------------------------------------
if __name__ == "__main__":
    num_features = 16
    dim = 128                     # lane-dense hidden width (multiple of 128)
    num_gc_layers = 2
    eps = 0.0                     # GINConv default (train_eps=False)

    num_graphs, nodes_per_graph = 30, 9
    num_nodes = num_graphs * nodes_per_graph          # 270

    # tiles: tm=tk=128 for this small demo (use >=256/512 for real graphs)
    tm, tk = 128, 128
    n_pad = _round_up(num_nodes, math.lcm(tm, tk))    # 384 -> 3 row/k tiles
    g_pad = _round_up(num_graphs, 8)                  # 32
    f_pad = _round_up(num_features, 128)              # 128 (lane-dense features)

    key = jax.random.PRNGKey(0)
    k_x, k_p = jax.random.split(key)
    x = jax.random.normal(k_x, (num_nodes, num_features), F32)

    # bidirectional chain graphs (9 nodes each -> some graphs straddle tile
    # boundaries, exercising the block-sparse schedule and the skip path)
    src, dst = [], []
    for g in range(num_graphs):
        off = g * nodes_per_graph
        for i in range(nodes_per_graph - 1):
            src += [off + i, off + i + 1]
            dst += [off + i + 1, off + i]
    edge_np = np.array([src, dst], dtype=np.int32)
    batch_np = np.repeat(np.arange(num_graphs, dtype=np.int32), nodes_per_graph)

    params = init_params(k_p, num_features, dim, num_gc_layers)   # f32 (reference)
    kparams = make_kernel_params(params, f_pad)                   # bf16 weights

    # padded device operands (zero padding is semantically inert: padded A'
    # rows/cols only touch zero features, pool columns for padded nodes are
    # zero, padded rows are sliced off below)
    x16 = (jnp.zeros((n_pad, f_pad), F32)
           .at[:num_nodes, :num_features].set(x)).astype(BF16)
    a_np = build_adjacency_np(edge_np, n_pad, eps)
    a_bf16 = jnp.asarray(a_np, dtype=BF16)            # 0/1 (+1) entries exact in bf16
    kidx, nk, max_nk = build_tile_schedule(a_np, tm, tk)
    pool_mat, inv_counts = build_pool(batch_np, num_graphs, g_pad, n_pad)

    fwd = jax.jit(functools.partial(encoder_gin_forward,
                                    max_nk=max_nk, tm=tm, tk=tk))
    graph_emb_pad, node_emb_pad = fwd(kparams, x16, a_bf16, kidx, nk,
                                      pool_mat, inv_counts)
    jax.block_until_ready((graph_emb_pad, node_emb_pad))
    graph_emb = graph_emb_pad[:num_graphs]
    node_emb = node_emb_pad[:num_nodes]

    # shape + sanity checks against the module contract
    assert graph_emb.shape == (num_graphs, dim * num_gc_layers)
    assert node_emb.shape == (num_nodes, dim * num_gc_layers)
    assert bool(jnp.all(jnp.isfinite(graph_emb)))
    assert bool(jnp.all(jnp.isfinite(node_emb)))

    # numerical check vs the f32 reference (bf16 MXU path -> normalized 2e-2 tol)
    edge_index = jnp.asarray(edge_np)
    batch = jnp.asarray(batch_np)
    g_ref, n_ref = reference_forward(params, x, edge_index, batch, num_graphs, eps)
    err_n = _max_norm_err(node_emb, n_ref)
    err_g = _max_norm_err(graph_emb, g_ref)
    assert err_n < 2e-2, f"node emb err {err_n}"
    assert err_g < 2e-2, f"graph emb err {err_g}"

    print("KERNEL_OK")
</pallas_src>

<mosaic_0001>
module attributes {stable_mosaic.version = 11 : i64} {
  func.func @_gin_layer_kernel(%arg0: i32, %arg1: i32, %arg2: memref<9xi32, #tpu.memory_space<smem>>, %arg3: memref<3xi32, #tpu.memory_space<smem>>, %arg4: memref<128x128xbf16, #tpu.memory_space<vmem>>, %arg5: memref<3x128x128xbf16, #tpu.memory_space<vmem>>, %arg6: memref<128x128xbf16, #tpu.memory_space<vmem>>, %arg7: memref<1x128xf32, #tpu.memory_space<vmem>>, %arg8: memref<128x128xbf16, #tpu.memory_space<vmem>>, %arg9: memref<1x128xf32, #tpu.memory_space<vmem>>, %arg10: memref<128x128xf32, #tpu.memory_space<vmem>>, %arg11: memref<128x128xbf16, #tpu.memory_space<vmem>>, %arg12: memref<128x128xf32, #tpu.memory_space<vmem>>) attributes {dimension_semantics = [#tpu.dimension_semantics<parallel>, #tpu.dimension_semantics<arbitrary>], iteration_bounds = array<i64: 3, 3>, scalar_prefetch = 2 : i64, scratch_operands = 1 : i64, tpu.core_type = #tpu.core_type<tc>, window_params = [{transform_indices = @transform_0, window_bounds = array<i64: 128, 128>}, {pipeline_mode = #tpu.pipeline_mode<synchronous>, transform_indices = @transform_1, window_bounds = array<i64: 3, 128, 128>}, {pipeline_mode = #tpu.pipeline_mode<synchronous>, transform_indices = @transform_2, window_bounds = array<i64: 128, 128>}, {pipeline_mode = #tpu.pipeline_mode<synchronous>, transform_indices = @transform_3, window_bounds = array<i64: 1, 128>}, {pipeline_mode = #tpu.pipeline_mode<synchronous>, transform_indices = @transform_4, window_bounds = array<i64: 128, 128>}, {pipeline_mode = #tpu.pipeline_mode<synchronous>, transform_indices = @transform_5, window_bounds = array<i64: 1, 128>}, {transform_indices = @transform_6, window_bounds = array<i64: 128, 128>}, {transform_indices = @transform_7, window_bounds = array<i64: 128, 128>}]} {
    %c0_i32 = arith.constant 0 : i32
    %0 = arith.cmpi eq, %arg1, %c0_i32 : i32
    %1 = arith.extui %0 : i1 to i32
    %c0_i32_0 = arith.constant 0 : i32
    %2 = arith.cmpi ne, %1, %c0_i32_0 : i32
    scf.if %2 {
      %cst = arith.constant 0.000000e+00 : f32
      %11 = vector.broadcast %cst : f32 to vector<128x128xf32>
      %c0 = arith.constant 0 : index
      %c0_3 = arith.constant 0 : index
      %12 = vector.load %arg12[%c0, %c0_3] : memref<128x128xf32, #tpu.memory_space<vmem>>, vector<128x128xf32>
      tpu.vector_store %arg12[%c0, %c0_3], %11 {strides = array<i32>} : memref<128x128xf32, #tpu.memory_space<vmem>>, vector<128x128xf32>,
    } else {
    }
    %3 = arith.index_cast %arg0 : i32 to index
    %4 = memref.load %arg3[%3] : memref<3xi32, #tpu.memory_space<smem>>
    %5 = arith.cmpi slt, %arg1, %4 : i32
    %6 = arith.extui %5 : i1 to i32
    %c0_i32_1 = arith.constant 0 : i32
    %7 = arith.cmpi ne, %6, %c0_i32_1 : i32
    scf.if %7 {
      %c3_i32 = arith.constant 3 : i32
      %11 = arith.muli %arg0, %c3_i32 : i32
      %12 = arith.addi %11, %arg1 : i32
      %13 = arith.index_cast %12 : i32 to index
      %14 = memref.load %arg2[%13] : memref<9xi32, #tpu.memory_space<smem>>
      %c0 = arith.constant 0 : index
      %c0_3 = arith.constant 0 : index
      %15 = vector.load %arg12[%c0, %c0_3] : memref<128x128xf32, #tpu.memory_space<vmem>>, vector<128x128xf32>
      %c0_4 = arith.constant 0 : index
      %c0_5 = arith.constant 0 : index
      %16 = vector.load %arg4[%c0_4, %c0_5] : memref<128x128xbf16, #tpu.memory_space<vmem>>, vector<128x128xbf16>
      %17 = arith.index_cast %14 : i32 to index
      %c0_6 = arith.constant 0 : index
      %c0_7 = arith.constant 0 : index
      %18 = vector.load %arg5[%17, %c0_6, %c0_7] : memref<3x128x128xbf16, #tpu.memory_space<vmem>>, vector<1x128x128xbf16>
      %19 = vector.shape_cast %18 : vector<1x128x128xbf16> to vector<128x128xbf16>
      %cst = arith.constant dense<0.000000e+00> : vector<128x128xf32>
      %20 = tpu.matmul %16, %19, %cst {dimension_numbers = #tpu.dot_dimension_numbers<[1], [0], [0], [1], [0, 0, 1, 1], [], []>} : vector<128x128xbf16>, vector<128x128xbf16>, vector<128x128xf32> -> vector<128x128xf32>
      %21 = arith.addf %15, %20 : vector<128x128xf32>
      %c0_8 = arith.constant 0 : index
      %c0_9 = arith.constant 0 : index
      %22 = vector.load %arg12[%c0_8, %c0_9] : memref<128x128xf32, #tpu.memory_space<vmem>>, vector<128x128xf32>
      tpu.vector_store %arg12[%c0_8, %c0_9], %21 {strides = array<i32>} : memref<128x128xf32, #tpu.memory_space<vmem>>, vector<128x128xf32>,
    } else {
    }
    %c2_i32 = arith.constant 2 : i32
    %8 = arith.cmpi eq, %arg1, %c2_i32 : i32
    %9 = arith.extui %8 : i1 to i32
    %c0_i32_2 = arith.constant 0 : i32
    %10 = arith.cmpi ne, %9, %c0_i32_2 : i32
    scf.if %10 {
      %c0 = arith.constant 0 : index
      %c0_3 = arith.constant 0 : index
      %11 = vector.load %arg12[%c0, %c0_3] : memref<128x128xf32, #tpu.memory_space<vmem>>, vector<128x128xf32>
      %12 = arith.truncf %11 : vector<128x128xf32> to vector<128x128xbf16>
      %c0_4 = arith.constant 0 : index
      %c0_5 = arith.constant 0 : index
      %13 = vector.load %arg6[%c0_4, %c0_5] : memref<128x128xbf16, #tpu.memory_space<vmem>>, vector<128x128xbf16>
      %cst = arith.constant dense<0.000000e+00> : vector<128x128xf32>
      %14 = tpu.matmul %12, %13, %cst {dimension_numbers = #tpu.dot_dimension_numbers<[1], [0], [0], [1], [0, 0, 1, 1], [], []>} : vector<128x128xbf16>, vector<128x128xbf16>, vector<128x128xf32> -> vector<128x128xf32>
      %c0_6 = arith.constant 0 : index
      %c0_7 = arith.constant 0 : index
      %15 = vector.load %arg7[%c0_6, %c0_7] : memref<1x128xf32, #tpu.memory_space<vmem>>, vector<1x128xf32>
      %16 = vector.broadcast %15 : vector<1x128xf32> to vector<128x128xf32>
      %17 = arith.addf %14, %16 : vector<128x128xf32>
      %cst_8 = arith.constant 0.000000e+00 : f32
      %18 = vector.broadcast %cst_8 : f32 to vector<128x128xf32>
      %19 = arith.maximumf %17, %18 : vector<128x128xf32>
      %20 = arith.truncf %19 : vector<128x128xf32> to vector<128x128xbf16>
      %c0_9 = arith.constant 0 : index
      %c0_10 = arith.constant 0 : index
      %21 = vector.load %arg8[%c0_9, %c0_10] : memref<128x128xbf16, #tpu.memory_space<vmem>>, vector<128x128xbf16>
      %cst_11 = arith.constant dense<0.000000e+00> : vector<128x128xf32>
      %22 = tpu.matmul %20, %21, %cst_11 {dimension_numbers = #tpu.dot_dimension_numbers<[1], [0], [0], [1], [0, 0, 1, 1], [], []>} : vector<128x128xbf16>, vector<128x128xbf16>, vector<128x128xf32> -> vector<128x128xf32>
      %c0_12 = arith.constant 0 : index
      %c0_13 = arith.constant 0 : index
      %23 = vector.load %arg9[%c0_12, %c0_13] : memref<1x128xf32, #tpu.memory_space<vmem>>, vector<1x128xf32>
      %24 = vector.broadcast %23 : vector<1x128xf32> to vector<128x128xf32>
      %25 = arith.addf %22, %24 : vector<128x128xf32>
      %cst_14 = arith.constant 0.000000e+00 : f32
      %26 = vector.broadcast %cst_14 : f32 to vector<128x128xf32>
      %27 = arith.maximumf %25, %26 : vector<128x128xf32>
      %c0_15 = arith.constant 0 : index
      %c0_16 = arith.constant 0 : index
      %28 = vector.load %arg10[%c0_15, %c0_16] : memref<128x128xf32, #tpu.memory_space<vmem>>, vector<128x128xf32>
      tpu.vector_store %arg10[%c0_15, %c0_16], %27 {strides = array<i32>} : memref<128x128xf32, #tpu.memory_space<vmem>>, vector<128x128xf32>,
      %29 = arith.truncf %27 : vector<128x128xf32> to vector<128x128xbf16>
      %c0_17 = arith.constant 0 : index
      %c0_18 = arith.constant 0 : index
      %30 = vector.load %arg11[%c0_17, %c0_18] : memref<128x128xbf16, #tpu.memory_space<vmem>>, vector<128x128xbf16>
      tpu.vector_store %arg11[%c0_17, %c0_18], %29 {strides = array<i32>} : memref<128x128xbf16, #tpu.memory_space<vmem>>, vector<128x128xbf16>,
    } else {
    }
    return
  }
  func.func @transform_0(%arg0: i32, %arg1: i32, %arg2: memref<9xi32, #tpu.memory_space<smem>>, %arg3: memref<3xi32, #tpu.memory_space<smem>>) -> (i32, i32) {
    %c3_i32 = arith.constant 3 : i32
    %0 = arith.muli %arg0, %c3_i32 : i32
    %1 = arith.addi %0, %arg1 : i32
    %2 = arith.index_cast %1 : i32 to index
    %3 = memref.load %arg2[%2] : memref<9xi32, #tpu.memory_space<smem>>
    %c0_i32 = arith.constant 0 : i32
    return %arg0, %3 : i32, i32
  }
  func.func @transform_1(%arg0: i32, %arg1: i32, %arg2: memref<9xi32, #tpu.memory_space<smem>>, %arg3: memref<3xi32, #tpu.memory_space<smem>>) -> (i32, i32, i32) {
    %c0_i32 = arith.constant 0 : i32
    %c0_i32_0 = arith.constant 0 : i32
    %c0_i32_1 = arith.constant 0 : i32
    %c0_i32_2 = arith.constant 0 : i32
    return %c0_i32, %c0_i32_0, %c0_i32_1 : i32, i32, i32
  }
  func.func @transform_2(%arg0: i32, %arg1: i32, %arg2: memref<9xi32, #tpu.memory_space<smem>>, %arg3: memref<3xi32, #tpu.memory_space<smem>>) -> (i32, i32) {
    %c0_i32 = arith.constant 0 : i32
    %c0_i32_0 = arith.constant 0 : i32
    %c0_i32_1 = arith.constant 0 : i32
    return %c0_i32, %c0_i32_0 : i32, i32
  }
  func.func @transform_3(%arg0: i32, %arg1: i32, %arg2: memref<9xi32, #tpu.memory_space<smem>>, %arg3: memref<3xi32, #tpu.memory_space<smem>>) -> (i32, i32) {
    %c0_i32 = arith.constant 0 : i32
    %c0_i32_0 = arith.constant 0 : i32
    %c0_i32_1 = arith.constant 0 : i32
    return %c0_i32, %c0_i32_0 : i32, i32
  }
  func.func @transform_4(%arg0: i32, %arg1: i32, %arg2: memref<9xi32, #tpu.memory_space<smem>>, %arg3: memref<3xi32, #tpu.memory_space<smem>>) -> (i32, i32) {
    %c0_i32 = arith.constant 0 : i32
    %c0_i32_0 = arith.constant 0 : i32
    %c0_i32_1 = arith.constant 0 : i32
    return %c0_i32, %c0_i32_0 : i32, i32
  }
  func.func @transform_5(%arg0: i32, %arg1: i32, %arg2: memref<9xi32, #tpu.memory_space<smem>>, %arg3: memref<3xi32, #tpu.memory_space<smem>>) -> (i32, i32) {
    %c0_i32 = arith.constant 0 : i32
    %c0_i32_0 = arith.constant 0 : i32
    %c0_i32_1 = arith.constant 0 : i32
    return %c0_i32, %c0_i32_0 : i32, i32
  }
  func.func @transform_6(%arg0: i32, %arg1: i32, %arg2: memref<9xi32, #tpu.memory_space<smem>>, %arg3: memref<3xi32, #tpu.memory_space<smem>>) -> (i32, i32) {
    %c0_i32 = arith.constant 0 : i32
    %c0_i32_0 = arith.constant 0 : i32
    return %arg0, %c0_i32 : i32, i32
  }
  func.func @transform_7(%arg0: i32, %arg1: i32, %arg2: memref<9xi32, #tpu.memory_space<smem>>, %arg3: memref<3xi32, #tpu.memory_space<smem>>) -> (i32, i32) {
    %c0_i32 = arith.constant 0 : i32
    %c0_i32_0 = arith.constant 0 : i32
    return %arg0, %c0_i32 : i32, i32
  }
}

module attributes {stable_mosaic.version = 11 : i64} {
  func.func @kernel(%arg0: i32, %arg1: memref<32x128xbf16, #tpu.memory_space<vmem>>, %arg2: memref<32x1xf32, #tpu.memory_space<vmem>>, %arg3: memref<128x128xbf16, #tpu.memory_space<vmem>>, %arg4: memref<128x128xbf16, #tpu.memory_space<vmem>>, %arg5: memref<32x256xf32, #tpu.memory_space<vmem>>, %arg6: memref<32x256xf32, #tpu.memory_space<vmem>>) attributes {dimension_semantics = [#tpu.dimension_semantics<arbitrary>], iteration_bounds = array<i64: 3>, scalar_prefetch = 0 : i64, scratch_operands = 1 : i64, tpu.core_type = #tpu.core_type<tc>, window_params = [{transform_indices = @transform_0, window_bounds = array<i64: 32, 128>}, {pipeline_mode = #tpu.pipeline_mode<synchronous>, transform_indices = @transform_1, window_bounds = array<i64: 32, 1>}, {transform_indices = @transform_2, window_bounds = array<i64: 128, 128>}, {transform_indices = @transform_3, window_bounds = array<i64: 128, 128>}, {pipeline_mode = #tpu.pipeline_mode<synchronous>, transform_indices = @transform_4, window_bounds = array<i64: 32, 256>}]} {
    %c0_i32 = arith.constant 0 : i32
    %0 = arith.cmpi eq, %arg0, %c0_i32 : i32
    %1 = arith.extui %0 : i1 to i32
    %c0_i32_0 = arith.constant 0 : i32
    %2 = arith.cmpi ne, %1, %c0_i32_0 : i32
    scf.if %2 {
      %cst_15 = arith.constant 0.000000e+00 : f32
      %17 = vector.broadcast %cst_15 : f32 to vector<32x256xf32>
      %c0_16 = arith.constant 0 : index
      %c0_17 = arith.constant 0 : index
      %18 = vector.load %arg6[%c0_16, %c0_17] : memref<32x256xf32, #tpu.memory_space<vmem>>, vector<32x256xf32>
      tpu.vector_store %arg6[%c0_16, %c0_17], %17 {strides = array<i32>} : memref<32x256xf32, #tpu.memory_space<vmem>>, vector<32x256xf32>,
    } else {
    }
    %c0 = arith.constant 0 : index
    %c0_1 = arith.constant 0 : index
    %3 = vector.load %arg1[%c0, %c0_1] : memref<32x128xbf16, #tpu.memory_space<vmem>>, vector<32x128xbf16>
    %c0_2 = arith.constant 0 : index
    %c0_3 = arith.constant 0 : index
    %4 = vector.load %arg6[%c0_2, %c0_3] : memref<32x256xf32, #tpu.memory_space<vmem>>, vector<32x128xf32>
    %c0_4 = arith.constant 0 : index
    %c0_5 = arith.constant 0 : index
    %5 = vector.load %arg3[%c0_4, %c0_5] : memref<128x128xbf16, #tpu.memory_space<vmem>>, vector<128x128xbf16>
    %cst = arith.constant dense<0.000000e+00> : vector<32x128xf32>
    %6 = tpu.matmul %3, %5, %cst {dimension_numbers = #tpu.dot_dimension_numbers<[1], [0], [0], [1], [0, 0, 1, 1], [], []>} : vector<32x128xbf16>, vector<128x128xbf16>, vector<32x128xf32> -> vector<32x128xf32>
    %7 = arith.addf %4, %6 : vector<32x128xf32>
    %c0_6 = arith.constant 0 : index
    %c0_7 = arith.constant 0 : index
    %8 = vector.load %arg6[%c0_6, %c0_7] : memref<32x256xf32, #tpu.memory_space<vmem>>, vector<32x128xf32>
    tpu.vector_store %arg6[%c0_6, %c0_7], %7 {strides = array<i32>} : memref<32x256xf32, #tpu.memory_space<vmem>>, vector<32x128xf32>,
    %c0_8 = arith.constant 0 : index
    %c128 = arith.constant 128 : index
    %9 = vector.load %arg6[%c0_8, %c128] : memref<32x256xf32, #tpu.memory_space<vmem>>, vector<32x128xf32>
    %c0_9 = arith.constant 0 : index
    %c0_10 = arith.constant 0 : index
    %10 = vector.load %arg4[%c0_9, %c0_10] : memref<128x128xbf16, #tpu.memory_space<vmem>>, vector<128x128xbf16>
    %cst_11 = arith.constant dense<0.000000e+00> : vector<32x128xf32>
    %11 = tpu.matmul %3, %10, %cst_11 {dimension_numbers = #tpu.dot_dimension_numbers<[1], [0], [0], [1], [0, 0, 1, 1], [], []>} : vector<32x128xbf16>, vector<128x128xbf16>, vector<32x128xf32> -> vector<32x128xf32>
    %12 = arith.addf %9, %11 : vector<32x128xf32>
    %c0_12 = arith.constant 0 : index
    %c128_13 = arith.constant 128 : index
    %13 = vector.load %arg6[%c0_12, %c128_13] : memref<32x256xf32, #tpu.memory_space<vmem>>, vector<32x128xf32>
    tpu.vector_store %arg6[%c0_12, %c128_13], %12 {strides = array<i32>} : memref<32x256xf32, #tpu.memory_space<vmem>>, vector<32x128xf32>,
    %c2_i32 = arith.constant 2 : i32
    %14 = arith.cmpi eq, %arg0, %c2_i32 : i32
    %15 = arith.extui %14 : i1 to i32
    %c0_i32_14 = arith.constant 0 : i32
    %16 = arith.cmpi ne, %15, %c0_i32_14 : i32
    scf.if %16 {
      %c0_15 = arith.constant 0 : index
      %c0_16 = arith.constant 0 : index
      %17 = vector.load %arg6[%c0_15, %c0_16] : memref<32x256xf32, #tpu.memory_space<vmem>>, vector<32x256xf32>
      %c0_17 = arith.constant 0 : index
      %c0_18 = arith.constant 0 : index
      %18 = vector.load %arg2[%c0_17, %c0_18] : memref<32x1xf32, #tpu.memory_space<vmem>>, vector<32x1xf32>
      %19 = vector.broadcast %18 : vector<32x1xf32> to vector<32x256xf32>
      %20 = arith.mulf %17, %19 : vector<32x256xf32>
      %c0_19 = arith.constant 0 : index
      %c0_20 = arith.constant 0 : index
      %21 = vector.load %arg5[%c0_19, %c0_20] : memref<32x256xf32, #tpu.memory_space<vmem>>, vector<32x256xf32>
      tpu.vector_store %arg5[%c0_19, %c0_20], %20 {strides = array<i32>} : memref<32x256xf32, #tpu.memory_space<vmem>>, vector<32x256xf32>,
    } else {
    }
    return
  }
  func.func @transform_0(%arg0: i32) -> (i32, i32) {
    %c0_i32 = arith.constant 0 : i32
    %c0_i32_0 = arith.constant 0 : i32
    return %c0_i32, %arg0 : i32, i32
  }
  func.func @transform_1(%arg0: i32) -> (i32, i32) {
    %c0_i32 = arith.constant 0 : i32
    %c0_i32_0 = arith.constant 0 : i32
    %c0_i32_1 = arith.constant 0 : i32
    return %c0_i32, %c0_i32_0 : i32, i32
  }
  func.func @transform_2(%arg0: i32) -> (i32, i32) {
    %c0_i32 = arith.constant 0 : i32
    %c0_i32_0 = arith.constant 0 : i32
    return %arg0, %c0_i32 : i32, i32
  }
  func.func @transform_3(%arg0: i32) -> (i32, i32) {
    %c0_i32 = arith.constant 0 : i32
    %c0_i32_0 = arith.constant 0 : i32
    return %arg0, %c0_i32 : i32, i32
  }
  func.func @transform_4(%arg0: i32) -> (i32, i32) {
    %c0_i32 = arith.constant 0 : i32
    %c0_i32_0 = arith.constant 0 : i32
    %c0_i32_1 = arith.constant 0 : i32
    return %c0_i32, %c0_i32_0 : i32, i32
  }
}

module attributes {stable_mosaic.version = 11 : i64} {
  func.func @_gin_layer_kernel(%arg0: i32, %arg1: i32, %arg2: memref<9xi32, #tpu.memory_space<smem>>, %arg3: memref<3xi32, #tpu.memory_space<smem>>, %arg4: memref<128x128xbf16, #tpu.memory_space<vmem>>, %arg5: memref<3x128x128xbf16, #tpu.memory_space<vmem>>, %arg6: memref<128x128xbf16, #tpu.memory_space<vmem>>, %arg7: memref<1x128xf32, #tpu.memory_space<vmem>>, %arg8: memref<128x128xbf16, #tpu.memory_space<vmem>>, %arg9: memref<1x128xf32, #tpu.memory_space<vmem>>, %arg10: memref<128x128xf32, #tpu.memory_space<vmem>>, %arg11: memref<128x128xbf16, #tpu.memory_space<vmem>>, %arg12: memref<128x128xf32, #tpu.memory_space<vmem>>) attributes {dimension_semantics = [#tpu.dimension_semantics<parallel>, #tpu.dimension_semantics<arbitrary>], iteration_bounds = array<i64: 3, 3>, scalar_prefetch = 2 : i64, scratch_operands = 1 : i64, tpu.core_type = #tpu.core_type<tc>, window_params = [{transform_indices = @transform_0, window_bounds = array<i64: 128, 128>}, {pipeline_mode = #tpu.pipeline_mode<synchronous>, transform_indices = @transform_1, window_bounds = array<i64: 3, 128, 128>}, {pipeline_mode = #tpu.pipeline_mode<synchronous>, transform_indices = @transform_2, window_bounds = array<i64: 128, 128>}, {pipeline_mode = #tpu.pipeline_mode<synchronous>, transform_indices = @transform_3, window_bounds = array<i64: 1, 128>}, {pipeline_mode = #tpu.pipeline_mode<synchronous>, transform_indices = @transform_4, window_bounds = array<i64: 128, 128>}, {pipeline_mode = #tpu.pipeline_mode<synchronous>, transform_indices = @transform_5, window_bounds = array<i64: 1, 128>}, {transform_indices = @transform_6, window_bounds = array<i64: 128, 128>}, {transform_indices = @transform_7, window_bounds = array<i64: 128, 128>}]} {
    %c0_i32 = arith.constant 0 : i32
    %0 = arith.cmpi eq, %arg1, %c0_i32 : i32
    %1 = arith.extui %0 : i1 to i32
    %c0_i32_0 = arith.constant 0 : i32
    %2 = arith.cmpi ne, %1, %c0_i32_0 : i32
    scf.if %2 {
      %cst = arith.constant 0.000000e+00 : f32
      %11 = vector.broadcast %cst : f32 to vector<128x128xf32>
      %c0 = arith.constant 0 : index
      %c0_3 = arith.constant 0 : index
      %12 = vector.load %arg12[%c0, %c0_3] : memref<128x128xf32, #tpu.memory_space<vmem>>, vector<128x128xf32>
      tpu.vector_store %arg12[%c0, %c0_3], %11 {strides = array<i32>} : memref<128x128xf32, #tpu.memory_space<vmem>>, vector<128x128xf32>,
    } else {
    }
    %3 = arith.index_cast %arg0 : i32 to index
    %4 = memref.load %arg3[%3] : memref<3xi32, #tpu.memory_space<smem>>
    %5 = arith.cmpi slt, %arg1, %4 : i32
    %6 = arith.extui %5 : i1 to i32
    %c0_i32_1 = arith.constant 0 : i32
    %7 = arith.cmpi ne, %6, %c0_i32_1 : i32
    scf.if %7 {
      %c3_i32 = arith.constant 3 : i32
      %11 = arith.muli %arg0, %c3_i32 : i32
      %12 = arith.addi %11, %arg1 : i32
      %13 = arith.index_cast %12 : i32 to index
      %14 = memref.load %arg2[%13] : memref<9xi32, #tpu.memory_space<smem>>
      %c0 = arith.constant 0 : index
      %c0_3 = arith.constant 0 : index
      %15 = vector.load %arg12[%c0, %c0_3] : memref<128x128xf32, #tpu.memory_space<vmem>>, vector<128x128xf32>
      %c0_4 = arith.constant 0 : index
      %c0_5 = arith.constant 0 : index
      %16 = vector.load %arg4[%c0_4, %c0_5] : memref<128x128xbf16, #tpu.memory_space<vmem>>, vector<128x128xbf16>
      %17 = arith.index_cast %14 : i32 to index
      %c0_6 = arith.constant 0 : index
      %c0_7 = arith.constant 0 : index
      %18 = vector.load %arg5[%17, %c0_6, %c0_7] : memref<3x128x128xbf16, #tpu.memory_space<vmem>>, vector<1x128x128xbf16>
      %19 = vector.shape_cast %18 : vector<1x128x128xbf16> to vector<128x128xbf16>
      %cst = arith.constant dense<0.000000e+00> : vector<128x128xf32>
      %20 = tpu.matmul %16, %19, %cst {dimension_numbers = #tpu.dot_dimension_numbers<[1], [0], [0], [1], [0, 0, 1, 1], [], []>} : vector<128x128xbf16>, vector<128x128xbf16>, vector<128x128xf32> -> vector<128x128xf32>
      %21 = arith.addf %15, %20 : vector<128x128xf32>
      %c0_8 = arith.constant 0 : index
      %c0_9 = arith.constant 0 : index
      %22 = vector.load %arg12[%c0_8, %c0_9] : memref<128x128xf32, #tpu.memory_space<vmem>>, vector<128x128xf32>
      tpu.vector_store %arg12[%c0_8, %c0_9], %21 {strides = array<i32>} : memref<128x128xf32, #tpu.memory_space<vmem>>, vector<128x128xf32>,
    } else {
    }
    %c2_i32 = arith.constant 2 : i32
    %8 = arith.cmpi eq, %arg1, %c2_i32 : i32
    %9 = arith.extui %8 : i1 to i32
    %c0_i32_2 = arith.constant 0 : i32
    %10 = arith.cmpi ne, %9, %c0_i32_2 : i32
    scf.if %10 {
      %c0 = arith.constant 0 : index
      %c0_3 = arith.constant 0 : index
      %11 = vector.load %arg12[%c0, %c0_3] : memref<128x128xf32, #tpu.memory_space<vmem>>, vector<128x128xf32>
      %12 = arith.truncf %11 : vector<128x128xf32> to vector<128x128xbf16>
      %c0_4 = arith.constant 0 : index
      %c0_5 = arith.constant 0 : index
      %13 = vector.load %arg6[%c0_4, %c0_5] : memref<128x128xbf16, #tpu.memory_space<vmem>>, vector<128x128xbf16>
      %cst = arith.constant dense<0.000000e+00> : vector<128x128xf32>
      %14 = tpu.matmul %12, %13, %cst {dimension_numbers = #tpu.dot_dimension_numbers<[1], [0], [0], [1], [0, 0, 1, 1], [], []>} : vector<128x128xbf16>, vector<128x128xbf16>, vector<128x128xf32> -> vector<128x128xf32>
      %c0_6 = arith.constant 0 : index
      %c0_7 = arith.constant 0 : index
      %15 = vector.load %arg7[%c0_6, %c0_7] : memref<1x128xf32, #tpu.memory_space<vmem>>, vector<1x128xf32>
      %16 = vector.broadcast %15 : vector<1x128xf32> to vector<128x128xf32>
      %17 = arith.addf %14, %16 : vector<128x128xf32>
      %cst_8 = arith.constant 0.000000e+00 : f32
      %18 = vector.broadcast %cst_8 : f32 to vector<128x128xf32>
      %19 = arith.maximumf %17, %18 : vector<128x128xf32>
      %20 = arith.truncf %19 : vector<128x128xf32> to vector<128x128xbf16>
      %c0_9 = arith.constant 0 : index
      %c0_10 = arith.constant 0 : index
      %21 = vector.load %arg8[%c0_9, %c0_10] : memref<128x128xbf16, #tpu.memory_space<vmem>>, vector<128x128xbf16>
      %cst_11 = arith.constant dense<0.000000e+00> : vector<128x128xf32>
      %22 = tpu.matmul %20, %21, %cst_11 {dimension_numbers = #tpu.dot_dimension_numbers<[1], [0], [0], [1], [0, 0, 1, 1], [], []>} : vector<128x128xbf16>, vector<128x128xbf16>, vector<128x128xf32> -> vector<128x128xf32>
      %c0_12 = arith.constant 0 : index
      %c0_13 = arith.constant 0 : index
      %23 = vector.load %arg9[%c0_12, %c0_13] : memref<1x128xf32, #tpu.memory_space<vmem>>, vector<1x128xf32>
      %24 = vector.broadcast %23 : vector<1x128xf32> to vector<128x128xf32>
      %25 = arith.addf %22, %24 : vector<128x128xf32>
      %cst_14 = arith.constant 0.000000e+00 : f32
      %26 = vector.broadcast %cst_14 : f32 to vector<128x128xf32>
      %27 = arith.maximumf %25, %26 : vector<128x128xf32>
      %c0_15 = arith.constant 0 : index
      %c0_16 = arith.constant 0 : index
      %28 = vector.load %arg10[%c0_15, %c0_16] : memref<128x128xf32, #tpu.memory_space<vmem>>, vector<128x128xf32>
      tpu.vector_store %arg10[%c0_15, %c0_16], %27 {strides = array<i32>} : memref<128x128xf32, #tpu.memory_space<vmem>>, vector<128x128xf32>,
      %29 = arith.truncf %27 : vector<128x128xf32> to vector<128x128xbf16>
      %c0_17 = arith.constant 0 : index
      %c0_18 = arith.constant 0 : index
      %30 = vector.load %arg11[%c0_17, %c0_18] : memref<128x128xbf16, #tpu.memory_space<vmem>>, vector<128x128xbf16>
      tpu.vector_store %arg11[%c0_17, %c0_18], %29 {strides = array<i32>} : memref<128x128xbf16, #tpu.memory_space<vmem>>, vector<128x128xbf16>,
    } else {
    }
    return
  }
  func.func @transform_0(%arg0: i32, %arg1: i32, %arg2: memref<9xi32, #tpu.memory_space<smem>>, %arg3: memref<3xi32, #tpu.memory_space<smem>>) -> (i32, i32) {
    %c3_i32 = arith.constant 3 : i32
    %0 = arith.muli %arg0, %c3_i32 : i32
    %1 = arith.addi %0, %arg1 : i32
    %2 = arith.index_cast %1 : i32 to index
    %3 = memref.load %arg2[%2] : memref<9xi32, #tpu.memory_space<smem>>
    %c0_i32 = arith.constant 0 : i32
    return %arg0, %3 : i32, i32
  }
  func.func @transform_1(%arg0: i32, %arg1: i32, %arg2: memref<9xi32, #tpu.memory_space<smem>>, %arg3: memref<3xi32, #tpu.memory_space<smem>>) -> (i32, i32, i32) {
    %c0_i32 = arith.constant 0 : i32
    %c0_i32_0 = arith.constant 0 : i32
    %c0_i32_1 = arith.constant 0 : i32
    %c0_i32_2 = arith.constant 0 : i32
    return %c0_i32, %c0_i32_0, %c0_i32_1 : i32, i32, i32
  }
  func.func @transform_2(%arg0: i32, %arg1: i32, %arg2: memref<9xi32, #tpu.memory_space<smem>>, %arg3: memref<3xi32, #tpu.memory_space<smem>>) -> (i32, i32) {
    %c0_i32 = arith.constant 0 : i32
    %c0_i32_0 = arith.constant 0 : i32
    %c0_i32_1 = arith.constant 0 : i32
    return %c0_i32, %c0_i32_0 : i32, i32
  }
  func.func @transform_3(%arg0: i32, %arg1: i32, %arg2: memref<9xi32, #tpu.memory_space<smem>>, %arg3: memref<3xi32, #tpu.memory_space<smem>>) -> (i32, i32) {
    %c0_i32 = arith.constant 0 : i32
    %c0_i32_0 = arith.constant 0 : i32
    %c0_i32_1 = arith.constant 0 : i32
    return %c0_i32, %c0_i32_0 : i32, i32
  }
  func.func @transform_4(%arg0: i32, %arg1: i32, %arg2: memref<9xi32, #tpu.memory_space<smem>>, %arg3: memref<3xi32, #tpu.memory_space<smem>>) -> (i32, i32) {
    %c0_i32 = arith.constant 0 : i32
    %c0_i32_0 = arith.constant 0 : i32
    %c0_i32_1 = arith.constant 0 : i32
    return %c0_i32, %c0_i32_0 : i32, i32
  }
  func.func @transform_5(%arg0: i32, %arg1: i32, %arg2: memref<9xi32, #tpu.memory_space<smem>>, %arg3: memref<3xi32, #tpu.memory_space<smem>>) -> (i32, i32) {
    %c0_i32 = arith.constant 0 : i32
    %c0_i32_0 = arith.constant 0 : i32
    %c0_i32_1 = arith.constant 0 : i32
    return %c0_i32, %c0_i32_0 : i32, i32
  }
  func.func @transform_6(%arg0: i32, %arg1: i32, %arg2: memref<9xi32, #tpu.memory_space<smem>>, %arg3: memref<3xi32, #tpu.memory_space<smem>>) -> (i32, i32) {
    %c0_i32 = arith.constant 0 : i32
    %c0_i32_0 = arith.constant 0 : i32
    return %arg0, %c0_i32 : i32, i32
  }
  func.func @transform_7(%arg0: i32, %arg1: i32, %arg2: memref<9xi32, #tpu.memory_space<smem>>, %arg3: memref<3xi32, #tpu.memory_space<smem>>) -> (i32, i32) {
    %c0_i32 = arith.constant 0 : i32
    %c0_i32_0 = arith.constant 0 : i32
    return %arg0, %c0_i32 : i32, i32
  }
}

</mosaic_0001>

<llo_original>
// kernel: encoder_gin_forward.5
$region0: #{encoder_gin_forward.5}
  #allocation0 [shape = 'u32[]', space=smem, size = 0x4, offset = 0x4, fixed_abs, tag = 'smem constant byte address 0x4 - core index']
  #allocation1 [shape = 'u32[144,128]{1,0:T(1,128)}', space=vmem, size = 0x12000, scoped, tag = 'internal scratch']
  #allocation2 [shape = 'f32[32,256]{1,0:T(8,128)}', space=vmem, size = 0x8000, scoped, tag = 'scratch operand']
  %s0 = inlined_call_operand.vmem [shape: bf16[32,384], index: 0, kind: input, shape index: {}]
  %s1 = inlined_call_operand.vmem [shape: f32[32,1], index: 1, kind: input, shape index: {}]
  %s2 = inlined_call_operand.vmem [shape: bf16[384,128], index: 2, kind: input, shape index: {}]
  %s3 = inlined_call_operand.vmem [shape: bf16[384,128], index: 3, kind: input, shape index: {}]
  %s4 = inlined_call_operand.hbm [shape: f32[32,256], index: 4, kind: output, shape index: {}]
  %s5 = sld [smem:[#allocation0]]
  $region98: #{encoder_gin_forward.5} parent=0
    _
  %s7 = ssub.s32 1, %s5
  %s8 = scalar_select 0, %s7, %s5
  $region1: #{encoder_gin_forward.5} parent=0
    #allocation3 [shape = 'u8[16384]{0}', space=vmem, size = 0x4000, scoped, tag = 'input window, operand 0']
    #allocation4 [shape = 'u8[32768]{0}', space=vmem, size = 0x8000, scoped, tag = 'output window, operand 0, single buffered']
    #allocation5 [shape = 's32[2]{0}', space=sflag, size = 0x8, scoped, tag = 'scoped memory for encoder_gin_forward.5']
    %9 = vsyncpa [#allocation5], 0
    loop: start=0, step=1, limit=5
    $region2: #{encoder_gin_forward.5} parent=1 // loop_pre_header
      _
    $region3: #{encoder_gin_forward.5} parent=1 // loop_header
      %s11 = sphi 0, %s15
      %p12 = scmp.ge.s32.totalorder %s11, 5
      %s21 = sphi 0, %s23
      %s24 = sphi 0, %s21
      %s25 = sphi 0, %s24
      %s41 = sphi 0, %s25
      %s45 = sphi 0, %s45
      %s47 = sphi 0, %s45
      %s48 = sphi 0, %s47
      %s62 = sphi 0, %s48
      %s68 = sphi 0, %s70
      %s71 = sphi 0, %s68
      %s72 = sphi 0, %s71
      %s88 = sphi 0, %s72
      %s94 = sphi 0, %s96
      %s97 = sphi 0, %s94
      %s98 = sphi 0, %s97
      %s114 = sphi 0, %s98
      %s118 = sphi 0, %s118
      %s120 = sphi 0, %s118
      %s121 = sphi 0, %s120
      %s135 = sphi 0, %s121
    $region4: #{encoder_gin_forward.5} parent=1 // loop_header_branch
      %14 = sbr.rel (%p12) target = $region8
    $region5: #{encoder_gin_forward.5} parent=1 // loop_body
      %s16 = ssub.s32 %s11, 1
      %s17 = ssub.s32 %s11, 2
      %s18 = sadd.s32 %s11, 1
      %s19 = ssub.s32 %s11, %s18
      %p20 = scmp.eq.s32.totalorder %s19, 0
      %s22 = sadd.s32 %s21, 1
      %s23 = scalar_select %p20, %s21, %s22
      %p26 = pneg %p20
      %p27 = scmp.eq.s32.totalorder %s11, 2
      %p28 = por %p26, %p27
      %p29 = scmp.ne.s32.totalorder %s21, %s24
      %p30 = scmp.eq.s32.totalorder %s11, 0
      %p31 = por %p29, %p30
      %p32 = scmp.ne.s32.totalorder %s21, %s24
      %p33 = scmp.eq.s32.totalorder %s16, 2
      %p34 = por %p32, %p33
      %p35 = scmp.ne.s32.totalorder %s24, %s25
      %p36 = scmp.eq.s32.totalorder %s16, 0
      %p37 = por %p35, %p36
      %p38 = scmp.ne.s32.totalorder %s24, %s25
      %p39 = scmp.eq.s32.totalorder %s17, 2
      %p40 = por %p38, %p39
      %p42 = scmp.ne.s32.totalorder %s25, %s41
      %p43 = scmp.eq.s32.totalorder %s17, 0
      %p44 = por %p42, %p43
      %s46 = sadd.s32 %s45, 1
      %p49 = scmp.eq.s32.totalorder %s11, 2
      %p50 = scmp.ne.s32.totalorder %s45, %s47
      %p51 = scmp.eq.s32.totalorder %s11, 0
      %p52 = por %p50, %p51
      %p53 = scmp.ne.s32.totalorder %s45, %s47
      %p54 = scmp.eq.s32.totalorder %s16, 2
      %p55 = por %p53, %p54
      %p56 = scmp.ne.s32.totalorder %s47, %s48
      %p57 = scmp.eq.s32.totalorder %s16, 0
      %p58 = por %p56, %p57
      %p59 = scmp.ne.s32.totalorder %s47, %s48
      %p60 = scmp.eq.s32.totalorder %s17, 2
      %p61 = por %p59, %p60
      %p63 = scmp.ne.s32.totalorder %s48, %s62
      %p64 = scmp.eq.s32.totalorder %s17, 0
      %p65 = por %p63, %p64
      %s66 = ssub.s32 %s11, %s18
      %p67 = scmp.eq.s32.totalorder %s66, 0
      %s69 = sadd.s32 %s68, 1
      %s70 = scalar_select %p67, %s68, %s69
      %p73 = pneg %p67
      %p74 = scmp.eq.s32.totalorder %s11, 2
      %p75 = por %p73, %p74
      %p76 = scmp.ne.s32.totalorder %s68, %s71
      %p77 = scmp.eq.s32.totalorder %s11, 0
      %p78 = por %p76, %p77
      %p79 = scmp.ne.s32.totalorder %s68, %s71
      %p80 = scmp.eq.s32.totalorder %s16, 2
      %p81 = por %p79, %p80
      %p82 = scmp.ne.s32.totalorder %s71, %s72
      %p83 = scmp.eq.s32.totalorder %s16, 0
      %p84 = por %p82, %p83
      %p85 = scmp.ne.s32.totalorder %s71, %s72
      %p86 = scmp.eq.s32.totalorder %s17, 2
      %p87 = por %p85, %p86
      %p89 = scmp.ne.s32.totalorder %s72, %s88
      %p90 = scmp.eq.s32.totalorder %s17, 0
      %p91 = por %p89, %p90
      %s92 = ssub.s32 %s11, %s18
      %p93 = scmp.eq.s32.totalorder %s92, 0
      %s95 = sadd.s32 %s94, 1
      %s96 = scalar_select %p93, %s94, %s95
      %p99 = pneg %p93
      %p100 = scmp.eq.s32.totalorder %s11, 2
      %p101 = por %p99, %p100
      %p102 = scmp.ne.s32.totalorder %s94, %s97
      %p103 = scmp.eq.s32.totalorder %s11, 0
      %p104 = por %p102, %p103
      %p105 = scmp.ne.s32.totalorder %s94, %s97
      %p106 = scmp.eq.s32.totalorder %s16, 2
      %p107 = por %p105, %p106
      %p108 = scmp.ne.s32.totalorder %s97, %s98
      %p109 = scmp.eq.s32.totalorder %s16, 0
      %p110 = por %p108, %p109
      %p111 = scmp.ne.s32.totalorder %s97, %s98
      %p112 = scmp.eq.s32.totalorder %s17, 2
      %p113 = por %p111, %p112
      %p115 = scmp.ne.s32.totalorder %s98, %s114
      %p116 = scmp.eq.s32.totalorder %s17, 0
      %p117 = por %p115, %p116
      %s119 = sadd.s32 %s118, 1
      %p122 = scmp.eq.s32.totalorder %s11, 2
      %p123 = scmp.ne.s32.totalorder %s118, %s120
      %p124 = scmp.eq.s32.totalorder %s11, 0
      %p125 = por %p123, %p124
      %p126 = scmp.ne.s32.totalorder %s118, %s120
      %p127 = scmp.eq.s32.totalorder %s16, 2
      %p128 = por %p126, %p127
      %p129 = scmp.ne.s32.totalorder %s120, %s121
      %p130 = scmp.eq.s32.totalorder %s16, 0
      %p131 = por %p129, %p130
      %p132 = scmp.ne.s32.totalorder %s120, %s121
      %p133 = scmp.eq.s32.totalorder %s17, 2
      %p134 = por %p132, %p133
      %p136 = scmp.ne.s32.totalorder %s121, %s135
      %p137 = scmp.eq.s32.totalorder %s17, 0
      %p138 = por %p136, %p137
      %p139 = scmp.le.s32.totalorder 1, %s11
      %p140 = scmp.lt.s32.totalorder %s11, 4
      %p141 = pnand %p139, %p140
      %p142 = pneg %p141
      // Predicated region
      $region9: #{encoder_gin_forward.5} parent=5 // pred_check
        _
      $region10: #{encoder_gin_forward.5} parent=5 // pred_check_branch
        %144 = sbr.rel (%p141) target = $region12
      $region11: #{encoder_gin_forward.5} parent=5 // pred_region
        %s145 = ssub.s32 %s11, 1
        // Predicated region
        $region13: #{encoder_gin_forward.5} parent=11 // pred_check
          %p146 = pneg %p58
        $region14: #{encoder_gin_forward.5} parent=11 // pred_check_branch
          %148 = sbr.rel (%p146) target = $region16
        $region15: #{encoder_gin_forward.5} parent=11 // pred_region
          _
        $region16: #{encoder_gin_forward.5} parent=11 // pred_fallthru
          _
      $region12: #{encoder_gin_forward.5} parent=5 // pred_fallthru
        _
      %p149 = scmp.lt.s32.totalorder %s11, 3
      // Predicated region
      $region17: #{encoder_gin_forward.5} parent=5 // pred_check
        %p150 = pneg %p149
      $region18: #{encoder_gin_forward.5} parent=5 // pred_check_branch
        %152 = sbr.rel (%p150) target = $region20
      $region19: #{encoder_gin_forward.5} parent=5 // pred_region
        // Predicated region
        $region21: #{encoder_gin_forward.5} parent=19 // pred_check
          %p153 = pneg %p31
        $region22: #{encoder_gin_forward.5} parent=19 // pred_check_branch
          %155 = sbr.rel (%p153) target = $region24
        $region23: #{encoder_gin_forward.5} parent=19 // pred_region
          %s156 = sand.u32 %s21, 1
          %s157 = sand.u32 %s21, 1
          %s158 = smul.addr %s157, 16
          %s159 = scalar_lea.vmem [#allocation3], %s158
          %s160 = smul.addr %s11, 4
          %s161 = scalar_lea.vmem %s0, %s160
          // Predicated region
          $region25: #{encoder_gin_forward.5} parent=23 // pred_check
            _
          $region26: #{encoder_gin_forward.5} parent=23 // pred_check_branch
            %163 = sbr.rel (0) target = $region28
          $region27: #{encoder_gin_forward.5} parent=23 // pred_region
            // Predicated region
            $region29: #{encoder_gin_forward.5} parent=27 // pred_check
              _
            $region30: #{encoder_gin_forward.5} parent=27 // pred_check_branch
              %165 = sbr.rel target = $region32
            $region31: #{encoder_gin_forward.5} parent=27 // pred_region
              // Predicated region
              $region44: #{encoder_gin_forward.5} parent=31 // pred_check
                _
              $region45: #{encoder_gin_forward.5} parent=31 // pred_check_branch
                %186 = sbr.rel (0) target = $region47
              $region46: #{encoder_gin_forward.5} parent=31 // pred_region
                loop: start=0, step=1, limit=1
                $region48: #{encoder_gin_forward.5} parent=46 // loop_pre_header
                  _
                $region49: #{encoder_gin_forward.5} parent=46 // loop_header
                  %s188 = sphi 0, %s192
                  %p189 = scmp.ge.s32.totalorder %s188, 1
                  %s193 = sphi %s161, %s161
                  %s194 = sphi %s159, %s159
                $region50: #{encoder_gin_forward.5} parent=46 // loop_header_branch
                  %191 = sbr.rel (%p189) target = $region54
                $region51: #{encoder_gin_forward.5} parent=46 // loop_body
                  _
                $region52: #{encoder_gin_forward.5} parent=46 // loop_footer
                  %s192 = sadd.s32 1, %s188
                $region53: #{encoder_gin_forward.5} parent=46 // loop_footer_branch
                  %187 = sbr.rel target = $region49
                $region54: #{encoder_gin_forward.5} parent=46 // loop_exit
                  _
                loop: start=0, step=1, limit=1
                $region55: #{encoder_gin_forward.5} parent=46 // loop_pre_header
                  _
                $region56: #{encoder_gin_forward.5} parent=46 // loop_header
                  %s197 = sphi 0, %s201
                  %p198 = scmp.ge.s32.totalorder %s197, 1
                  %s202 = sphi %s161, %s161
                  %s203 = sphi %s159, %s159
                $region57: #{encoder_gin_forward.5} parent=46 // loop_header_branch
                  %200 = sbr.rel (%p198) target = $region61
                $region58: #{encoder_gin_forward.5} parent=46 // loop_body
                  %v204 = vld [vmem:[%s202] sm:$0xf]
                  %205 = vst [vmem:[%s203] sm:$0xf] %v204
                  %v206 = vld [vmem:[%s202 + $0xc] sm:$0xf]
                  %207 = vst [vmem:[%s203 + $0x4] sm:$0xf] %v206
                  %v208 = vld [vmem:[%s202 + $0x18] sm:$0xf]
                  %209 = vst [vmem:[%s203 + $0x8] sm:$0xf] %v208
                  %v210 = vld [vmem:[%s202 + $0x24] sm:$0xf]
                  %211 = vst [vmem:[%s203 + $0xc] sm:$0xf] %v210
                $region59: #{encoder_gin_forward.5} parent=46 // loop_footer
                  %s201 = sadd.s32 1, %s197
                $region60: #{encoder_gin_forward.5} parent=46 // loop_footer_branch
                  %196 = sbr.rel target = $region56
                $region61: #{encoder_gin_forward.5} parent=46 // loop_exit
                  _
              $region47: #{encoder_gin_forward.5} parent=31 // pred_fallthru
                _
            $region32: #{encoder_gin_forward.5} parent=27 // pred_fallthru
              _
            // Predicated region
            $region33: #{encoder_gin_forward.5} parent=27 // pred_check
              _
            $region34: #{encoder_gin_forward.5} parent=27 // pred_check_branch
              %167 = sbr.rel (0) target = $region36
            $region35: #{encoder_gin_forward.5} parent=27 // pred_region
              loop: start=0, step=1, limit=1
              $region37: #{encoder_gin_forward.5} parent=35 // loop_pre_header
                _
              $region38: #{encoder_gin_forward.5} parent=35 // loop_header
                %s170 = sphi 0, %s174
                %p171 = scmp.ge.s32.totalorder %s170, 1
                %s175 = sphi %s161, %s161
                %s176 = sphi %s159, %s159
              $region39: #{encoder_gin_forward.5} parent=35 // loop_header_branch
                %173 = sbr.rel (%p171) target = $region43
              $region40: #{encoder_gin_forward.5} parent=35 // loop_body
                %v177 = vld [vmem:[%s175] sm:$0xf]
                %178 = vst [vmem:[%s176] sm:$0xf] %v177
                %v179 = vld [vmem:[%s175 + $0xc] sm:$0xf]
                %180 = vst [vmem:[%s176 + $0x4] sm:$0xf] %v179
                %v181 = vld [vmem:[%s175 + $0x18] sm:$0xf]
                %182 = vst [vmem:[%s176 + $0x8] sm:$0xf] %v181
                %v183 = vld [vmem:[%s175 + $0x24] sm:$0xf]
                %184 = vst [vmem:[%s176 + $0xc] sm:$0xf] %v183
              $region41: #{encoder_gin_forward.5} parent=35 // loop_footer
                %s174 = sadd.s32 1, %s170
              $region42: #{encoder_gin_forward.5} parent=35 // loop_footer_branch
                %169 = sbr.rel target = $region38
              $region43: #{encoder_gin_forward.5} parent=35 // loop_exit
                _
            $region36: #{encoder_gin_forward.5} parent=27 // pred_fallthru
              _
          $region28: #{encoder_gin_forward.5} parent=23 // pred_fallthru
            _
          %212 = vnop
        $region24: #{encoder_gin_forward.5} parent=19 // pred_fallthru
          _
        // Predicated region
        $region62: #{encoder_gin_forward.5} parent=19 // pred_check
          %p213 = pneg %p78
        $region63: #{encoder_gin_forward.5} parent=19 // pred_check_branch
          %215 = sbr.rel (%p213) target = $region65
        $region64: #{encoder_gin_forward.5} parent=19 // pred_region
          %s216 = smul.u32 16, %s11
          %p217 = scmp.lt.s32.totalorder %s216, 47
          %s218 = scalar_select %p217, %s216, 47
          %s219 = smul.addr %s218, 4
          %s220 = scalar_lea.vmem %s2, %s219
          %s221 = smul.u32 16, %s11
        $region65: #{encoder_gin_forward.5} parent=19 // pred_fallthru
          _
        // Predicated region
        $region66: #{encoder_gin_forward.5} parent=19 // pred_check
          %p222 = pneg %p104
        $region67: #{encoder_gin_forward.5} parent=19 // pred_check_branch
          %224 = sbr.rel (%p222) target = $region69
        $region68: #{encoder_gin_forward.5} parent=19 // pred_region
          %s225 = smul.u32 16, %s11
          %p226 = scmp.lt.s32.totalorder %s225, 47
          %s227 = scalar_select %p226, %s225, 47
          %s228 = smul.addr %s227, 4
          %s229 = scalar_lea.vmem %s3, %s228
          %s230 = smul.u32 16, %s11
        $region69: #{encoder_gin_forward.5} parent=19 // pred_fallthru
          _
      $region20: #{encoder_gin_forward.5} parent=5 // pred_fallthru
        _
      %p231 = scmp.le.s32.totalorder 1, %s11
      %p232 = scmp.lt.s32.totalorder %s11, 4
      %p233 = pnand %p231, %p232
      %p234 = pneg %p233
      // Predicated region
      $region70: #{encoder_gin_forward.5} parent=5 // pred_check
        _
      $region71: #{encoder_gin_forward.5} parent=5 // pred_check_branch
        %236 = sbr.rel (%p233) target = $region73
      $region72: #{encoder_gin_forward.5} parent=5 // pred_region
        %s237 = ssub.s32 %s11, 1
        %s238 = sand.u32 %s24, 1
        %s239 = sand.u32 %s24, 1
        %s240 = smul.addr %s239, 16
        %s241 = scalar_lea.vmem [#allocation3], %s240
        // Predicated region
        $region74: #{encoder_gin_forward.5} parent=72 // pred_check
          %p242 = pneg %p37
        $region75: #{encoder_gin_forward.5} parent=72 // pred_check_branch
          %244 = sbr.rel (%p242) target = $region77
        $region76: #{encoder_gin_forward.5} parent=72 // pred_region
          _
        $region77: #{encoder_gin_forward.5} parent=72 // pred_fallthru
          _
        %s245 = sand.u32 %s24, 1
        %s246 = sand.u32 %s24, 1
        %s247 = smul.addr %s246, 16
        %s248 = scalar_lea.vmem [#allocation3], %s247
        %p249 = pneg %p37
        %p250 = pneg %p34
        %p251 = pneg %p58
        %p252 = pneg %p55
        %s253 = smul.u32 16, %s16
        %p254 = scmp.lt.s32.totalorder %s253, 47
        %s255 = scalar_select %p254, %s253, 47
        %s256 = smul.addr %s255, 4
        %s257 = scalar_lea.vmem %s2, %s256
        %p258 = pneg %p84
        %p259 = pneg %p81
        %s260 = smul.u32 16, %s16
        %p261 = scmp.lt.s32.totalorder %s260, 47
        %s262 = scalar_select %p261, %s260, 47
        %s263 = smul.addr %s262, 4
        %s264 = scalar_lea.vmem %s3, %s263
        %p265 = pneg %p110
        %p266 = pneg %p107
        %p267 = pneg %p131
        %p268 = pneg %p128
        %s269 = smul.u32 16, %s16
        %p270 = scmp.lt.s32.totalorder %s269, 47
        %s271 = scalar_select %p270, %s269, 47
        %s272 = smul.addr %s271, 4
        %s273 = scalar_lea.vmem %s2, %s272
        %s274 = smul.u32 16, %s16
        %s275 = smul.u32 16, %s16
        %p276 = scmp.lt.s32.totalorder %s275, 47
        %s277 = scalar_select %p276, %s275, 47
        %s278 = smul.addr %s277, 4
        %s279 = scalar_lea.vmem %s3, %s278
        %s280 = smul.u32 16, %s16
        %p282 = scmp.eq.s32.totalorder %s16, 0
        // Predicated region
        $region78: #{encoder_gin_forward.5} parent=72 // pred_check
          %p283 = pneg %p282
        $region79: #{encoder_gin_forward.5} parent=72 // pred_check_branch
          %285 = sbr.rel (%p283) target = $region81
        $region80: #{encoder_gin_forward.5} parent=72 // pred_region
          %286 = vst [vmem:[#allocation2] sm:$0xff] 0.0
          %287 = vst [vmem:[#allocation2 + $0x8] sm:$0xff] 0.0
          %288 = vst [vmem:[#allocation2 + $0x10] sm:$0xff] 0.0
          %289 = vst [vmem:[#allocation2 + $0x18] sm:$0xff] 0.0
          %290 = vst [vmem:[#allocation2 + $0x20] sm:$0xff] 0.0
          %291 = vst [vmem:[#allocation2 + $0x28] sm:$0xff] 0.0
          %292 = vst [vmem:[#allocation2 + $0x30] sm:$0xff] 0.0
          %293 = vst [vmem:[#allocation2 + $0x38] sm:$0xff] 0.0
        $region81: #{encoder_gin_forward.5} parent=72 // pred_fallthru
          _
        %v294 = vld [vmem:[%s241] sm:$0xf]
        %v295 = vld [vmem:[%s241 + $0x4] sm:$0xf]
        %v296 = vld [vmem:[%s241 + $0x8] sm:$0xf]
        %v297 = vld [vmem:[%s241 + $0xc] sm:$0xf]
        %v298 = vld [vmem:[#allocation2] sm:$0xff]
        %v299 = vld [vmem:[#allocation2 + $0x10] sm:$0xff]
        %v300 = vld [vmem:[#allocation2 + $0x20] sm:$0xff]
        %v301 = vld [vmem:[#allocation2 + $0x30] sm:$0xff]
        %v302 = vld [vmem:[%s273] sm:$0xf]
        %v303 = vld [vmem:[%s273 + $0x4] sm:$0xf]
        %v304 = vld [vmem:[%s273 + $0x8] sm:$0xf]
        %v305 = vld [vmem:[%s273 + $0xc] sm:$0xf]
        %v306 = vld [vmem:[%s273 + $0x10] sm:$0xf]
        %v307 = vld [vmem:[%s273 + $0x14] sm:$0xf]
        %v308 = vld [vmem:[%s273 + $0x18] sm:$0xf]
        %v309 = vld [vmem:[%s273 + $0x1c] sm:$0xf]
        %v310 = vld [vmem:[%s273 + $0x20] sm:$0xf]
        %v311 = vld [vmem:[%s273 + $0x24] sm:$0xf]
        %v312 = vld [vmem:[%s273 + $0x28] sm:$0xf]
        %v313 = vld [vmem:[%s273 + $0x2c] sm:$0xf]
        %v314 = vld [vmem:[%s273 + $0x30] sm:$0xf]
        %v315 = vld [vmem:[%s273 + $0x34] sm:$0xf]
        %v316 = vld [vmem:[%s273 + $0x38] sm:$0xf]
        %v317 = vld [vmem:[%s273 + $0x3c] sm:$0xf]
        %v322 = vunpack.c.l.b16 %v294
        %v323 = vunpack.c.l.b16 %v295
        %v324 = vunpack.c.l.b16 %v296
        %v325 = vunpack.c.l.b16 %v297
        %v326 = vpack.c.b16 %v323, %v322
        %v327 = vpack.c.b16 %v325, %v324
        %v346 = vunpack.c.l.b16 %v302
        %v347 = vunpack.c.l.b16 %v303
        %v348 = vunpack.c.l.b16 %v304
        %v349 = vunpack.c.l.b16 %v305
        %v350 = vunpack.c.l.b16 %v306
        %v351 = vunpack.c.l.b16 %v307
        %v352 = vunpack.c.l.b16 %v308
        %v353 = vunpack.c.l.b16 %v309
        %v354 = vunpack.c.l.b16 %v310
        %v355 = vunpack.c.l.b16 %v311
        %v356 = vunpack.c.l.b16 %v312
        %v357 = vunpack.c.l.b16 %v313
        %v358 = vunpack.c.l.b16 %v314
        %v359 = vunpack.c.l.b16 %v315
        %v360 = vunpack.c.l.b16 %v316
        %v361 = vunpack.c.l.b16 %v317
        %v362 = vpack.c.b16 %v347, %v346
        %v363 = vpack.c.b16 %v349, %v348
        %v364 = vpack.c.b16 %v351, %v350
        %v365 = vpack.c.b16 %v353, %v352
        %v366 = vpack.c.b16 %v355, %v354
        %v367 = vpack.c.b16 %v357, %v356
        %v368 = vpack.c.b16 %v359, %v358
        %v369 = vpack.c.b16 %v361, %v360
        %378 = vmatprep.subr.bf16.mxu0 0
        %379 = vmatpush1.bf16.msra.mxu0 %v362
        %380 = vmatprep.subr.bf16.mxu0 0
        %381 = vmatpush1.bf16.msra.mxu0 %v363
        %382 = vmatprep.subr.bf16.mxu0 0
        %383 = vmatpush1.bf16.msra.mxu0 %v364
        %384 = vmatprep.subr.bf16.mxu0 0
        %385 = vmatpush1.bf16.msra.mxu0 %v365
        %386 = vmatprep.subr.bf16.mxu0 0
        %387 = vmatpush1.bf16.msra.mxu0 %v366
        %388 = vmatprep.subr.bf16.mxu0 0
        %389 = vmatpush1.bf16.msra.mxu0 %v367
        %390 = vmatprep.subr.bf16.mxu0 0
        %391 = vmatpush1.bf16.msra.mxu0 %v368
        %392 = vmatprep.subr.bf16.mxu0 0
        %393 = vmatpush1.bf16.msra.mxu0 %v369
        %394 = vmatprep.subr.bf16.mxu0 0
        %395 = vmatpush1.bf16.msra.mxu0 0
        %396 = vmatprep.subr.bf16.mxu0 0
        %397 = vmatpush1.bf16.msra.mxu0 0
        %398 = vmatprep.subr.bf16.mxu0 0
        %399 = vmatpush1.bf16.msra.mxu0 0
        %400 = vmatprep.subr.bf16.mxu0 0
        %401 = vmatpush1.bf16.msra.mxu0 0
        %402 = vmatprep.subr.bf16.mxu0 0
        %403 = vmatpush1.bf16.msra.mxu0 0
        %404 = vmatprep.subr.bf16.mxu0 0
        %405 = vmatpush1.bf16.msra.mxu0 0
        %406 = vmatprep.subr.bf16.mxu0 0
        %407 = vmatpush1.bf16.msra.mxu0 0
        %408 = vmatprep.subr.bf16.mxu0 0
        %409 = vmatpush1.bf16.msra.mxu0 0
        %410 = vmatprep.mubr.bf16.mxu0 0
        %411 = vmatmul.mubr.bf16.gmra.mrb[0].mxu0 %v326
        %v412 = vpop.f32.mrb[0].mxu0
        %v413 = vadd.f32 0.0, %v412
        %v414 = vpop.f32.mrb[0].mxu0
        %v415 = vpop.f32.mrb[0].mxu0
        %v416 = vadd.f32 0.0, %v415
        %v417 = vpop.f32.mrb[0].mxu0
        %418 = vmatprep.mubr.bf16.mxu0 0
        %419 = vmatmul.mubr.bf16.gmra.mrb[0].mxu0 %v327
        %v420 = vpop.f32.mrb[0].mxu0
        %v421 = vadd.f32 0.0, %v420
        %v422 = vpop.f32.mrb[0].mxu0
        %v423 = vpop.f32.mrb[0].mxu0
        %v424 = vadd.f32 0.0, %v423
        %v425 = vpop.f32.mrb[0].mxu0
        %426 = vdwg.mxu0
        %v427 = vadd.f32 %v298, %v413
        %v428 = vadd.f32 %v299, %v416
        %v429 = vadd.f32 %v300, %v421
        %v430 = vadd.f32 %v301, %v424
        %431 = vst [vmem:[#allocation2] sm:$0xff] %v427
        %432 = vst [vmem:[#allocation2 + $0x10] sm:$0xff] %v428
        %433 = vst [vmem:[#allocation2 + $0x20] sm:$0xff] %v429
        %434 = vst [vmem:[#allocation2 + $0x30] sm:$0xff] %v430
        %v435 = vld [vmem:[#allocation2 + $0x8] sm:$0xff]
        %v436 = vld [vmem:[#allocation2 + $0x18] sm:$0xff]
        %v437 = vld [vmem:[#allocation2 + $0x28] sm:$0xff]
        %v438 = vld [vmem:[#allocation2 + $0x38] sm:$0xff]
        %v439 = vld [vmem:[%s279] sm:$0xf]
        %v440 = vld [vmem:[%s279 + $0x4] sm:$0xf]
        %v441 = vld [vmem:[%s279 + $0x8] sm:$0xf]
        %v442 = vld [vmem:[%s279 + $0xc] sm:$0xf]
        %v443 = vld [vmem:[%s279 + $0x10] sm:$0xf]
        %v444 = vld [vmem:[%s279 + $0x14] sm:$0xf]
        %v445 = vld [vmem:[%s279 + $0x18] sm:$0xf]
        %v446 = vld [vmem:[%s279 + $0x1c] sm:$0xf]
        %v447 = vld [vmem:[%s279 + $0x20] sm:$0xf]
        %v448 = vld [vmem:[%s279 + $0x24] sm:$0xf]
        %v449 = vld [vmem:[%s279 + $0x28] sm:$0xf]
        %v450 = vld [vmem:[%s279 + $0x2c] sm:$0xf]
        %v451 = vld [vmem:[%s279 + $0x30] sm:$0xf]
        %v452 = vld [vmem:[%s279 + $0x34] sm:$0xf]
        %v453 = vld [vmem:[%s279 + $0x38] sm:$0xf]
        %v454 = vld [vmem:[%s279 + $0x3c] sm:$0xf]
        %v471 = vunpack.c.l.b16 %v439
        %v472 = vunpack.c.l.b16 %v440
        %v473 = vunpack.c.l.b16 %v441
        %v474 = vunpack.c.l.b16 %v442
        %v475 = vunpack.c.l.b16 %v443
        %v476 = vunpack.c.l.b16 %v444
        %v477 = vunpack.c.l.b16 %v445
        %v478 = vunpack.c.l.b16 %v446
        %v479 = vunpack.c.l.b16 %v447
        %v480 = vunpack.c.l.b16 %v448
        %v481 = vunpack.c.l.b16 %v449
        %v482 = vunpack.c.l.b16 %v450
        %v483 = vunpack.c.l.b16 %v451
        %v484 = vunpack.c.l.b16 %v452
        %v485 = vunpack.c.l.b16 %v453
        %v486 = vunpack.c.l.b16 %v454
        %v487 = vpack.c.b16 %v472, %v471
        %v488 = vpack.c.b16 %v474, %v473
        %v489 = vpack.c.b16 %v476, %v475
        %v490 = vpack.c.b16 %v478, %v477
        %v491 = vpack.c.b16 %v480, %v479
        %v492 = vpack.c.b16 %v482, %v481
        %v493 = vpack.c.b16 %v484, %v483
        %v494 = vpack.c.b16 %v486, %v485
        %503 = vmatprep.subr.bf16.mxu0 0
        %504 = vmatpush1.bf16.msra.mxu0 %v487
        %505 = vmatprep.subr.bf16.mxu0 0
        %506 = vmatpush1.bf16.msra.mxu0 %v488
        %507 = vmatprep.subr.bf16.mxu0 0
        %508 = vmatpush1.bf16.msra.mxu0 %v489
        %509 = vmatprep.subr.bf16.mxu0 0
        %510 = vmatpush1.bf16.msra.mxu0 %v490
        %511 = vmatprep.subr.bf16.mxu0 0
        %512 = vmatpush1.bf16.msra.mxu0 %v491
        %513 = vmatprep.subr.bf16.mxu0 0
        %514 = vmatpush1.bf16.msra.mxu0 %v492
        %515 = vmatprep.subr.bf16.mxu0 0
        %516 = vmatpush1.bf16.msra.mxu0 %v493
        %517 = vmatprep.subr.bf16.mxu0 0
        %518 = vmatpush1.bf16.msra.mxu0 %v494
        %519 = vmatprep.subr.bf16.mxu0 0
        %520 = vmatpush1.bf16.msra.mxu0 0
        %521 = vmatprep.subr.bf16.mxu0 0
        %522 = vmatpush1.bf16.msra.mxu0 0
        %523 = vmatprep.subr.bf16.mxu0 0
        %524 = vmatpush1.bf16.msra.mxu0 0
        %525 = vmatprep.subr.bf16.mxu0 0
        %526 = vmatpush1.bf16.msra.mxu0 0
        %527 = vmatprep.subr.bf16.mxu0 0
        %528 = vmatpush1.bf16.msra.mxu0 0
        %529 = vmatprep.subr.bf16.mxu0 0
        %530 = vmatpush1.bf16.msra.mxu0 0
        %531 = vmatprep.subr.bf16.mxu0 0
        %532 = vmatpush1.bf16.msra.mxu0 0
        %533 = vmatprep.subr.bf16.mxu0 0
        %534 = vmatpush1.bf16.msra.mxu0 0
        %535 = vmatprep.mubr.bf16.mxu0 0
        %536 = vmatmul.mubr.bf16.gmra.mrb[0].mxu0 %v326
        %v537 = vpop.f32.mrb[0].mxu0
        %v538 = vadd.f32 0.0, %v537
        %v539 = vpop.f32.mrb[0].mxu0
        %v540 = vpop.f32.mrb[0].mxu0
        %v541 = vadd.f32 0.0, %v540
        %v542 = vpop.f32.mrb[0].mxu0
        %543 = vmatprep.mubr.bf16.mxu0 0
        %544 = vmatmul.mubr.bf16.gmra.mrb[0].mxu0 %v327
        %v545 = vpop.f32.mrb[0].mxu0
        %v546 = vadd.f32 0.0, %v545
        %v547 = vpop.f32.mrb[0].mxu0
        %v548 = vpop.f32.mrb[0].mxu0
        %v549 = vadd.f32 0.0, %v548
        %v550 = vpop.f32.mrb[0].mxu0
        %551 = vdwg.mxu0
        %v552 = vadd.f32 %v435, %v538
        %v553 = vadd.f32 %v436, %v541
        %v554 = vadd.f32 %v437, %v546
        %v555 = vadd.f32 %v438, %v549
        %556 = vst [vmem:[#allocation2 + $0x8] sm:$0xff] %v552
        %557 = vst [vmem:[#allocation2 + $0x18] sm:$0xff] %v553
        %558 = vst [vmem:[#allocation2 + $0x28] sm:$0xff] %v554
        %559 = vst [vmem:[#allocation2 + $0x38] sm:$0xff] %v555
        %p560 = scmp.eq.s32.totalorder %s16, 2
        // Predicated region
        $region82: #{encoder_gin_forward.5} parent=72 // pred_check
          %p561 = pneg %p560
        $region83: #{encoder_gin_forward.5} parent=72 // pred_check_branch
          %563 = sbr.rel (%p561) target = $region85
        $region84: #{encoder_gin_forward.5} parent=72 // pred_region
          %v564 = vld [vmem:[#allocation2] sm:$0xff]
          %v565 = vld [vmem:[#allocation2 + $0x8] sm:$0xff]
          %v566 = vld [vmem:[#allocation2 + $0x10] sm:$0xff]
          %v567 = vld [vmem:[#allocation2 + $0x18] sm:$0xff]
          %v568 = vld [vmem:[#allocation2 + $0x20] sm:$0xff]
          %v569 = vld [vmem:[#allocation2 + $0x28] sm:$0xff]
          %v570 = vld [vmem:[#allocation2 + $0x30] sm:$0xff]
          %v571 = vld [vmem:[#allocation2 + $0x38] sm:$0xff]
          %v572 = vld [vmem:[%s1] sm:$0xff]
          %v573 = vld [vmem:[%s1 + $0x8] sm:$0xff]
          %v574 = vld [vmem:[%s1 + $0x10] sm:$0xff]
          %v575 = vld [vmem:[%s1 + $0x18] sm:$0xff]
          %577 = vset.pattern.permute.xlu0 0
          %578 = vperm.xlu0 %577, %v572
          %v579 = vpop.permute.xlu0 %578
          %582 = vset.pattern.permute.xlu0 0
          %583 = vperm.xlu0 %582, %v573
          %v584 = vpop.permute.xlu0 %583
          %587 = vset.pattern.permute.xlu0 0
          %588 = vperm.xlu0 %587, %v574
          %v589 = vpop.permute.xlu0 %588
          %592 = vset.pattern.permute.xlu0 0
          %593 = vperm.xlu0 %592, %v575
          %v594 = vpop.permute.xlu0 %593
          %v596 = vmul.f32 %v564, %v579
          %v597 = vmul.f32 %v565, %v579
          %v598 = vmul.f32 %v566, %v584
          %v599 = vmul.f32 %v567, %v584
          %v600 = vmul.f32 %v568, %v589
          %v601 = vmul.f32 %v569, %v589
          %v602 = vmul.f32 %v570, %v594
          %v603 = vmul.f32 %v571, %v594
          %604 = vst [vmem:[#allocation4] sm:$0xff] %v596
          %605 = vst [vmem:[#allocation4 + $0x8] sm:$0xff] %v597
          %606 = vst [vmem:[#allocation4 + $0x10] sm:$0xff] %v598
          %607 = vst [vmem:[#allocation4 + $0x18] sm:$0xff] %v599
          %608 = vst [vmem:[#allocation4 + $0x20] sm:$0xff] %v600
          %609 = vst [vmem:[#allocation4 + $0x28] sm:$0xff] %v601
          %610 = vst [vmem:[#allocation4 + $0x30] sm:$0xff] %v602
          %611 = vst [vmem:[#allocation4 + $0x38] sm:$0xff] %v603
        $region85: #{encoder_gin_forward.5} parent=72 // pred_fallthru
          _
        // Predicated region
        $region86: #{encoder_gin_forward.5} parent=72 // pred_check
          %p612 = pneg %p128
        $region87: #{encoder_gin_forward.5} parent=72 // pred_check_branch
          %614 = sbr.rel (%p612) target = $region89
        $region88: #{encoder_gin_forward.5} parent=72 // pred_region
          %s616 = ssub.s32 1024, 1024
          %617 = vsyncadd [#allocation5], %s616
          %s618 = sshll.u32 [#allocation4], 4
          %s619 = int_to_ptr.vmem [resolvable:$true] %s618
          %624 = dma.vmem_to_hbm [thread:$0]  %s619, 1024, %s4, [#allocation5], 256, 256, 16
        $region89: #{encoder_gin_forward.5} parent=72 // pred_fallthru
          _
        // Predicated region
        $region90: #{encoder_gin_forward.5} parent=72 // pred_check
          %p625 = pneg %p128
        $region91: #{encoder_gin_forward.5} parent=72 // pred_check_branch
          %627 = sbr.rel (%p625) target = $region93
        $region92: #{encoder_gin_forward.5} parent=72 // pred_region
          %628 = dma.done [#allocation5], 1024
        $region93: #{encoder_gin_forward.5} parent=72 // pred_fallthru
          _
      $region73: #{encoder_gin_forward.5} parent=5 // pred_fallthru
        _
      %p629 = scmp.le.s32.totalorder 2, %s11
      // Predicated region
      $region94: #{encoder_gin_forward.5} parent=5 // pred_check
        %p630 = pneg %p629
      $region95: #{encoder_gin_forward.5} parent=5 // pred_check_branch
        %632 = sbr.rel (%p630) target = $region97
      $region96: #{encoder_gin_forward.5} parent=5 // pred_region
        %s633 = ssub.s32 %s11, 2
      $region97: #{encoder_gin_forward.5} parent=5 // pred_fallthru
        _
    $region6: #{encoder_gin_forward.5} parent=1 // loop_footer
      %s15 = sadd.s32 1, %s11
    $region7: #{encoder_gin_forward.5} parent=1 // loop_footer_branch
      %10 = sbr.rel target = $region3
    $region8: #{encoder_gin_forward.5} parent=1 // loop_exit
      _
    %634 = vsyncpa [#allocation5], 1
    %s635 = scalar_lea.sflag [#allocation5], 1
    %636 = vsyncpa %s635, 1

// kernel: encoder_gin_forward.3
$region0: #{encoder_gin_forward.3}
  #allocation0 [shape = 'u32[]', space=smem, size = 0x4, offset = 0x4, fixed_abs, tag = 'smem constant byte address 0x4 - core index']
  #allocation1 [shape = 'u32[144,128]{1,0:T(1,128)}', space=vmem, size = 0x12000, scoped, tag = 'internal scratch']
  #allocation2 [shape = 'f32[128,128]{1,0:T(8,128)}', space=vmem, size = 0x10000, scoped, tag = 'scratch operand']
  #allocation3 [shape = 's32[1]{0}', space=sflag, size = 0x4, scoped, tag = 'scoped memory for encoder_gin_forward.3']
  #allocation4 [shape = 'u8[512]{0}', space=smem, size = 0x200, scoped, tag = 'prefetched SMEM operand 0']
  #allocation5 [shape = 'u8[512]{0}', space=smem, size = 0x200, scoped, tag = 'prefetched SMEM operand 1']
  %s0 = inlined_call_operand.vmem [shape: s32[9], index: 0, kind: input, shape index: {}]
  %s1 = inlined_call_operand.vmem [shape: s32[3], index: 1, kind: input, shape index: {}]
  %s2 = inlined_call_operand.hbm [shape: bf16[384,384], index: 2, kind: input, shape index: {}]
  %s3 = inlined_call_operand.hbm [shape: bf16[3,128,128], index: 3, kind: input, shape index: {}]
  %s4 = inlined_call_operand.hbm [shape: bf16[128,128], index: 4, kind: input, shape index: {}]
  %s5 = inlined_call_operand.hbm [shape: f32[1,128], index: 5, kind: input, shape index: {}]
  %s6 = inlined_call_operand.hbm [shape: bf16[128,128], index: 6, kind: input, shape index: {}]
  %s7 = inlined_call_operand.hbm [shape: f32[1,128], index: 7, kind: input, shape index: {}]
  %s8 = inlined_call_operand.vmem [shape: f32[384,128], index: 8, kind: output, shape index: {0}]
  %s9 = inlined_call_operand.vmem [shape: bf16[384,128], index: 9, kind: output, shape index: {1}]
  %10 = xla_tuple %s8, %s9
  %s11 = sld [smem:[#allocation0]]
  $region101: #{encoder_gin_forward.3} parent=0
    _
  %s13 = ssub.s32 1, %s11
  %s14 = scalar_select 0, %s13, %s11
  %s15 = sshll.u32 %s0, 4
  %s16 = int_to_ptr.vmem [resolvable:$true] %s15
  %18 = dma.vmem_to_smem %s16, 16, [#allocation4], [#allocation3]
  %s19 = sshll.u32 %s1, 4
  %s20 = int_to_ptr.vmem [resolvable:$true] %s19
  %22 = dma.vmem_to_smem %s20, 16, [#allocation5], [#allocation3]
  %23 = dma.done [#allocation3], 32
  %24 = sfence
  $region1: #{encoder_gin_forward.3} parent=0
    #allocation6 [shape = 'u8[65536]{0}', space=vmem, size = 0x10000, scoped, tag = 'input window, operand 2']
    #allocation7 [shape = 's32[2]{0}', space=sflag, size = 0x8, scoped, tag = 'scoped memory for encoder_gin_forward.3']
    #allocation8 [shape = 'u8[98304]{0}', space=vmem, size = 0x18000, scoped, tag = 'input window, operand 3, single buffered']
    #allocation9 [shape = 's32[1]{0}', space=sflag, size = 0x4, scoped, tag = 'scoped memory for encoder_gin_forward.3']
    #allocation10 [shape = 'u8[32768]{0}', space=vmem, size = 0x8000, scoped, tag = 'input window, operand 4, single buffered']
    #allocation11 [shape = 'u8[512]{0}', space=vmem, size = 0x400, scoped, tag = 'input window, operand 5, single buffered']
    #allocation12 [shape = 's32[1]{0}', space=sflag, size = 0x4, scoped, tag = 'scoped memory for encoder_gin_forward.3']
    #allocation13 [shape = 'u8[32768]{0}', space=vmem, size = 0x8000, scoped, tag = 'input window, operand 6, single buffered']
    #allocation14 [shape = 'u8[512]{0}', space=vmem, size = 0x400, scoped, tag = 'input window, operand 7, single buffered']
    #allocation15 [shape = 's32[1]{0}', space=sflag, size = 0x4, scoped, tag = 'scoped memory for encoder_gin_forward.3']
    %25 = vsyncpa [#allocation7], 0
    %s26 = scalar_lea.sflag [#allocation7], 1
    %27 = vsyncpa %s26, 0
    %28 = vsyncpa [#allocation9], 0
    %29 = vsyncpa [#allocation12], 0
    %30 = vsyncpa [#allocation15], 0
    loop: start=0, step=1, limit=11
    $region2: #{encoder_gin_forward.3} parent=1 // loop_pre_header
      _
    $region3: #{encoder_gin_forward.3} parent=1 // loop_header
      %s32 = sphi 0, %s36
      %p33 = scmp.ge.s32.totalorder %s32, 11
      %s39 = sphi 0, %s51
      %s40 = sphi 0, %s47
      %s41 = sphi 0, %s39
      %s42 = sphi 0, %s40
      %s43 = sphi 0, %s41
      %s44 = sphi 0, %s42
      %s62 = sphi 0, %s64
      %s65 = sphi 0, %s62
      %s66 = sphi 0, %s65
      %s82 = sphi 0, %s66
      %s86 = sphi 0, %s86
      %s88 = sphi 0, %s86
      %s89 = sphi 0, %s88
      %s103 = sphi 0, %s89
      %s107 = sphi 0, %s107
      %s109 = sphi 0, %s107
      %s110 = sphi 0, %s109
      %s124 = sphi 0, %s110
      %s128 = sphi 0, %s128
      %s130 = sphi 0, %s128
      %s131 = sphi 0, %s130
      %s145 = sphi 0, %s131
      %s149 = sphi 0, %s149
      %s151 = sphi 0, %s149
      %s152 = sphi 0, %s151
      %s166 = sphi 0, %s152
      %s170 = sphi 0, %s170
      %s172 = sphi 0, %s170
      %s173 = sphi 0, %s172
      %s187 = sphi 0, %s173
      %s193 = sphi 0, %s195
      %s196 = sphi 0, %s193
      %s197 = sphi 0, %s196
      %s213 = sphi 0, %s197
      %s219 = sphi 0, %s221
      %s222 = sphi 0, %s219
      %s223 = sphi 0, %s222
      %s239 = sphi 0, %s223
    $region4: #{encoder_gin_forward.3} parent=1 // loop_header_branch
      %35 = sbr.rel (%p33) target = $region8
    $region5: #{encoder_gin_forward.3} parent=1 // loop_body
      %s37 = ssub.s32 %s32, 1
      %s38 = ssub.s32 %s32, 2
      %s45 = sadd.s32 1, %s40
      %p46 = scmp.ge.s32.totalorder %s45, 3
      %s47 = scalar_select %p46, 0, %s45
      %s48 = sadd.s32 1, %s39
      %s49 = scalar_select %p46, %s48, %s39
      %p50 = scmp.ge.s32.totalorder %s49, 3
      %s51 = scalar_select %p50, 0, %s49
      %s52 = smul.u32 %s39, 3
      %s53 = sadd.s32 %s52, %s40
      %s54 = sld [smem:[#allocation4 + %s53]]
      %s55 = smul.u32 %s51, 3
      %s56 = sadd.s32 %s55, %s47
      %s57 = sld [smem:[#allocation4 + %s56]]
      %s58 = ssub.s32 %s39, %s51
      %s59 = ssub.s32 %s54, %s57
      %s60 = sor.u32 %s58, %s59
      %p61 = scmp.eq.s32.totalorder %s60, 0
      %s63 = sadd.s32 %s62, 1
      %s64 = scalar_select %p61, %s62, %s63
      %p67 = pneg %p61
      %p68 = scmp.eq.s32.totalorder %s32, 8
      %p69 = por %p67, %p68
      %p70 = scmp.ne.s32.totalorder %s62, %s65
      %p71 = scmp.eq.s32.totalorder %s32, 0
      %p72 = por %p70, %p71
      %p73 = scmp.ne.s32.totalorder %s62, %s65
      %p74 = scmp.eq.s32.totalorder %s37, 8
      %p75 = por %p73, %p74
      %p76 = scmp.ne.s32.totalorder %s65, %s66
      %p77 = scmp.eq.s32.totalorder %s37, 0
      %p78 = por %p76, %p77
      %p79 = scmp.ne.s32.totalorder %s65, %s66
      %p80 = scmp.eq.s32.totalorder %s38, 8
      %p81 = por %p79, %p80
      %p83 = scmp.ne.s32.totalorder %s66, %s82
      %p84 = scmp.eq.s32.totalorder %s38, 0
      %p85 = por %p83, %p84
      %s87 = sadd.s32 %s86, 1
      %p90 = scmp.eq.s32.totalorder %s32, 8
      %p91 = scmp.ne.s32.totalorder %s86, %s88
      %p92 = scmp.eq.s32.totalorder %s32, 0
      %p93 = por %p91, %p92
      %p94 = scmp.ne.s32.totalorder %s86, %s88
      %p95 = scmp.eq.s32.totalorder %s37, 8
      %p96 = por %p94, %p95
      %p97 = scmp.ne.s32.totalorder %s88, %s89
      %p98 = scmp.eq.s32.totalorder %s37, 0
      %p99 = por %p97, %p98
      %p100 = scmp.ne.s32.totalorder %s88, %s89
      %p101 = scmp.eq.s32.totalorder %s38, 8
      %p102 = por %p100, %p101
      %p104 = scmp.ne.s32.totalorder %s89, %s103
      %p105 = scmp.eq.s32.totalorder %s38, 0
      %p106 = por %p104, %p105
      %s108 = sadd.s32 %s107, 1
      %p111 = scmp.eq.s32.totalorder %s32, 8
      %p112 = scmp.ne.s32.totalorder %s107, %s109
      %p113 = scmp.eq.s32.totalorder %s32, 0
      %p114 = por %p112, %p113
      %p115 = scmp.ne.s32.totalorder %s107, %s109
      %p116 = scmp.eq.s32.totalorder %s37, 8
      %p117 = por %p115, %p116
      %p118 = scmp.ne.s32.totalorder %s109, %s110
      %p119 = scmp.eq.s32.totalorder %s37, 0
      %p120 = por %p118, %p119
      %p121 = scmp.ne.s32.totalorder %s109, %s110
      %p122 = scmp.eq.s32.totalorder %s38, 8
      %p123 = por %p121, %p122
      %p125 = scmp.ne.s32.totalorder %s110, %s124
      %p126 = scmp.eq.s32.totalorder %s38, 0
      %p127 = por %p125, %p126
      %s129 = sadd.s32 %s128, 1
      %p132 = scmp.eq.s32.totalorder %s32, 8
      %p133 = scmp.ne.s32.totalorder %s128, %s130
      %p134 = scmp.eq.s32.totalorder %s32, 0
      %p135 = por %p133, %p134
      %p136 = scmp.ne.s32.totalorder %s128, %s130
      %p137 = scmp.eq.s32.totalorder %s37, 8
      %p138 = por %p136, %p137
      %p139 = scmp.ne.s32.totalorder %s130, %s131
      %p140 = scmp.eq.s32.totalorder %s37, 0
      %p141 = por %p139, %p140
      %p142 = scmp.ne.s32.totalorder %s130, %s131
      %p143 = scmp.eq.s32.totalorder %s38, 8
      %p144 = por %p142, %p143
      %p146 = scmp.ne.s32.totalorder %s131, %s145
      %p147 = scmp.eq.s32.totalorder %s38, 0
      %p148 = por %p146, %p147
      %s150 = sadd.s32 %s149, 1
      %p153 = scmp.eq.s32.totalorder %s32, 8
      %p154 = scmp.ne.s32.totalorder %s149, %s151
      %p155 = scmp.eq.s32.totalorder %s32, 0
      %p156 = por %p154, %p155
      %p157 = scmp.ne.s32.totalorder %s149, %s151
      %p158 = scmp.eq.s32.totalorder %s37, 8
      %p159 = por %p157, %p158
      %p160 = scmp.ne.s32.totalorder %s151, %s152
      %p161 = scmp.eq.s32.totalorder %s37, 0
      %p162 = por %p160, %p161
      %p163 = scmp.ne.s32.totalorder %s151, %s152
      %p164 = scmp.eq.s32.totalorder %s38, 8
      %p165 = por %p163, %p164
      %p167 = scmp.ne.s32.totalorder %s152, %s166
      %p168 = scmp.eq.s32.totalorder %s38, 0
      %p169 = por %p167, %p168
      %s171 = sadd.s32 %s170, 1
      %p174 = scmp.eq.s32.totalorder %s32, 8
      %p175 = scmp.ne.s32.totalorder %s170, %s172
      %p176 = scmp.eq.s32.totalorder %s32, 0
      %p177 = por %p175, %p176
      %p178 = scmp.ne.s32.totalorder %s170, %s172
      %p179 = scmp.eq.s32.totalorder %s37, 8
      %p180 = por %p178, %p179
      %p181 = scmp.ne.s32.totalorder %s172, %s173
      %p182 = scmp.eq.s32.totalorder %s37, 0
      %p183 = por %p181, %p182
      %p184 = scmp.ne.s32.totalorder %s172, %s173
      %p185 = scmp.eq.s32.totalorder %s38, 8
      %p186 = por %p184, %p185
      %p188 = scmp.ne.s32.totalorder %s173, %s187
      %p189 = scmp.eq.s32.totalorder %s38, 0
      %p190 = por %p188, %p189
      %s191 = ssub.s32 %s39, %s51
      %p192 = scmp.eq.s32.totalorder %s191, 0
      %s194 = sadd.s32 %s193, 1
      %s195 = scalar_select %p192, %s193, %s194
      %p198 = pneg %p192
      %p199 = scmp.eq.s32.totalorder %s32, 8
      %p200 = por %p198, %p199
      %p201 = scmp.ne.s32.totalorder %s193, %s196
      %p202 = scmp.eq.s32.totalorder %s32, 0
      %p203 = por %p201, %p202
      %p204 = scmp.ne.s32.totalorder %s193, %s196
      %p205 = scmp.eq.s32.totalorder %s37, 8
      %p206 = por %p204, %p205
      %p207 = scmp.ne.s32.totalorder %s196, %s197
      %p208 = scmp.eq.s32.totalorder %s37, 0
      %p209 = por %p207, %p208
      %p210 = scmp.ne.s32.totalorder %s196, %s197
      %p211 = scmp.eq.s32.totalorder %s38, 8
      %p212 = por %p210, %p211
      %p214 = scmp.ne.s32.totalorder %s197, %s213
      %p215 = scmp.eq.s32.totalorder %s38, 0
      %p216 = por %p214, %p215
      %s217 = ssub.s32 %s39, %s51
      %p218 = scmp.eq.s32.totalorder %s217, 0
      %s220 = sadd.s32 %s219, 1
      %s221 = scalar_select %p218, %s219, %s220
      %p224 = pneg %p218
      %p225 = scmp.eq.s32.totalorder %s32, 8
      %p226 = por %p224, %p225
      %p227 = scmp.ne.s32.totalorder %s219, %s222
      %p228 = scmp.eq.s32.totalorder %s32, 0
      %p229 = por %p227, %p228
      %p230 = scmp.ne.s32.totalorder %s219, %s222
      %p231 = scmp.eq.s32.totalorder %s37, 8
      %p232 = por %p230, %p231
      %p233 = scmp.ne.s32.totalorder %s222, %s223
      %p234 = scmp.eq.s32.totalorder %s37, 0
      %p235 = por %p233, %p234
      %p236 = scmp.ne.s32.totalorder %s222, %s223
      %p237 = scmp.eq.s32.totalorder %s38, 8
      %p238 = por %p236, %p237
      %p240 = scmp.ne.s32.totalorder %s223, %s239
      %p241 = scmp.eq.s32.totalorder %s38, 0
      %p242 = por %p240, %p241
      %p243 = scmp.le.s32.totalorder 1, %s32
      %p244 = scmp.lt.s32.totalorder %s32, 10
      %p245 = pnand %p243, %p244
      %p246 = pneg %p245
      // Predicated region
      $region9: #{encoder_gin_forward.3} parent=5 // pred_check
        _
      $region10: #{encoder_gin_forward.3} parent=5 // pred_check_branch
        %248 = sbr.rel (%p245) target = $region12
      $region11: #{encoder_gin_forward.3} parent=5 // pred_region
        %s249 = ssub.s32 %s32, 1
        // Predicated region
        $region13: #{encoder_gin_forward.3} parent=11 // pred_check
          %p250 = pneg %p99
        $region14: #{encoder_gin_forward.3} parent=11 // pred_check_branch
          %252 = sbr.rel (%p250) target = $region16
        $region15: #{encoder_gin_forward.3} parent=11 // pred_region
          %s254 = ssub.s32 3072, 3072
          %255 = vsyncadd [#allocation9], %s254
          %s256 = sshll.u32 [#allocation8], 4
          %s257 = int_to_ptr.vmem [resolvable:$true] %s256
          %262 = dma.hbm_to_vmem [thread:$0]  %s3, 3072, %s257, [#allocation9], 64, 64, 4
        $region16: #{encoder_gin_forward.3} parent=11 // pred_fallthru
          _
        // Predicated region
        $region17: #{encoder_gin_forward.3} parent=11 // pred_check
          %p263 = pneg %p120
        $region18: #{encoder_gin_forward.3} parent=11 // pred_check_branch
          %265 = sbr.rel (%p263) target = $region20
        $region19: #{encoder_gin_forward.3} parent=11 // pred_region
          %s267 = ssub.s32 1024, 1024
          %268 = vsyncadd [#allocation9], %s267
          %s269 = sshll.u32 [#allocation10], 4
          %s270 = int_to_ptr.vmem [resolvable:$true] %s269
          %275 = dma.hbm_to_vmem [thread:$0]  %s4, 1024, %s270, [#allocation9], 64, 64, 4
        $region20: #{encoder_gin_forward.3} parent=11 // pred_fallthru
          _
        // Predicated region
        $region21: #{encoder_gin_forward.3} parent=11 // pred_check
          %p276 = pneg %p141
        $region22: #{encoder_gin_forward.3} parent=11 // pred_check_branch
          %278 = sbr.rel (%p276) target = $region24
        $region23: #{encoder_gin_forward.3} parent=11 // pred_region
          %s280 = ssub.s32 16, 16
          %281 = vsyncadd [#allocation12], %s280
          %s283 = sshll.u32 [#allocation11], 4
          %s284 = int_to_ptr.vmem [resolvable:$true] %s283
          %286 = dma.hbm_to_vmem [thread:$0]  %s5, 16, %s284, [#allocation12]
        $region24: #{encoder_gin_forward.3} parent=11 // pred_fallthru
          _
        // Predicated region
        $region25: #{encoder_gin_forward.3} parent=11 // pred_check
          %p287 = pneg %p162
        $region26: #{encoder_gin_forward.3} parent=11 // pred_check_branch
          %289 = sbr.rel (%p287) target = $region28
        $region27: #{encoder_gin_forward.3} parent=11 // pred_region
          %s291 = ssub.s32 1024, 1024
          %292 = vsyncadd [#allocation12], %s291
          %s293 = sshll.u32 [#allocation13], 4
          %s294 = int_to_ptr.vmem [resolvable:$true] %s293
          %299 = dma.hbm_to_vmem [thread:$0]  %s6, 1024, %s294, [#allocation12], 64, 64, 4
        $region28: #{encoder_gin_forward.3} parent=11 // pred_fallthru
          _
        // Predicated region
        $region29: #{encoder_gin_forward.3} parent=11 // pred_check
          %p300 = pneg %p183
        $region30: #{encoder_gin_forward.3} parent=11 // pred_check_branch
          %302 = sbr.rel (%p300) target = $region32
        $region31: #{encoder_gin_forward.3} parent=11 // pred_region
          %s304 = ssub.s32 16, 16
          %305 = vsyncadd [#allocation15], %s304
          %s307 = sshll.u32 [#allocation14], 4
          %s308 = int_to_ptr.vmem [resolvable:$true] %s307
          %310 = dma.hbm_to_vmem [thread:$0]  %s7, 16, %s308, [#allocation15]
        $region32: #{encoder_gin_forward.3} parent=11 // pred_fallthru
          _
      $region12: #{encoder_gin_forward.3} parent=5 // pred_fallthru
        _
      %p311 = scmp.lt.s32.totalorder %s32, 9
      // Predicated region
      $region33: #{encoder_gin_forward.3} parent=5 // pred_check
        %p312 = pneg %p311
      $region34: #{encoder_gin_forward.3} parent=5 // pred_check_branch
        %314 = sbr.rel (%p312) target = $region36
      $region35: #{encoder_gin_forward.3} parent=5 // pred_region
        // Predicated region
        $region37: #{encoder_gin_forward.3} parent=35 // pred_check
          %p315 = pneg %p72
        $region38: #{encoder_gin_forward.3} parent=35 // pred_check_branch
          %317 = sbr.rel (%p315) target = $region40
        $region39: #{encoder_gin_forward.3} parent=35 // pred_region
          %s318 = sand.u32 %s62, 1
          %s319 = scalar_lea.sflag [#allocation7], %s318
          %s320 = sand.u32 %s62, 1
          %s321 = smul.addr %s320, 64
          %s322 = scalar_lea.vmem [#allocation6], %s321
          %s323 = smul.u32 %s39, 3
          %s324 = sadd.s32 %s323, %s40
          %s325 = sld [smem:[#allocation4 + %s324]]
          %s326 = smul.u32 16, %s39
          %s328 = ssub.s32 1024, 1024
          %329 = vsyncadd %s319, %s328
          %s330 = smul.addr %s326, 3
          %s331 = sadd.s32 %s325, %s330
          %s332 = smul.addr %s331, 64
          %s333 = scalar_lea.hbm %s2, %s332
          %s334 = sshll.u32 %s322, 4
          %s335 = int_to_ptr.vmem [resolvable:$true] %s334
          %340 = dma.hbm_to_vmem [thread:$0]  %s333, 1024, %s335, %s319, 192, 64, 4
        $region40: #{encoder_gin_forward.3} parent=35 // pred_fallthru
          _
      $region36: #{encoder_gin_forward.3} parent=5 // pred_fallthru
        _
      %p341 = scmp.le.s32.totalorder 1, %s32
      %p342 = scmp.lt.s32.totalorder %s32, 10
      %p343 = pnand %p341, %p342
      %p344 = pneg %p343
      // Predicated region
      $region41: #{encoder_gin_forward.3} parent=5 // pred_check
        _
      $region42: #{encoder_gin_forward.3} parent=5 // pred_check_branch
        %346 = sbr.rel (%p343) target = $region44
      $region43: #{encoder_gin_forward.3} parent=5 // pred_region
        %s347 = ssub.s32 %s32, 1
        %s348 = sand.u32 %s65, 1
        %s349 = scalar_lea.sflag [#allocation7], %s348
        %s350 = sand.u32 %s65, 1
        %s351 = smul.addr %s350, 64
        %s352 = scalar_lea.vmem [#allocation6], %s351
        // Predicated region
        $region45: #{encoder_gin_forward.3} parent=43 // pred_check
          %p353 = pneg %p78
        $region46: #{encoder_gin_forward.3} parent=43 // pred_check_branch
          %355 = sbr.rel (%p353) target = $region48
        $region47: #{encoder_gin_forward.3} parent=43 // pred_region
          %356 = dma.done %s349, 1024
        $region48: #{encoder_gin_forward.3} parent=43 // pred_fallthru
          _
        // Predicated region
        $region49: #{encoder_gin_forward.3} parent=43 // pred_check
          %p357 = pneg %p99
        $region50: #{encoder_gin_forward.3} parent=43 // pred_check_branch
          %359 = sbr.rel (%p357) target = $region52
        $region51: #{encoder_gin_forward.3} parent=43 // pred_region
          %360 = dma.done [#allocation9], 3072
        $region52: #{encoder_gin_forward.3} parent=43 // pred_fallthru
          _
        // Predicated region
        $region53: #{encoder_gin_forward.3} parent=43 // pred_check
          %p361 = pneg %p120
        $region54: #{encoder_gin_forward.3} parent=43 // pred_check_branch
          %363 = sbr.rel (%p361) target = $region56
        $region55: #{encoder_gin_forward.3} parent=43 // pred_region
          %364 = dma.done [#allocation9], 1024
        $region56: #{encoder_gin_forward.3} parent=43 // pred_fallthru
          _
        // Predicated region
        $region57: #{encoder_gin_forward.3} parent=43 // pred_check
          %p365 = pneg %p141
        $region58: #{encoder_gin_forward.3} parent=43 // pred_check_branch
          %367 = sbr.rel (%p365) target = $region60
        $region59: #{encoder_gin_forward.3} parent=43 // pred_region
          %368 = dma.done [#allocation12], 16
        $region60: #{encoder_gin_forward.3} parent=43 // pred_fallthru
          _
        // Predicated region
        $region61: #{encoder_gin_forward.3} parent=43 // pred_check
          %p369 = pneg %p162
        $region62: #{encoder_gin_forward.3} parent=43 // pred_check_branch
          %371 = sbr.rel (%p369) target = $region64
        $region63: #{encoder_gin_forward.3} parent=43 // pred_region
          %372 = dma.done [#allocation12], 1024
        $region64: #{encoder_gin_forward.3} parent=43 // pred_fallthru
          _
        // Predicated region
        $region65: #{encoder_gin_forward.3} parent=43 // pred_check
          %p373 = pneg %p183
        $region66: #{encoder_gin_forward.3} parent=43 // pred_check_branch
          %375 = sbr.rel (%p373) target = $region68
        $region67: #{encoder_gin_forward.3} parent=43 // pred_region
          %376 = dma.done [#allocation15], 16
        $region68: #{encoder_gin_forward.3} parent=43 // pred_fallthru
          _
        %s377 = sand.u32 %s65, 1
        %s378 = scalar_lea.sflag [#allocation7], %s377
        %s379 = sand.u32 %s65, 1
        %s380 = smul.addr %s379, 64
        %s381 = scalar_lea.vmem [#allocation6], %s380
        %p382 = pneg %p78
        %p383 = pneg %p75
        %p384 = pneg %p99
        %p385 = pneg %p96
        %p386 = pneg %p120
        %p387 = pneg %p117
        %p388 = pneg %p141
        %p389 = pneg %p138
        %p390 = pneg %p162
        %p391 = pneg %p159
        %p392 = pneg %p183
        %p393 = pneg %p180
        %p394 = pneg %p209
        %p395 = pneg %p206
        %s396 = smul.u32 16, %s41
        %p397 = scmp.lt.s32.totalorder %s396, 47
        %s398 = scalar_select %p397, %s396, 47
        %s399 = smul.addr %s398, 8
        %s400 = scalar_lea.vmem %s8, %s399
        %p401 = pneg %p235
        %p402 = pneg %p232
        %s403 = smul.u32 16, %s41
        %p404 = scmp.lt.s32.totalorder %s403, 47
        %s405 = scalar_select %p404, %s403, 47
        %s406 = smul.addr %s405, 4
        %s407 = scalar_lea.vmem %s9, %s406
        %s408 = smul.u32 %s41, 3
        %s409 = sadd.s32 %s408, %s42
        %s410 = sld [smem:[#allocation4 + %s409]]
        %s411 = smul.u32 16, %s41
        %s412 = smul.u32 16, %s41
        %p413 = scmp.lt.s32.totalorder %s412, 47
        %s414 = scalar_select %p413, %s412, 47
        %s415 = smul.addr %s414, 8
        %s416 = scalar_lea.vmem %s8, %s415
        %s417 = smul.u32 16, %s41
        %s418 = smul.u32 16, %s41
        %p419 = scmp.lt.s32.totalorder %s418, 47
        %s420 = scalar_select %p419, %s418, 47
        %s421 = smul.addr %s420, 4
        %s422 = scalar_lea.vmem %s9, %s421
        %s423 = smul.u32 16, %s41
        %p425 = scmp.eq.s32.totalorder %s42, 0
        // Predicated region
        $region69: #{encoder_gin_forward.3} parent=43 // pred_check
          %p426 = pneg %p425
        $region70: #{encoder_gin_forward.3} parent=43 // pred_check_branch
          %428 = sbr.rel (%p426) target = $region72
        $region71: #{encoder_gin_forward.3} parent=43 // pred_region
          %429 = vst [vmem:[#allocation2] sm:$0xff] 0.0
          %430 = vst [vmem:[#allocation2 + $0x8] sm:$0xff] 0.0
          %431 = vst [vmem:[#allocation2 + $0x10] sm:$0xff] 0.0
          %432 = vst [vmem:[#allocation2 + $0x18] sm:$0xff] 0.0
          %433 = vst [vmem:[#allocation2 + $0x20] sm:$0xff] 0.0
          %434 = vst [vmem:[#allocation2 + $0x28] sm:$0xff] 0.0
          %435 = vst [vmem:[#allocation2 + $0x30] sm:$0xff] 0.0
          %436 = vst [vmem:[#allocation2 + $0x38] sm:$0xff] 0.0
          %437 = vst [vmem:[#allocation2 + $0x40] sm:$0xff] 0.0
          %438 = vst [vmem:[#allocation2 + $0x48] sm:$0xff] 0.0
          %439 = vst [vmem:[#allocation2 + $0x50] sm:$0xff] 0.0
          %440 = vst [vmem:[#allocation2 + $0x58] sm:$0xff] 0.0
          %441 = vst [vmem:[#allocation2 + $0x60] sm:$0xff] 0.0
          %442 = vst [vmem:[#allocation2 + $0x68] sm:$0xff] 0.0
          %443 = vst [vmem:[#allocation2 + $0x70] sm:$0xff] 0.0
          %444 = vst [vmem:[#allocation2 + $0x78] sm:$0xff] 0.0
        $region72: #{encoder_gin_forward.3} parent=43 // pred_fallthru
          _
        %s445 = sld [smem:[#allocation5 + %s41]]
        %p446 = scmp.lt.s32.totalorder %s42, %s445
        // Predicated region
        $region73: #{encoder_gin_forward.3} parent=43 // pred_check
          %p447 = pneg %p446
        $region74: #{encoder_gin_forward.3} parent=43 // pred_check_branch
          %449 = sbr.rel (%p447) target = $region76
        $region75: #{encoder_gin_forward.3} parent=43 // pred_region
          %s450 = smul.u32 %s41, 3
          %s451 = sadd.s32 %s450, %s42
          %s452 = sld [smem:[#allocation4 + %s451]]
          %v453 = vld [vmem:[#allocation2] sm:$0xff]
          %v454 = vld [vmem:[#allocation2 + $0x8] sm:$0xff]
          %v455 = vld [vmem:[#allocation2 + $0x10] sm:$0xff]
          %v456 = vld [vmem:[#allocation2 + $0x18] sm:$0xff]
          %v457 = vld [vmem:[#allocation2 + $0x20] sm:$0xff]
          %v458 = vld [vmem:[#allocation2 + $0x28] sm:$0xff]
          %v459 = vld [vmem:[#allocation2 + $0x30] sm:$0xff]
          %v460 = vld [vmem:[#allocation2 + $0x38] sm:$0xff]
          %v461 = vld [vmem:[#allocation2 + $0x40] sm:$0xff]
          %v462 = vld [vmem:[#allocation2 + $0x48] sm:$0xff]
          %v463 = vld [vmem:[#allocation2 + $0x50] sm:$0xff]
          %v464 = vld [vmem:[#allocation2 + $0x58] sm:$0xff]
          %v465 = vld [vmem:[#allocation2 + $0x60] sm:$0xff]
          %v466 = vld [vmem:[#allocation2 + $0x68] sm:$0xff]
          %v467 = vld [vmem:[#allocation2 + $0x70] sm:$0xff]
          %v468 = vld [vmem:[#allocation2 + $0x78] sm:$0xff]
          %v469 = vld [vmem:[%s352] sm:$0xf]
          %v470 = vld [vmem:[%s352 + $0x4] sm:$0xf]
          %v471 = vld [vmem:[%s352 + $0x8] sm:$0xf]
          %v472 = vld [vmem:[%s352 + $0xc] sm:$0xf]
          %v473 = vld [vmem:[%s352 + $0x10] sm:$0xf]
          %v474 = vld [vmem:[%s352 + $0x14] sm:$0xf]
          %v475 = vld [vmem:[%s352 + $0x18] sm:$0xf]
          %v476 = vld [vmem:[%s352 + $0x1c] sm:$0xf]
          %v477 = vld [vmem:[%s352 + $0x20] sm:$0xf]
          %v478 = vld [vmem:[%s352 + $0x24] sm:$0xf]
          %v479 = vld [vmem:[%s352 + $0x28] sm:$0xf]
          %v480 = vld [vmem:[%s352 + $0x2c] sm:$0xf]
          %v481 = vld [vmem:[%s352 + $0x30] sm:$0xf]
          %v482 = vld [vmem:[%s352 + $0x34] sm:$0xf]
          %v483 = vld [vmem:[%s352 + $0x38] sm:$0xf]
          %v484 = vld [vmem:[%s352 + $0x3c] sm:$0xf]
          %s485 = smul.u32 %s452, 16
          %s486 = smul.addr %s485, 4
          %s487 = scalar_lea.vmem [#allocation8], %s486
          %v488 = vld [vmem:[%s487] sm:$0xf]
          %v489 = vld [vmem:[%s487 + $0x4] sm:$0xf]
          %v490 = vld [vmem:[%s487 + $0x8] sm:$0xf]
          %v491 = vld [vmem:[%s487 + $0xc] sm:$0xf]
          %v492 = vld [vmem:[%s487 + $0x10] sm:$0xf]
          %v493 = vld [vmem:[%s487 + $0x14] sm:$0xf]
          %v494 = vld [vmem:[%s487 + $0x18] sm:$0xf]
          %v495 = vld [vmem:[%s487 + $0x1c] sm:$0xf]
          %v496 = vld [vmem:[%s487 + $0x20] sm:$0xf]
          %v497 = vld [vmem:[%s487 + $0x24] sm:$0xf]
          %v498 = vld [vmem:[%s487 + $0x28] sm:$0xf]
          %v499 = vld [vmem:[%s487 + $0x2c] sm:$0xf]
          %v500 = vld [vmem:[%s487 + $0x30] sm:$0xf]
          %v501 = vld [vmem:[%s487 + $0x34] sm:$0xf]
          %v502 = vld [vmem:[%s487 + $0x38] sm:$0xf]
          %v503 = vld [vmem:[%s487 + $0x3c] sm:$0xf]
          %v520 = vunpack.c.l.b16 %v469
          %v521 = vunpack.c.l.b16 %v470
          %v522 = vunpack.c.l.b16 %v471
          %v523 = vunpack.c.l.b16 %v472
          %v524 = vunpack.c.l.b16 %v473
          %v525 = vunpack.c.l.b16 %v474
          %v526 = vunpack.c.l.b16 %v475
          %v527 = vunpack.c.l.b16 %v476
          %v528 = vunpack.c.l.b16 %v477
          %v529 = vunpack.c.l.b16 %v478
          %v530 = vunpack.c.l.b16 %v479
          %v531 = vunpack.c.l.b16 %v480
          %v532 = vunpack.c.l.b16 %v481
          %v533 = vunpack.c.l.b16 %v482
          %v534 = vunpack.c.l.b16 %v483
          %v535 = vunpack.c.l.b16 %v484
          %v536 = vpack.c.b16 %v521, %v520
          %v537 = vpack.c.b16 %v523, %v522
          %v538 = vpack.c.b16 %v525, %v524
          %v539 = vpack.c.b16 %v527, %v526
          %v540 = vpack.c.b16 %v529, %v528
          %v541 = vpack.c.b16 %v531, %v530
          %v542 = vpack.c.b16 %v533, %v532
          %v543 = vpack.c.b16 %v535, %v534
          %v568 = vunpack.c.l.b16 %v488
          %v569 = vunpack.c.l.b16 %v489
          %v570 = vunpack.c.l.b16 %v490
          %v571 = vunpack.c.l.b16 %v491
          %v572 = vunpack.c.l.b16 %v492
          %v573 = vunpack.c.l.b16 %v493
          %v574 = vunpack.c.l.b16 %v494
          %v575 = vunpack.c.l.b16 %v495
          %v576 = vunpack.c.l.b16 %v496
          %v577 = vunpack.c.l.b16 %v497
          %v578 = vunpack.c.l.b16 %v498
          %v579 = vunpack.c.l.b16 %v499
          %v580 = vunpack.c.l.b16 %v500
          %v581 = vunpack.c.l.b16 %v501
          %v582 = vunpack.c.l.b16 %v502
          %v583 = vunpack.c.l.b16 %v503
          %v584 = vpack.c.b16 %v569, %v568
          %v585 = vpack.c.b16 %v571, %v570
          %v586 = vpack.c.b16 %v573, %v572
          %v587 = vpack.c.b16 %v575, %v574
          %v588 = vpack.c.b16 %v577, %v576
          %v589 = vpack.c.b16 %v579, %v578
          %v590 = vpack.c.b16 %v581, %v580
          %v591 = vpack.c.b16 %v583, %v582
          %600 = vmatprep.subr.bf16.mxu0 0
          %601 = vmatpush1.bf16.msra.mxu0 %v584
          %602 = vmatprep.subr.bf16.mxu0 0
          %603 = vmatpush1.bf16.msra.mxu0 %v585
          %604 = vmatprep.subr.bf16.mxu0 0
          %605 = vmatpush1.bf16.msra.mxu0 %v586
          %606 = vmatprep.subr.bf16.mxu0 0
          %607 = vmatpush1.bf16.msra.mxu0 %v587
          %608 = vmatprep.subr.bf16.mxu0 0
          %609 = vmatpush1.bf16.msra.mxu0 %v588
          %610 = vmatprep.subr.bf16.mxu0 0
          %611 = vmatpush1.bf16.msra.mxu0 %v589
          %612 = vmatprep.subr.bf16.mxu0 0
          %613 = vmatpush1.bf16.msra.mxu0 %v590
          %614 = vmatprep.subr.bf16.mxu0 0
          %615 = vmatpush1.bf16.msra.mxu0 %v591
          %616 = vmatprep.subr.bf16.mxu0 0
          %617 = vmatpush1.bf16.msra.mxu0 0
          %618 = vmatprep.subr.bf16.mxu0 0
          %619 = vmatpush1.bf16.msra.mxu0 0
          %620 = vmatprep.subr.bf16.mxu0 0
          %621 = vmatpush1.bf16.msra.mxu0 0
          %622 = vmatprep.subr.bf16.mxu0 0
          %623 = vmatpush1.bf16.msra.mxu0 0
          %624 = vmatprep.subr.bf16.mxu0 0
          %625 = vmatpush1.bf16.msra.mxu0 0
          %626 = vmatprep.subr.bf16.mxu0 0
          %627 = vmatpush1.bf16.msra.mxu0 0
          %628 = vmatprep.subr.bf16.mxu0 0
          %629 = vmatpush1.bf16.msra.mxu0 0
          %630 = vmatprep.subr.bf16.mxu0 0
          %631 = vmatpush1.bf16.msra.mxu0 0
          %632 = vmatprep.mubr.bf16.mxu0 0
          %633 = vmatmul.mubr.bf16.gmra.mrb[0].mxu0 %v536
          %v634 = vpop.f32.mrb[0].mxu0
          %v635 = vadd.f32 0.0, %v634
          %v636 = vpop.f32.mrb[0].mxu0
          %v637 = vpop.f32.mrb[0].mxu0
          %v638 = vadd.f32 0.0, %v637
          %v639 = vpop.f32.mrb[0].mxu0
          %640 = vmatprep.mubr.bf16.mxu0 0
          %641 = vmatmul.mubr.bf16.gmra.mrb[0].mxu0 %v537
          %v642 = vpop.f32.mrb[0].mxu0
          %v643 = vadd.f32 0.0, %v642
          %v644 = vpop.f32.mrb[0].mxu0
          %v645 = vpop.f32.mrb[0].mxu0
          %v646 = vadd.f32 0.0, %v645
          %v647 = vpop.f32.mrb[0].mxu0
          %648 = vmatprep.mubr.bf16.mxu0 0
          %649 = vmatmul.mubr.bf16.gmra.mrb[0].mxu0 %v538
          %v650 = vpop.f32.mrb[0].mxu0
          %v651 = vadd.f32 0.0, %v650
          %v652 = vpop.f32.mrb[0].mxu0
          %v653 = vpop.f32.mrb[0].mxu0
          %v654 = vadd.f32 0.0, %v653
          %v655 = vpop.f32.mrb[0].mxu0
          %656 = vmatprep.mubr.bf16.mxu0 0
          %657 = vmatmul.mubr.bf16.gmra.mrb[0].mxu0 %v539
          %v658 = vpop.f32.mrb[0].mxu0
          %v659 = vadd.f32 0.0, %v658
          %v660 = vpop.f32.mrb[0].mxu0
          %v661 = vpop.f32.mrb[0].mxu0
          %v662 = vadd.f32 0.0, %v661
          %v663 = vpop.f32.mrb[0].mxu0
          %664 = vmatprep.mubr.bf16.mxu0 0
          %665 = vmatmul.mubr.bf16.gmra.mrb[0].mxu0 %v540
          %v666 = vpop.f32.mrb[0].mxu0
          %v667 = vadd.f32 0.0, %v666
          %v668 = vpop.f32.mrb[0].mxu0
          %v669 = vpop.f32.mrb[0].mxu0
          %v670 = vadd.f32 0.0, %v669
          %v671 = vpop.f32.mrb[0].mxu0
          %672 = vmatprep.mubr.bf16.mxu0 0
          %673 = vmatmul.mubr.bf16.gmra.mrb[0].mxu0 %v541
          %v674 = vpop.f32.mrb[0].mxu0
          %v675 = vadd.f32 0.0, %v674
          %v676 = vpop.f32.mrb[0].mxu0
          %v677 = vpop.f32.mrb[0].mxu0
          %v678 = vadd.f32 0.0, %v677
          %v679 = vpop.f32.mrb[0].mxu0
          %680 = vmatprep.mubr.bf16.mxu0 0
          %681 = vmatmul.mubr.bf16.gmra.mrb[0].mxu0 %v542
          %v682 = vpop.f32.mrb[0].mxu0
          %v683 = vadd.f32 0.0, %v682
          %v684 = vpop.f32.mrb[0].mxu0
          %v685 = vpop.f32.mrb[0].mxu0
          %v686 = vadd.f32 0.0, %v685
          %v687 = vpop.f32.mrb[0].mxu0
          %688 = vmatprep.mubr.bf16.mxu0 0
          %689 = vmatmul.mubr.bf16.gmra.mrb[0].mxu0 %v543
          %v690 = vpop.f32.mrb[0].mxu0
          %v691 = vadd.f32 0.0, %v690
          %v692 = vpop.f32.mrb[0].mxu0
          %v693 = vpop.f32.mrb[0].mxu0
          %v694 = vadd.f32 0.0, %v693
          %v695 = vpop.f32.mrb[0].mxu0
          %696 = vdwg.mxu0
          %v697 = vadd.f32 %v453, %v635
          %v698 = vadd.f32 %v454, %v638
          %v699 = vadd.f32 %v455, %v643
          %v700 = vadd.f32 %v456, %v646
          %v701 = vadd.f32 %v457, %v651
          %v702 = vadd.f32 %v458, %v654
          %v703 = vadd.f32 %v459, %v659
          %v704 = vadd.f32 %v460, %v662
          %v705 = vadd.f32 %v461, %v667
          %v706 = vadd.f32 %v462, %v670
          %v707 = vadd.f32 %v463, %v675
          %v708 = vadd.f32 %v464, %v678
          %v709 = vadd.f32 %v465, %v683
          %v710 = vadd.f32 %v466, %v686
          %v711 = vadd.f32 %v467, %v691
          %v712 = vadd.f32 %v468, %v694
          %713 = vst [vmem:[#allocation2] sm:$0xff] %v697
          %714 = vst [vmem:[#allocation2 + $0x8] sm:$0xff] %v698
          %715 = vst [vmem:[#allocation2 + $0x10] sm:$0xff] %v699
          %716 = vst [vmem:[#allocation2 + $0x18] sm:$0xff] %v700
          %717 = vst [vmem:[#allocation2 + $0x20] sm:$0xff] %v701
          %718 = vst [vmem:[#allocation2 + $0x28] sm:$0xff] %v702
          %719 = vst [vmem:[#allocation2 + $0x30] sm:$0xff] %v703
          %720 = vst [vmem:[#allocation2 + $0x38] sm:$0xff] %v704
          %721 = vst [vmem:[#allocation2 + $0x40] sm:$0xff] %v705
          %722 = vst [vmem:[#allocation2 + $0x48] sm:$0xff] %v706
          %723 = vst [vmem:[#allocation2 + $0x50] sm:$0xff] %v707
          %724 = vst [vmem:[#allocation2 + $0x58] sm:$0xff] %v708
          %725 = vst [vmem:[#allocation2 + $0x60] sm:$0xff] %v709
          %726 = vst [vmem:[#allocation2 + $0x68] sm:$0xff] %v710
          %727 = vst [vmem:[#allocation2 + $0x70] sm:$0xff] %v711
          %728 = vst [vmem:[#allocation2 + $0x78] sm:$0xff] %v712
        $region76: #{encoder_gin_forward.3} parent=43 // pred_fallthru
          _
        %p729 = scmp.eq.s32.totalorder %s42, 2
        // Predicated region
        $region77: #{encoder_gin_forward.3} parent=43 // pred_check
          %p730 = pneg %p729
        $region78: #{encoder_gin_forward.3} parent=43 // pred_check_branch
          %732 = sbr.rel (%p730) target = $region80
        $region79: #{encoder_gin_forward.3} parent=43 // pred_region
          %v733 = vld [vmem:[#allocation2] sm:$0xff]
          %v734 = vld [vmem:[#allocation2 + $0x8] sm:$0xff]
          %v735 = vld [vmem:[#allocation2 + $0x10] sm:$0xff]
          %v736 = vld [vmem:[#allocation2 + $0x18] sm:$0xff]
          %v737 = vld [vmem:[#allocation2 + $0x20] sm:$0xff]
          %v738 = vld [vmem:[#allocation2 + $0x28] sm:$0xff]
          %v739 = vld [vmem:[#allocation2 + $0x30] sm:$0xff]
          %v740 = vld [vmem:[#allocation2 + $0x38] sm:$0xff]
          %v741 = vld [vmem:[#allocation2 + $0x40] sm:$0xff]
          %v742 = vld [vmem:[#allocation2 + $0x48] sm:$0xff]
          %v743 = vld [vmem:[#allocation2 + $0x50] sm:$0xff]
          %v744 = vld [vmem:[#allocation2 + $0x58] sm:$0xff]
          %v745 = vld [vmem:[#allocation2 + $0x60] sm:$0xff]
          %v746 = vld [vmem:[#allocation2 + $0x68] sm:$0xff]
          %v747 = vld [vmem:[#allocation2 + $0x70] sm:$0xff]
          %v748 = vld [vmem:[#allocation2 + $0x78] sm:$0xff]
          %v749 = vpack.c.bf16 %v734, %v733
          %v750 = vpack.c.bf16 %v736, %v735
          %v751 = vpack.c.bf16 %v738, %v737
          %v752 = vpack.c.bf16 %v740, %v739
          %v753 = vpack.c.bf16 %v742, %v741
          %v754 = vpack.c.bf16 %v744, %v743
          %v755 = vpack.c.bf16 %v746, %v745
          %v756 = vpack.c.bf16 %v748, %v747
          %v757 = vld [vmem:[#allocation10] sm:$0xf]
          %v758 = vld [vmem:[#allocation10 + $0x4] sm:$0xf]
          %v759 = vld [vmem:[#allocation10 + $0x8] sm:$0xf]
          %v760 = vld [vmem:[#allocation10 + $0xc] sm:$0xf]
          %v761 = vld [vmem:[#allocation10 + $0x10] sm:$0xf]
          %v762 = vld [vmem:[#allocation10 + $0x14] sm:$0xf]
          %v763 = vld [vmem:[#allocation10 + $0x18] sm:$0xf]
          %v764 = vld [vmem:[#allocation10 + $0x1c] sm:$0xf]
          %v765 = vld [vmem:[#allocation10 + $0x20] sm:$0xf]
          %v766 = vld [vmem:[#allocation10 + $0x24] sm:$0xf]
          %v767 = vld [vmem:[#allocation10 + $0x28] sm:$0xf]
          %v768 = vld [vmem:[#allocation10 + $0x2c] sm:$0xf]
          %v769 = vld [vmem:[#allocation10 + $0x30] sm:$0xf]
          %v770 = vld [vmem:[#allocation10 + $0x34] sm:$0xf]
          %v771 = vld [vmem:[#allocation10 + $0x38] sm:$0xf]
          %v772 = vld [vmem:[#allocation10 + $0x3c] sm:$0xf]
          %v773 = vld [vmem:[#allocation11] sm:$0x1]
          %v775 = vlaneseq
          %v776 = vshrl.u32 %v775, 7
          %v777 = vsub.s32 0, %v776
          %v778 = vrot.slane %v773, %v777
          %v796 = vunpack.c.l.b16 %v757
          %v797 = vunpack.c.l.b16 %v758
          %v798 = vunpack.c.l.b16 %v759
          %v799 = vunpack.c.l.b16 %v760
          %v800 = vunpack.c.l.b16 %v761
          %v801 = vunpack.c.l.b16 %v762
          %v802 = vunpack.c.l.b16 %v763
          %v803 = vunpack.c.l.b16 %v764
          %v804 = vunpack.c.l.b16 %v765
          %v805 = vunpack.c.l.b16 %v766
          %v806 = vunpack.c.l.b16 %v767
          %v807 = vunpack.c.l.b16 %v768
          %v808 = vunpack.c.l.b16 %v769
          %v809 = vunpack.c.l.b16 %v770
          %v810 = vunpack.c.l.b16 %v771
          %v811 = vunpack.c.l.b16 %v772
          %v812 = vpack.c.b16 %v797, %v796
          %v813 = vpack.c.b16 %v799, %v798
          %v814 = vpack.c.b16 %v801, %v800
          %v815 = vpack.c.b16 %v803, %v802
          %v816 = vpack.c.b16 %v805, %v804
          %v817 = vpack.c.b16 %v807, %v806
          %v818 = vpack.c.b16 %v809, %v808
          %v819 = vpack.c.b16 %v811, %v810
          %828 = vmatprep.subr.bf16.mxu0 0
          %829 = vmatpush1.bf16.msra.mxu0 %v812
          %830 = vmatprep.subr.bf16.mxu0 0
          %831 = vmatpush1.bf16.msra.mxu0 %v813
          %832 = vmatprep.subr.bf16.mxu0 0
          %833 = vmatpush1.bf16.msra.mxu0 %v814
          %834 = vmatprep.subr.bf16.mxu0 0
          %835 = vmatpush1.bf16.msra.mxu0 %v815
          %836 = vmatprep.subr.bf16.mxu0 0
          %837 = vmatpush1.bf16.msra.mxu0 %v816
          %838 = vmatprep.subr.bf16.mxu0 0
          %839 = vmatpush1.bf16.msra.mxu0 %v817
          %840 = vmatprep.subr.bf16.mxu0 0
          %841 = vmatpush1.bf16.msra.mxu0 %v818
          %842 = vmatprep.subr.bf16.mxu0 0
          %843 = vmatpush1.bf16.msra.mxu0 %v819
          %844 = vmatprep.subr.bf16.mxu0 0
          %845 = vmatpush1.bf16.msra.mxu0 0
          %846 = vmatprep.subr.bf16.mxu0 0
          %847 = vmatpush1.bf16.msra.mxu0 0
          %848 = vmatprep.subr.bf16.mxu0 0
          %849 = vmatpush1.bf16.msra.mxu0 0
          %850 = vmatprep.subr.bf16.mxu0 0
          %851 = vmatpush1.bf16.msra.mxu0 0
          %852 = vmatprep.subr.bf16.mxu0 0
          %853 = vmatpush1.bf16.msra.mxu0 0
          %854 = vmatprep.subr.bf16.mxu0 0
          %855 = vmatpush1.bf16.msra.mxu0 0
          %856 = vmatprep.subr.bf16.mxu0 0
          %857 = vmatpush1.bf16.msra.mxu0 0
          %858 = vmatprep.subr.bf16.mxu0 0
          %859 = vmatpush1.bf16.msra.mxu0 0
          %860 = vmatprep.mubr.bf16.mxu0 0
          %861 = vmatmul.mubr.bf16.gmra.mrb[0].mxu0 %v749
          %v862 = vpop.f32.mrb[0].mxu0
          %v863 = vadd.f32 %v778, %v862
          %v864 = vpop.f32.mrb[0].mxu0
          %v865 = vpop.f32.mrb[0].mxu0
          %v866 = vadd.f32 %v778, %v865
          %v867 = vpop.f32.mrb[0].mxu0
          %868 = vmatprep.mubr.bf16.mxu0 0
          %869 = vmatmul.mubr.bf16.gmra.mrb[0].mxu0 %v750
          %v870 = vpop.f32.mrb[0].mxu0
          %v871 = vadd.f32 %v778, %v870
          %v872 = vpop.f32.mrb[0].mxu0
          %v873 = vpop.f32.mrb[0].mxu0
          %v874 = vadd.f32 %v778, %v873
          %v875 = vpop.f32.mrb[0].mxu0
          %876 = vmatprep.mubr.bf16.mxu0 0
          %877 = vmatmul.mubr.bf16.gmra.mrb[0].mxu0 %v751
          %v878 = vpop.f32.mrb[0].mxu0
          %v879 = vadd.f32 %v778, %v878
          %v880 = vpop.f32.mrb[0].mxu0
          %v881 = vpop.f32.mrb[0].mxu0
          %v882 = vadd.f32 %v778, %v881
          %v883 = vpop.f32.mrb[0].mxu0
          %884 = vmatprep.mubr.bf16.mxu0 0
          %885 = vmatmul.mubr.bf16.gmra.mrb[0].mxu0 %v752
          %v886 = vpop.f32.mrb[0].mxu0
          %v887 = vadd.f32 %v778, %v886
          %v888 = vpop.f32.mrb[0].mxu0
          %v889 = vpop.f32.mrb[0].mxu0
          %v890 = vadd.f32 %v778, %v889
          %v891 = vpop.f32.mrb[0].mxu0
          %892 = vmatprep.mubr.bf16.mxu0 0
          %893 = vmatmul.mubr.bf16.gmra.mrb[0].mxu0 %v753
          %v894 = vpop.f32.mrb[0].mxu0
          %v895 = vadd.f32 %v778, %v894
          %v896 = vpop.f32.mrb[0].mxu0
          %v897 = vpop.f32.mrb[0].mxu0
          %v898 = vadd.f32 %v778, %v897
          %v899 = vpop.f32.mrb[0].mxu0
          %900 = vmatprep.mubr.bf16.mxu0 0
          %901 = vmatmul.mubr.bf16.gmra.mrb[0].mxu0 %v754
          %v902 = vpop.f32.mrb[0].mxu0
          %v903 = vadd.f32 %v778, %v902
          %v904 = vpop.f32.mrb[0].mxu0
          %v905 = vpop.f32.mrb[0].mxu0
          %v906 = vadd.f32 %v778, %v905
          %v907 = vpop.f32.mrb[0].mxu0
          %908 = vmatprep.mubr.bf16.mxu0 0
          %909 = vmatmul.mubr.bf16.gmra.mrb[0].mxu0 %v755
          %v910 = vpop.f32.mrb[0].mxu0
          %v911 = vadd.f32 %v778, %v910
          %v912 = vpop.f32.mrb[0].mxu0
          %v913 = vpop.f32.mrb[0].mxu0
          %v914 = vadd.f32 %v778, %v913
          %v915 = vpop.f32.mrb[0].mxu0
          %916 = vmatprep.mubr.bf16.mxu0 0
          %917 = vmatmul.mubr.bf16.gmra.mrb[0].mxu0 %v756
          %v918 = vpop.f32.mrb[0].mxu0
          %v919 = vadd.f32 %v778, %v918
          %v920 = vpop.f32.mrb[0].mxu0
          %v921 = vpop.f32.mrb[0].mxu0
          %v922 = vadd.f32 %v778, %v921
          %v923 = vpop.f32.mrb[0].mxu0
          %924 = vdwg.mxu0
          %v925 = vmax.f32 %v863, 0.0
          %v926 = vmax.f32 %v866, 0.0
          %v927 = vmax.f32 %v871, 0.0
          %v928 = vmax.f32 %v874, 0.0
          %v929 = vmax.f32 %v879, 0.0
          %v930 = vmax.f32 %v882, 0.0
          %v931 = vmax.f32 %v887, 0.0
          %v932 = vmax.f32 %v890, 0.0
          %v933 = vmax.f32 %v895, 0.0
          %v934 = vmax.f32 %v898, 0.0
          %v935 = vmax.f32 %v903, 0.0
          %v936 = vmax.f32 %v906, 0.0
          %v937 = vmax.f32 %v911, 0.0
          %v938 = vmax.f32 %v914, 0.0
          %v939 = vmax.f32 %v919, 0.0
          %v940 = vmax.f32 %v922, 0.0
          %v941 = vpack.c.bf16 %v926, %v925
          %v942 = vpack.c.bf16 %v928, %v927
          %v943 = vpack.c.bf16 %v930, %v929
          %v944 = vpack.c.bf16 %v932, %v931
          %v945 = vpack.c.bf16 %v934, %v933
          %v946 = vpack.c.bf16 %v936, %v935
          %v947 = vpack.c.bf16 %v938, %v937
          %v948 = vpack.c.bf16 %v940, %v939
          %v949 = vld [vmem:[#allocation13] sm:$0xf]
          %v950 = vld [vmem:[#allocation13 + $0x4] sm:$0xf]
          %v951 = vld [vmem:[#allocation13 + $0x8] sm:$0xf]
          %v952 = vld [vmem:[#allocation13 + $0xc] sm:$0xf]
          %v953 = vld [vmem:[#allocation13 + $0x10] sm:$0xf]
          %v954 = vld [vmem:[#allocation13 + $0x14] sm:$0xf]
          %v955 = vld [vmem:[#allocation13 + $0x18] sm:$0xf]
          %v956 = vld [vmem:[#allocation13 + $0x1c] sm:$0xf]
          %v957 = vld [vmem:[#allocation13 + $0x20] sm:$0xf]
          %v958 = vld [vmem:[#allocation13 + $0x24] sm:$0xf]
          %v959 = vld [vmem:[#allocation13 + $0x28] sm:$0xf]
          %v960 = vld [vmem:[#allocation13 + $0x2c] sm:$0xf]
          %v961 = vld [vmem:[#allocation13 + $0x30] sm:$0xf]
          %v962 = vld [vmem:[#allocation13 + $0x34] sm:$0xf]
          %v963 = vld [vmem:[#allocation13 + $0x38] sm:$0xf]
          %v964 = vld [vmem:[#allocation13 + $0x3c] sm:$0xf]
          %v965 = vld [vmem:[#allocation14] sm:$0x1]
          %v967 = vlaneseq
          %v968 = vshrl.u32 %v967, 7
          %v969 = vsub.s32 0, %v968
          %v970 = vrot.slane %v965, %v969
          %v988 = vunpack.c.l.b16 %v949
          %v989 = vunpack.c.l.b16 %v950
          %v990 = vunpack.c.l.b16 %v951
          %v991 = vunpack.c.l.b16 %v952
          %v992 = vunpack.c.l.b16 %v953
          %v993 = vunpack.c.l.b16 %v954
          %v994 = vunpack.c.l.b16 %v955
          %v995 = vunpack.c.l.b16 %v956
          %v996 = vunpack.c.l.b16 %v957
          %v997 = vunpack.c.l.b16 %v958
          %v998 = vunpack.c.l.b16 %v959
          %v999 = vunpack.c.l.b16 %v960
          %v1000 = vunpack.c.l.b16 %v961
          %v1001 = vunpack.c.l.b16 %v962
          %v1002 = vunpack.c.l.b16 %v963
          %v1003 = vunpack.c.l.b16 %v964
          %v1004 = vpack.c.b16 %v989, %v988
          %v1005 = vpack.c.b16 %v991, %v990
          %v1006 = vpack.c.b16 %v993, %v992
          %v1007 = vpack.c.b16 %v995, %v994
          %v1008 = vpack.c.b16 %v997, %v996
          %v1009 = vpack.c.b16 %v999, %v998
          %v1010 = vpack.c.b16 %v1001, %v1000
          %v1011 = vpack.c.b16 %v1003, %v1002
          %1020 = vmatprep.subr.bf16.mxu0 0
          %1021 = vmatpush1.bf16.msra.mxu0 %v1004
          %1022 = vmatprep.subr.bf16.mxu0 0
          %1023 = vmatpush1.bf16.msra.mxu0 %v1005
          %1024 = vmatprep.subr.bf16.mxu0 0
          %1025 = vmatpush1.bf16.msra.mxu0 %v1006
          %1026 = vmatprep.subr.bf16.mxu0 0
          %1027 = vmatpush1.bf16.msra.mxu0 %v1007
          %1028 = vmatprep.subr.bf16.mxu0 0
          %1029 = vmatpush1.bf16.msra.mxu0 %v1008
          %1030 = vmatprep.subr.bf16.mxu0 0
          %1031 = vmatpush1.bf16.msra.mxu0 %v1009
          %1032 = vmatprep.subr.bf16.mxu0 0
          %1033 = vmatpush1.bf16.msra.mxu0 %v1010
          %1034 = vmatprep.subr.bf16.mxu0 0
          %1035 = vmatpush1.bf16.msra.mxu0 %v1011
          %1036 = vmatprep.subr.bf16.mxu0 0
          %1037 = vmatpush1.bf16.msra.mxu0 0
          %1038 = vmatprep.subr.bf16.mxu0 0
          %1039 = vmatpush1.bf16.msra.mxu0 0
          %1040 = vmatprep.subr.bf16.mxu0 0
          %1041 = vmatpush1.bf16.msra.mxu0 0
          %1042 = vmatprep.subr.bf16.mxu0 0
          %1043 = vmatpush1.bf16.msra.mxu0 0
          %1044 = vmatprep.subr.bf16.mxu0 0
          %1045 = vmatpush1.bf16.msra.mxu0 0
          %1046 = vmatprep.subr.bf16.mxu0 0
          %1047 = vmatpush1.bf16.msra.mxu0 0
          %1048 = vmatprep.subr.bf16.mxu0 0
          %1049 = vmatpush1.bf16.msra.mxu0 0
          %1050 = vmatprep.subr.bf16.mxu0 0
          %1051 = vmatpush1.bf16.msra.mxu0 0
          %1052 = vmatprep.mubr.bf16.mxu0 0
          %1053 = vmatmul.mubr.bf16.gmra.mrb[0].mxu0 %v941
          %v1054 = vpop.f32.mrb[0].mxu0
          %v1055 = vadd.f32 %v970, %v1054
          %v1056 = vpop.f32.mrb[0].mxu0
          %v1057 = vpop.f32.mrb[0].mxu0
          %v1058 = vadd.f32 %v970, %v1057
          %v1059 = vpop.f32.mrb[0].mxu0
          %1060 = vmatprep.mubr.bf16.mxu0 0
          %1061 = vmatmul.mubr.bf16.gmra.mrb[0].mxu0 %v942
          %v1062 = vpop.f32.mrb[0].mxu0
          %v1063 = vadd.f32 %v970, %v1062
          %v1064 = vpop.f32.mrb[0].mxu0
          %v1065 = vpop.f32.mrb[0].mxu0
          %v1066 = vadd.f32 %v970, %v1065
          %v1067 = vpop.f32.mrb[0].mxu0
          %1068 = vmatprep.mubr.bf16.mxu0 0
          %1069 = vmatmul.mubr.bf16.gmra.mrb[0].mxu0 %v943
          %v1070 = vpop.f32.mrb[0].mxu0
          %v1071 = vadd.f32 %v970, %v1070
          %v1072 = vpop.f32.mrb[0].mxu0
          %v1073 = vpop.f32.mrb[0].mxu0
          %v1074 = vadd.f32 %v970, %v1073
          %v1075 = vpop.f32.mrb[0].mxu0
          %1076 = vmatprep.mubr.bf16.mxu0 0
          %1077 = vmatmul.mubr.bf16.gmra.mrb[0].mxu0 %v944
          %v1078 = vpop.f32.mrb[0].mxu0
          %v1079 = vadd.f32 %v970, %v1078
          %v1080 = vpop.f32.mrb[0].mxu0
          %v1081 = vpop.f32.mrb[0].mxu0
          %v1082 = vadd.f32 %v970, %v1081
          %v1083 = vpop.f32.mrb[0].mxu0
          %1084 = vmatprep.mubr.bf16.mxu0 0
          %1085 = vmatmul.mubr.bf16.gmra.mrb[0].mxu0 %v945
          %v1086 = vpop.f32.mrb[0].mxu0
          %v1087 = vadd.f32 %v970, %v1086
          %v1088 = vpop.f32.mrb[0].mxu0
          %v1089 = vpop.f32.mrb[0].mxu0
          %v1090 = vadd.f32 %v970, %v1089
          %v1091 = vpop.f32.mrb[0].mxu0
          %1092 = vmatprep.mubr.bf16.mxu0 0
          %1093 = vmatmul.mubr.bf16.gmra.mrb[0].mxu0 %v946
          %v1094 = vpop.f32.mrb[0].mxu0
          %v1095 = vadd.f32 %v970, %v1094
          %v1096 = vpop.f32.mrb[0].mxu0
          %v1097 = vpop.f32.mrb[0].mxu0
          %v1098 = vadd.f32 %v970, %v1097
          %v1099 = vpop.f32.mrb[0].mxu0
          %1100 = vmatprep.mubr.bf16.mxu0 0
          %1101 = vmatmul.mubr.bf16.gmra.mrb[0].mxu0 %v947
          %v1102 = vpop.f32.mrb[0].mxu0
          %v1103 = vadd.f32 %v970, %v1102
          %v1104 = vpop.f32.mrb[0].mxu0
          %v1105 = vpop.f32.mrb[0].mxu0
          %v1106 = vadd.f32 %v970, %v1105
          %v1107 = vpop.f32.mrb[0].mxu0
          %1108 = vmatprep.mubr.bf16.mxu0 0
          %1109 = vmatmul.mubr.bf16.gmra.mrb[0].mxu0 %v948
          %v1110 = vpop.f32.mrb[0].mxu0
          %v1111 = vadd.f32 %v970, %v1110
          %v1112 = vpop.f32.mrb[0].mxu0
          %v1113 = vpop.f32.mrb[0].mxu0
          %v1114 = vadd.f32 %v970, %v1113
          %v1115 = vpop.f32.mrb[0].mxu0
          %1116 = vdwg.mxu0
          %v1117 = vmax.f32 %v1055, 0.0
          %v1118 = vmax.f32 %v1058, 0.0
          %v1119 = vmax.f32 %v1063, 0.0
          %v1120 = vmax.f32 %v1066, 0.0
          %v1121 = vmax.f32 %v1071, 0.0
          %v1122 = vmax.f32 %v1074, 0.0
          %v1123 = vmax.f32 %v1079, 0.0
          %v1124 = vmax.f32 %v1082, 0.0
          %v1125 = vmax.f32 %v1087, 0.0
          %v1126 = vmax.f32 %v1090, 0.0
          %v1127 = vmax.f32 %v1095, 0.0
          %v1128 = vmax.f32 %v1098, 0.0
          %v1129 = vmax.f32 %v1103, 0.0
          %v1130 = vmax.f32 %v1106, 0.0
          %v1131 = vmax.f32 %v1111, 0.0
          %v1132 = vmax.f32 %v1114, 0.0
          %1133 = vst [vmem:[%s416] sm:$0xff] %v1117
          %1134 = vst [vmem:[%s416 + $0x8] sm:$0xff] %v1118
          %1135 = vst [vmem:[%s416 + $0x10] sm:$0xff] %v1119
          %1136 = vst [vmem:[%s416 + $0x18] sm:$0xff] %v1120
          %1137 = vst [vmem:[%s416 + $0x20] sm:$0xff] %v1121
          %1138 = vst [vmem:[%s416 + $0x28] sm:$0xff] %v1122
          %1139 = vst [vmem:[%s416 + $0x30] sm:$0xff] %v1123
          %1140 = vst [vmem:[%s416 + $0x38] sm:$0xff] %v1124
          %1141 = vst [vmem:[%s416 + $0x40] sm:$0xff] %v1125
          %1142 = vst [vmem:[%s416 + $0x48] sm:$0xff] %v1126
          %1143 = vst [vmem:[%s416 + $0x50] sm:$0xff] %v1127
          %1144 = vst [vmem:[%s416 + $0x58] sm:$0xff] %v1128
          %1145 = vst [vmem:[%s416 + $0x60] sm:$0xff] %v1129
          %1146 = vst [vmem:[%s416 + $0x68] sm:$0xff] %v1130
          %1147 = vst [vmem:[%s416 + $0x70] sm:$0xff] %v1131
          %1148 = vst [vmem:[%s416 + $0x78] sm:$0xff] %v1132
          %v1149 = vpack.c.bf16 %v1118, %v1117
          %v1150 = vpack.c.bf16 %v1120, %v1119
          %v1151 = vpack.c.bf16 %v1122, %v1121
          %v1152 = vpack.c.bf16 %v1124, %v1123
          %v1153 = vpack.c.bf16 %v1126, %v1125
          %v1154 = vpack.c.bf16 %v1128, %v1127
          %v1155 = vpack.c.bf16 %v1130, %v1129
          %v1156 = vpack.c.bf16 %v1132, %v1131
          %v1165 = vunpack.c.l.b16 %v1149
          %v1166 = vunpack.c.h.b16 %v1149
          %v1167 = vunpack.c.l.b16 %v1150
          %v1168 = vunpack.c.h.b16 %v1150
          %v1169 = vunpack.c.l.b16 %v1151
          %v1170 = vunpack.c.h.b16 %v1151
          %v1171 = vunpack.c.l.b16 %v1152
          %v1172 = vunpack.c.h.b16 %v1152
          %v1173 = vunpack.c.l.b16 %v1153
          %v1174 = vunpack.c.h.b16 %v1153
          %v1175 = vunpack.c.l.b16 %v1154
          %v1176 = vunpack.c.h.b16 %v1154
          %v1177 = vunpack.c.l.b16 %v1155
          %v1178 = vunpack.c.h.b16 %v1155
          %v1179 = vunpack.c.l.b16 %v1156
          %v1180 = vunpack.c.h.b16 %v1156
          %v1181 = vpack.c.b16 %v1165, %v1165
          %v1182 = vpack.c.b16 %v1166, %v1166
          %v1183 = vpack.c.b16 %v1167, %v1167
          %v1184 = vpack.c.b16 %v1168, %v1168
          %v1185 = vpack.c.b16 %v1169, %v1169
          %v1186 = vpack.c.b16 %v1170, %v1170
          %v1187 = vpack.c.b16 %v1171, %v1171
          %v1188 = vpack.c.b16 %v1172, %v1172
          %v1189 = vpack.c.b16 %v1173, %v1173
          %v1190 = vpack.c.b16 %v1174, %v1174
          %v1191 = vpack.c.b16 %v1175, %v1175
          %v1192 = vpack.c.b16 %v1176, %v1176
          %v1193 = vpack.c.b16 %v1177, %v1177
          %v1194 = vpack.c.b16 %v1178, %v1178
          %v1195 = vpack.c.b16 %v1179, %v1179
          %v1196 = vpack.c.b16 %v1180, %v1180
          %1213 = vst [vmem:[%s422] sm:$0xf] %v1181
          %1214 = vst [vmem:[%s422 + $0x4] sm:$0xf] %v1182
          %1215 = vst [vmem:[%s422 + $0x8] sm:$0xf] %v1183
          %1216 = vst [vmem:[%s422 + $0xc] sm:$0xf] %v1184
          %1217 = vst [vmem:[%s422 + $0x10] sm:$0xf] %v1185
          %1218 = vst [vmem:[%s422 + $0x14] sm:$0xf] %v1186
          %1219 = vst [vmem:[%s422 + $0x18] sm:$0xf] %v1187
          %1220 = vst [vmem:[%s422 + $0x1c] sm:$0xf] %v1188
          %1221 = vst [vmem:[%s422 + $0x20] sm:$0xf] %v1189
          %1222 = vst [vmem:[%s422 + $0x24] sm:$0xf] %v1190
          %1223 = vst [vmem:[%s422 + $0x28] sm:$0xf] %v1191
          %1224 = vst [vmem:[%s422 + $0x2c] sm:$0xf] %v1192
          %1225 = vst [vmem:[%s422 + $0x30] sm:$0xf] %v1193
          %1226 = vst [vmem:[%s422 + $0x34] sm:$0xf] %v1194
          %1227 = vst [vmem:[%s422 + $0x38] sm:$0xf] %v1195
          %1228 = vst [vmem:[%s422 + $0x3c] sm:$0xf] %v1196
        $region80: #{encoder_gin_forward.3} parent=43 // pred_fallthru
          _
        %s1229 = smul.u32 16, %s41
        %p1230 = scmp.lt.s32.totalorder %s1229, 47
        %s1231 = scalar_select %p1230, %s1229, 47
        %s1232 = smul.addr %s1231, 8
        %s1233 = scalar_lea.vmem %s8, %s1232
        %s1234 = smul.u32 16, %s41
        %p1235 = scmp.lt.s32.totalorder %s1234, 47
        %s1236 = scalar_select %p1235, %s1234, 47
        %s1237 = smul.addr %s1236, 4
        %s1238 = scalar_lea.vmem %s9, %s1237
        // Predicated region
        $region81: #{encoder_gin_forward.3} parent=43 // pred_check
          %p1239 = pneg %p206
        $region82: #{encoder_gin_forward.3} parent=43 // pred_check_branch
          %1241 = sbr.rel (%p1239) target = $region84
        $region83: #{encoder_gin_forward.3} parent=43 // pred_region
          %s1242 = smul.u32 16, %s41
        $region84: #{encoder_gin_forward.3} parent=43 // pred_fallthru
          _
        // Predicated region
        $region85: #{encoder_gin_forward.3} parent=43 // pred_check
          %p1243 = pneg %p232
        $region86: #{encoder_gin_forward.3} parent=43 // pred_check_branch
          %1245 = sbr.rel (%p1243) target = $region88
        $region87: #{encoder_gin_forward.3} parent=43 // pred_region
          %s1246 = smul.u32 16, %s41
        $region88: #{encoder_gin_forward.3} parent=43 // pred_fallthru
          _
      $region44: #{encoder_gin_forward.3} parent=5 // pred_fallthru
        _
      %p1247 = scmp.le.s32.totalorder 2, %s32
      // Predicated region
      $region89: #{encoder_gin_forward.3} parent=5 // pred_check
        %p1248 = pneg %p1247
      $region90: #{encoder_gin_forward.3} parent=5 // pred_check_branch
        %1250 = sbr.rel (%p1248) target = $region92
      $region91: #{encoder_gin_forward.3} parent=5 // pred_region
        %s1251 = ssub.s32 %s32, 2
        // Predicated region
        $region93: #{encoder_gin_forward.3} parent=91 // pred_check
          %p1252 = pneg %p212
        $region94: #{encoder_gin_forward.3} parent=91 // pred_check_branch
          %1254 = sbr.rel (%p1252) target = $region96
        $region95: #{encoder_gin_forward.3} parent=91 // pred_region
          %s1255 = smul.u32 16, %s43
          %p1256 = scmp.lt.s32.totalorder %s1255, 47
          %s1257 = scalar_select %p1256, %s1255, 47
          %s1258 = smul.addr %s1257, 8
          %s1259 = scalar_lea.vmem %s8, %s1258
        $region96: #{encoder_gin_forward.3} parent=91 // pred_fallthru
          _
        // Predicated region
        $region97: #{encoder_gin_forward.3} parent=91 // pred_check
          %p1260 = pneg %p238
        $region98: #{encoder_gin_forward.3} parent=91 // pred_check_branch
          %1262 = sbr.rel (%p1260) target = $region100
        $region99: #{encoder_gin_forward.3} parent=91 // pred_region
          %s1263 = smul.u32 16, %s43
          %p1264 = scmp.lt.s32.totalorder %s1263, 47
          %s1265 = scalar_select %p1264, %s1263, 47
          %s1266 = smul.addr %s1265, 4
          %s1267 = scalar_lea.vmem %s9, %s1266
        $region100: #{encoder_gin_forward.3} parent=91 // pred_fallthru
          _
      $region92: #{encoder_gin_forward.3} parent=5 // pred_fallthru
        _
    $region6: #{encoder_gin_forward.3} parent=1 // loop_footer
      %s36 = sadd.s32 1, %s32
    $region7: #{encoder_gin_forward.3} parent=1 // loop_footer_branch
      %31 = sbr.rel target = $region3
    $region8: #{encoder_gin_forward.3} parent=1 // loop_exit
      _
    %1268 = vsyncpa [#allocation7], 1
    %s1269 = scalar_lea.sflag [#allocation7], 1
    %1270 = vsyncpa %s1269, 1
    %1271 = vsyncpa [#allocation9], 1
    %1272 = vsyncpa [#allocation12], 1
    %1273 = vsyncpa [#allocation15], 1

// kernel: encoder_gin_forward.4
$region0: #{encoder_gin_forward.4}
  #allocation0 [shape = 'u32[]', space=smem, size = 0x4, offset = 0x4, fixed_abs, tag = 'smem constant byte address 0x4 - core index']
  #allocation1 [shape = 'u32[144,128]{1,0:T(1,128)}', space=vmem, size = 0x12000, scoped, tag = 'internal scratch']
  #allocation2 [shape = 'f32[128,128]{1,0:T(8,128)}', space=vmem, size = 0x10000, scoped, tag = 'scratch operand']
  #allocation3 [shape = 's32[1]{0}', space=sflag, size = 0x4, scoped, tag = 'scoped memory for encoder_gin_forward.4']
  #allocation4 [shape = 'u8[512]{0}', space=smem, size = 0x200, scoped, tag = 'prefetched SMEM operand 0']
  #allocation5 [shape = 'u8[512]{0}', space=smem, size = 0x200, scoped, tag = 'prefetched SMEM operand 1']
  %s0 = inlined_call_operand.vmem [shape: s32[9], index: 0, kind: input, shape index: {}]
  %s1 = inlined_call_operand.vmem [shape: s32[3], index: 1, kind: input, shape index: {}]
  %s2 = inlined_call_operand.vmem [shape: bf16[384,384], index: 2, kind: input, shape index: {}]
  %s3 = inlined_call_operand.vmem [shape: bf16[3,128,128], index: 3, kind: input, shape index: {}]
  %s4 = inlined_call_operand.vmem [shape: bf16[128,128], index: 4, kind: input, shape index: {}]
  %s5 = inlined_call_operand.vmem [shape: f32[1,128], index: 5, kind: input, shape index: {}]
  %s6 = inlined_call_operand.vmem [shape: bf16[128,128], index: 6, kind: input, shape index: {}]
  %s7 = inlined_call_operand.vmem [shape: f32[1,128], index: 7, kind: input, shape index: {}]
  %s8 = inlined_call_operand.vmem [shape: f32[384,128], index: 8, kind: output, shape index: {0}]
  %s9 = inlined_call_operand.vmem [shape: bf16[384,128], index: 9, kind: output, shape index: {1}]
  %10 = xla_tuple %s8, %s9
  %s11 = sld [smem:[#allocation0]]
  $region118: #{encoder_gin_forward.4} parent=0
    _
  %s13 = ssub.s32 1, %s11
  %s14 = scalar_select 0, %s13, %s11
  %s15 = sshll.u32 %s0, 4
  %s16 = int_to_ptr.vmem [resolvable:$true] %s15
  %18 = dma.vmem_to_smem %s16, 16, [#allocation4], [#allocation3]
  %s19 = sshll.u32 %s1, 4
  %s20 = int_to_ptr.vmem [resolvable:$true] %s19
  %22 = dma.vmem_to_smem %s20, 16, [#allocation5], [#allocation3]
  %23 = dma.done [#allocation3], 32
  %24 = sfence
  $region1: #{encoder_gin_forward.4} parent=0
    #allocation6 [shape = 'u8[65536]{0}', space=vmem, size = 0x10000, scoped, tag = 'input window, operand 2']
    loop: start=0, step=1, limit=11
    $region2: #{encoder_gin_forward.4} parent=1 // loop_pre_header
      _
    $region3: #{encoder_gin_forward.4} parent=1 // loop_header
      %s26 = sphi 0, %s30
      %p27 = scmp.ge.s32.totalorder %s26, 11
      %s33 = sphi 0, %s45
      %s34 = sphi 0, %s41
      %s35 = sphi 0, %s33
      %s36 = sphi 0, %s34
      %s37 = sphi 0, %s35
      %s38 = sphi 0, %s36
      %s56 = sphi 0, %s58
      %s59 = sphi 0, %s56
      %s60 = sphi 0, %s59
      %s76 = sphi 0, %s60
      %s80 = sphi 0, %s80
      %s82 = sphi 0, %s80
      %s83 = sphi 0, %s82
      %s97 = sphi 0, %s83
      %s101 = sphi 0, %s101
      %s103 = sphi 0, %s101
      %s104 = sphi 0, %s103
      %s118 = sphi 0, %s104
      %s122 = sphi 0, %s122
      %s124 = sphi 0, %s122
      %s125 = sphi 0, %s124
      %s139 = sphi 0, %s125
      %s143 = sphi 0, %s143
      %s145 = sphi 0, %s143
      %s146 = sphi 0, %s145
      %s160 = sphi 0, %s146
      %s164 = sphi 0, %s164
      %s166 = sphi 0, %s164
      %s167 = sphi 0, %s166
      %s181 = sphi 0, %s167
      %s187 = sphi 0, %s189
      %s190 = sphi 0, %s187
      %s191 = sphi 0, %s190
      %s207 = sphi 0, %s191
      %s213 = sphi 0, %s215
      %s216 = sphi 0, %s213
      %s217 = sphi 0, %s216
      %s233 = sphi 0, %s217
    $region4: #{encoder_gin_forward.4} parent=1 // loop_header_branch
      %29 = sbr.rel (%p27) target = $region8
    $region5: #{encoder_gin_forward.4} parent=1 // loop_body
      %s31 = ssub.s32 %s26, 1
      %s32 = ssub.s32 %s26, 2
      %s39 = sadd.s32 1, %s34
      %p40 = scmp.ge.s32.totalorder %s39, 3
      %s41 = scalar_select %p40, 0, %s39
      %s42 = sadd.s32 1, %s33
      %s43 = scalar_select %p40, %s42, %s33
      %p44 = scmp.ge.s32.totalorder %s43, 3
      %s45 = scalar_select %p44, 0, %s43
      %s46 = smul.u32 %s33, 3
      %s47 = sadd.s32 %s46, %s34
      %s48 = sld [smem:[#allocation4 + %s47]]
      %s49 = smul.u32 %s45, 3
      %s50 = sadd.s32 %s49, %s41
      %s51 = sld [smem:[#allocation4 + %s50]]
      %s52 = ssub.s32 %s33, %s45
      %s53 = ssub.s32 %s48, %s51
      %s54 = sor.u32 %s52, %s53
      %p55 = scmp.eq.s32.totalorder %s54, 0
      %s57 = sadd.s32 %s56, 1
      %s58 = scalar_select %p55, %s56, %s57
      %p61 = pneg %p55
      %p62 = scmp.eq.s32.totalorder %s26, 8
      %p63 = por %p61, %p62
      %p64 = scmp.ne.s32.totalorder %s56, %s59
      %p65 = scmp.eq.s32.totalorder %s26, 0
      %p66 = por %p64, %p65
      %p67 = scmp.ne.s32.totalorder %s56, %s59
      %p68 = scmp.eq.s32.totalorder %s31, 8
      %p69 = por %p67, %p68
      %p70 = scmp.ne.s32.totalorder %s59, %s60
      %p71 = scmp.eq.s32.totalorder %s31, 0
      %p72 = por %p70, %p71
      %p73 = scmp.ne.s32.totalorder %s59, %s60
      %p74 = scmp.eq.s32.totalorder %s32, 8
      %p75 = por %p73, %p74
      %p77 = scmp.ne.s32.totalorder %s60, %s76
      %p78 = scmp.eq.s32.totalorder %s32, 0
      %p79 = por %p77, %p78
      %s81 = sadd.s32 %s80, 1
      %p84 = scmp.eq.s32.totalorder %s26, 8
      %p85 = scmp.ne.s32.totalorder %s80, %s82
      %p86 = scmp.eq.s32.totalorder %s26, 0
      %p87 = por %p85, %p86
      %p88 = scmp.ne.s32.totalorder %s80, %s82
      %p89 = scmp.eq.s32.totalorder %s31, 8
      %p90 = por %p88, %p89
      %p91 = scmp.ne.s32.totalorder %s82, %s83
      %p92 = scmp.eq.s32.totalorder %s31, 0
      %p93 = por %p91, %p92
      %p94 = scmp.ne.s32.totalorder %s82, %s83
      %p95 = scmp.eq.s32.totalorder %s32, 8
      %p96 = por %p94, %p95
      %p98 = scmp.ne.s32.totalorder %s83, %s97
      %p99 = scmp.eq.s32.totalorder %s32, 0
      %p100 = por %p98, %p99
      %s102 = sadd.s32 %s101, 1
      %p105 = scmp.eq.s32.totalorder %s26, 8
      %p106 = scmp.ne.s32.totalorder %s101, %s103
      %p107 = scmp.eq.s32.totalorder %s26, 0
      %p108 = por %p106, %p107
      %p109 = scmp.ne.s32.totalorder %s101, %s103
      %p110 = scmp.eq.s32.totalorder %s31, 8
      %p111 = por %p109, %p110
      %p112 = scmp.ne.s32.totalorder %s103, %s104
      %p113 = scmp.eq.s32.totalorder %s31, 0
      %p114 = por %p112, %p113
      %p115 = scmp.ne.s32.totalorder %s103, %s104
      %p116 = scmp.eq.s32.totalorder %s32, 8
      %p117 = por %p115, %p116
      %p119 = scmp.ne.s32.totalorder %s104, %s118
      %p120 = scmp.eq.s32.totalorder %s32, 0
      %p121 = por %p119, %p120
      %s123 = sadd.s32 %s122, 1
      %p126 = scmp.eq.s32.totalorder %s26, 8
      %p127 = scmp.ne.s32.totalorder %s122, %s124
      %p128 = scmp.eq.s32.totalorder %s26, 0
      %p129 = por %p127, %p128
      %p130 = scmp.ne.s32.totalorder %s122, %s124
      %p131 = scmp.eq.s32.totalorder %s31, 8
      %p132 = por %p130, %p131
      %p133 = scmp.ne.s32.totalorder %s124, %s125
      %p134 = scmp.eq.s32.totalorder %s31, 0
      %p135 = por %p133, %p134
      %p136 = scmp.ne.s32.totalorder %s124, %s125
      %p137 = scmp.eq.s32.totalorder %s32, 8
      %p138 = por %p136, %p137
      %p140 = scmp.ne.s32.totalorder %s125, %s139
      %p141 = scmp.eq.s32.totalorder %s32, 0
      %p142 = por %p140, %p141
      %s144 = sadd.s32 %s143, 1
      %p147 = scmp.eq.s32.totalorder %s26, 8
      %p148 = scmp.ne.s32.totalorder %s143, %s145
      %p149 = scmp.eq.s32.totalorder %s26, 0
      %p150 = por %p148, %p149
      %p151 = scmp.ne.s32.totalorder %s143, %s145
      %p152 = scmp.eq.s32.totalorder %s31, 8
      %p153 = por %p151, %p152
      %p154 = scmp.ne.s32.totalorder %s145, %s146
      %p155 = scmp.eq.s32.totalorder %s31, 0
      %p156 = por %p154, %p155
      %p157 = scmp.ne.s32.totalorder %s145, %s146
      %p158 = scmp.eq.s32.totalorder %s32, 8
      %p159 = por %p157, %p158
      %p161 = scmp.ne.s32.totalorder %s146, %s160
      %p162 = scmp.eq.s32.totalorder %s32, 0
      %p163 = por %p161, %p162
      %s165 = sadd.s32 %s164, 1
      %p168 = scmp.eq.s32.totalorder %s26, 8
      %p169 = scmp.ne.s32.totalorder %s164, %s166
      %p170 = scmp.eq.s32.totalorder %s26, 0
      %p171 = por %p169, %p170
      %p172 = scmp.ne.s32.totalorder %s164, %s166
      %p173 = scmp.eq.s32.totalorder %s31, 8
      %p174 = por %p172, %p173
      %p175 = scmp.ne.s32.totalorder %s166, %s167
      %p176 = scmp.eq.s32.totalorder %s31, 0
      %p177 = por %p175, %p176
      %p178 = scmp.ne.s32.totalorder %s166, %s167
      %p179 = scmp.eq.s32.totalorder %s32, 8
      %p180 = por %p178, %p179
      %p182 = scmp.ne.s32.totalorder %s167, %s181
      %p183 = scmp.eq.s32.totalorder %s32, 0
      %p184 = por %p182, %p183
      %s185 = ssub.s32 %s33, %s45
      %p186 = scmp.eq.s32.totalorder %s185, 0
      %s188 = sadd.s32 %s187, 1
      %s189 = scalar_select %p186, %s187, %s188
      %p192 = pneg %p186
      %p193 = scmp.eq.s32.totalorder %s26, 8
      %p194 = por %p192, %p193
      %p195 = scmp.ne.s32.totalorder %s187, %s190
      %p196 = scmp.eq.s32.totalorder %s26, 0
      %p197 = por %p195, %p196
      %p198 = scmp.ne.s32.totalorder %s187, %s190
      %p199 = scmp.eq.s32.totalorder %s31, 8
      %p200 = por %p198, %p199
      %p201 = scmp.ne.s32.totalorder %s190, %s191
      %p202 = scmp.eq.s32.totalorder %s31, 0
      %p203 = por %p201, %p202
      %p204 = scmp.ne.s32.totalorder %s190, %s191
      %p205 = scmp.eq.s32.totalorder %s32, 8
      %p206 = por %p204, %p205
      %p208 = scmp.ne.s32.totalorder %s191, %s207
      %p209 = scmp.eq.s32.totalorder %s32, 0
      %p210 = por %p208, %p209
      %s211 = ssub.s32 %s33, %s45
      %p212 = scmp.eq.s32.totalorder %s211, 0
      %s214 = sadd.s32 %s213, 1
      %s215 = scalar_select %p212, %s213, %s214
      %p218 = pneg %p212
      %p219 = scmp.eq.s32.totalorder %s26, 8
      %p220 = por %p218, %p219
      %p221 = scmp.ne.s32.totalorder %s213, %s216
      %p222 = scmp.eq.s32.totalorder %s26, 0
      %p223 = por %p221, %p222
      %p224 = scmp.ne.s32.totalorder %s213, %s216
      %p225 = scmp.eq.s32.totalorder %s31, 8
      %p226 = por %p224, %p225
      %p227 = scmp.ne.s32.totalorder %s216, %s217
      %p228 = scmp.eq.s32.totalorder %s31, 0
      %p229 = por %p227, %p228
      %p230 = scmp.ne.s32.totalorder %s216, %s217
      %p231 = scmp.eq.s32.totalorder %s32, 8
      %p232 = por %p230, %p231
      %p234 = scmp.ne.s32.totalorder %s217, %s233
      %p235 = scmp.eq.s32.totalorder %s32, 0
      %p236 = por %p234, %p235
      %p237 = scmp.le.s32.totalorder 1, %s26
      %p238 = scmp.lt.s32.totalorder %s26, 10
      %p239 = pnand %p237, %p238
      %p240 = pneg %p239
      // Predicated region
      $region9: #{encoder_gin_forward.4} parent=5 // pred_check
        _
      $region10: #{encoder_gin_forward.4} parent=5 // pred_check_branch
        %242 = sbr.rel (%p239) target = $region12
      $region11: #{encoder_gin_forward.4} parent=5 // pred_region
        %s243 = ssub.s32 %s26, 1
        // Predicated region
        $region13: #{encoder_gin_forward.4} parent=11 // pred_check
          %p244 = pneg %p93
        $region14: #{encoder_gin_forward.4} parent=11 // pred_check_branch
          %246 = sbr.rel (%p244) target = $region16
        $region15: #{encoder_gin_forward.4} parent=11 // pred_region
          _
        $region16: #{encoder_gin_forward.4} parent=11 // pred_fallthru
          _
        // Predicated region
        $region17: #{encoder_gin_forward.4} parent=11 // pred_check
          %p247 = pneg %p114
        $region18: #{encoder_gin_forward.4} parent=11 // pred_check_branch
          %249 = sbr.rel (%p247) target = $region20
        $region19: #{encoder_gin_forward.4} parent=11 // pred_region
          _
        $region20: #{encoder_gin_forward.4} parent=11 // pred_fallthru
          _
        // Predicated region
        $region21: #{encoder_gin_forward.4} parent=11 // pred_check
          %p250 = pneg %p135
        $region22: #{encoder_gin_forward.4} parent=11 // pred_check_branch
          %252 = sbr.rel (%p250) target = $region24
        $region23: #{encoder_gin_forward.4} parent=11 // pred_region
          _
        $region24: #{encoder_gin_forward.4} parent=11 // pred_fallthru
          _
        // Predicated region
        $region25: #{encoder_gin_forward.4} parent=11 // pred_check
          %p253 = pneg %p156
        $region26: #{encoder_gin_forward.4} parent=11 // pred_check_branch
          %255 = sbr.rel (%p253) target = $region28
        $region27: #{encoder_gin_forward.4} parent=11 // pred_region
          _
        $region28: #{encoder_gin_forward.4} parent=11 // pred_fallthru
          _
        // Predicated region
        $region29: #{encoder_gin_forward.4} parent=11 // pred_check
          %p256 = pneg %p177
        $region30: #{encoder_gin_forward.4} parent=11 // pred_check_branch
          %258 = sbr.rel (%p256) target = $region32
        $region31: #{encoder_gin_forward.4} parent=11 // pred_region
          _
        $region32: #{encoder_gin_forward.4} parent=11 // pred_fallthru
          _
      $region12: #{encoder_gin_forward.4} parent=5 // pred_fallthru
        _
      %p259 = scmp.lt.s32.totalorder %s26, 9
      // Predicated region
      $region33: #{encoder_gin_forward.4} parent=5 // pred_check
        %p260 = pneg %p259
      $region34: #{encoder_gin_forward.4} parent=5 // pred_check_branch
        %262 = sbr.rel (%p260) target = $region36
      $region35: #{encoder_gin_forward.4} parent=5 // pred_region
        // Predicated region
        $region37: #{encoder_gin_forward.4} parent=35 // pred_check
          %p263 = pneg %p66
        $region38: #{encoder_gin_forward.4} parent=35 // pred_check_branch
          %265 = sbr.rel (%p263) target = $region40
        $region39: #{encoder_gin_forward.4} parent=35 // pred_region
          %s266 = sand.u32 %s56, 1
          %s267 = sand.u32 %s56, 1
          %s268 = smul.addr %s267, 64
          %s269 = scalar_lea.vmem [#allocation6], %s268
          %s270 = smul.u32 %s33, 3
          %s271 = sadd.s32 %s270, %s34
          %s272 = sld [smem:[#allocation4 + %s271]]
          %s273 = smul.u32 16, %s33
          %s274 = smul.addr %s273, 3
          %s275 = sadd.s32 %s272, %s274
          %s276 = smul.addr %s275, 4
          %s277 = scalar_lea.vmem %s2, %s276
          // Predicated region
          $region41: #{encoder_gin_forward.4} parent=39 // pred_check
            _
          $region42: #{encoder_gin_forward.4} parent=39 // pred_check_branch
            %279 = sbr.rel (0) target = $region44
          $region43: #{encoder_gin_forward.4} parent=39 // pred_region
            // Predicated region
            $region45: #{encoder_gin_forward.4} parent=43 // pred_check
              _
            $region46: #{encoder_gin_forward.4} parent=43 // pred_check_branch
              %281 = sbr.rel target = $region48
            $region47: #{encoder_gin_forward.4} parent=43 // pred_region
              // Predicated region
              $region60: #{encoder_gin_forward.4} parent=47 // pred_check
                _
              $region61: #{encoder_gin_forward.4} parent=47 // pred_check_branch
                %326 = sbr.rel (0) target = $region63
              $region62: #{encoder_gin_forward.4} parent=47 // pred_region
                loop: start=0, step=1, limit=1
                $region64: #{encoder_gin_forward.4} parent=62 // loop_pre_header
                  _
                $region65: #{encoder_gin_forward.4} parent=62 // loop_header
                  %s328 = sphi 0, %s332
                  %p329 = scmp.ge.s32.totalorder %s328, 1
                  %s333 = sphi %s277, %s277
                  %s334 = sphi %s269, %s269
                $region66: #{encoder_gin_forward.4} parent=62 // loop_header_branch
                  %331 = sbr.rel (%p329) target = $region70
                $region67: #{encoder_gin_forward.4} parent=62 // loop_body
                  _
                $region68: #{encoder_gin_forward.4} parent=62 // loop_footer
                  %s332 = sadd.s32 1, %s328
                $region69: #{encoder_gin_forward.4} parent=62 // loop_footer_branch
                  %327 = sbr.rel target = $region65
                $region70: #{encoder_gin_forward.4} parent=62 // loop_exit
                  _
                loop: start=0, step=1, limit=1
                $region71: #{encoder_gin_forward.4} parent=62 // loop_pre_header
                  _
                $region72: #{encoder_gin_forward.4} parent=62 // loop_header
                  %s337 = sphi 0, %s341
                  %p338 = scmp.ge.s32.totalorder %s337, 1
                  %s342 = sphi %s277, %s277
                  %s343 = sphi %s269, %s269
                $region73: #{encoder_gin_forward.4} parent=62 // loop_header_branch
                  %340 = sbr.rel (%p338) target = $region77
                $region74: #{encoder_gin_forward.4} parent=62 // loop_body
                  %v344 = vld [vmem:[%s342] sm:$0xf]
                  %345 = vst [vmem:[%s343] sm:$0xf] %v344
                  %v346 = vld [vmem:[%s342 + $0xc] sm:$0xf]
                  %347 = vst [vmem:[%s343 + $0x4] sm:$0xf] %v346
                  %v348 = vld [vmem:[%s342 + $0x18] sm:$0xf]
                  %349 = vst [vmem:[%s343 + $0x8] sm:$0xf] %v348
                  %v350 = vld [vmem:[%s342 + $0x24] sm:$0xf]
                  %351 = vst [vmem:[%s343 + $0xc] sm:$0xf] %v350
                  %v352 = vld [vmem:[%s342 + $0x30] sm:$0xf]
                  %353 = vst [vmem:[%s343 + $0x10] sm:$0xf] %v352
                  %v354 = vld [vmem:[%s342 + $0x3c] sm:$0xf]
                  %355 = vst [vmem:[%s343 + $0x14] sm:$0xf] %v354
                  %v356 = vld [vmem:[%s342 + $0x48] sm:$0xf]
                  %357 = vst [vmem:[%s343 + $0x18] sm:$0xf] %v356
                  %v358 = vld [vmem:[%s342 + $0x54] sm:$0xf]
                  %359 = vst [vmem:[%s343 + $0x1c] sm:$0xf] %v358
                  %v360 = vld [vmem:[%s342 + $0x60] sm:$0xf]
                  %361 = vst [vmem:[%s343 + $0x20] sm:$0xf] %v360
                  %v362 = vld [vmem:[%s342 + $0x6c] sm:$0xf]
                  %363 = vst [vmem:[%s343 + $0x24] sm:$0xf] %v362
                  %v364 = vld [vmem:[%s342 + $0x78] sm:$0xf]
                  %365 = vst [vmem:[%s343 + $0x28] sm:$0xf] %v364
                  %v366 = vld [vmem:[%s342 + $0x84] sm:$0xf]
                  %367 = vst [vmem:[%s343 + $0x2c] sm:$0xf] %v366
                  %v368 = vld [vmem:[%s342 + $0x90] sm:$0xf]
                  %369 = vst [vmem:[%s343 + $0x30] sm:$0xf] %v368
                  %v370 = vld [vmem:[%s342 + $0x9c] sm:$0xf]
                  %371 = vst [vmem:[%s343 + $0x34] sm:$0xf] %v370
                  %v372 = vld [vmem:[%s342 + $0xa8] sm:$0xf]
                  %373 = vst [vmem:[%s343 + $0x38] sm:$0xf] %v372
                  %v374 = vld [vmem:[%s342 + $0xb4] sm:$0xf]
                  %375 = vst [vmem:[%s343 + $0x3c] sm:$0xf] %v374
                $region75: #{encoder_gin_forward.4} parent=62 // loop_footer
                  %s341 = sadd.s32 1, %s337
                $region76: #{encoder_gin_forward.4} parent=62 // loop_footer_branch
                  %336 = sbr.rel target = $region72
                $region77: #{encoder_gin_forward.4} parent=62 // loop_exit
                  _
              $region63: #{encoder_gin_forward.4} parent=47 // pred_fallthru
                _
            $region48: #{encoder_gin_forward.4} parent=43 // pred_fallthru
              _
            // Predicated region
            $region49: #{encoder_gin_forward.4} parent=43 // pred_check
              _
            $region50: #{encoder_gin_forward.4} parent=43 // pred_check_branch
              %283 = sbr.rel (0) target = $region52
            $region51: #{encoder_gin_forward.4} parent=43 // pred_region
              loop: start=0, step=1, limit=1
              $region53: #{encoder_gin_forward.4} parent=51 // loop_pre_header
                _
              $region54: #{encoder_gin_forward.4} parent=51 // loop_header
                %s286 = sphi 0, %s290
                %p287 = scmp.ge.s32.totalorder %s286, 1
                %s291 = sphi %s277, %s277
                %s292 = sphi %s269, %s269
              $region55: #{encoder_gin_forward.4} parent=51 // loop_header_branch
                %289 = sbr.rel (%p287) target = $region59
              $region56: #{encoder_gin_forward.4} parent=51 // loop_body
                %v293 = vld [vmem:[%s291] sm:$0xf]
                %294 = vst [vmem:[%s292] sm:$0xf] %v293
                %v295 = vld [vmem:[%s291 + $0xc] sm:$0xf]
                %296 = vst [vmem:[%s292 + $0x4] sm:$0xf] %v295
                %v297 = vld [vmem:[%s291 + $0x18] sm:$0xf]
                %298 = vst [vmem:[%s292 + $0x8] sm:$0xf] %v297
                %v299 = vld [vmem:[%s291 + $0x24] sm:$0xf]
                %300 = vst [vmem:[%s292 + $0xc] sm:$0xf] %v299
                %v301 = vld [vmem:[%s291 + $0x30] sm:$0xf]
                %302 = vst [vmem:[%s292 + $0x10] sm:$0xf] %v301
                %v303 = vld [vmem:[%s291 + $0x3c] sm:$0xf]
                %304 = vst [vmem:[%s292 + $0x14] sm:$0xf] %v303
                %v305 = vld [vmem:[%s291 + $0x48] sm:$0xf]
                %306 = vst [vmem:[%s292 + $0x18] sm:$0xf] %v305
                %v307 = vld [vmem:[%s291 + $0x54] sm:$0xf]
                %308 = vst [vmem:[%s292 + $0x1c] sm:$0xf] %v307
                %v309 = vld [vmem:[%s291 + $0x60] sm:$0xf]
                %310 = vst [vmem:[%s292 + $0x20] sm:$0xf] %v309
                %v311 = vld [vmem:[%s291 + $0x6c] sm:$0xf]
                %312 = vst [vmem:[%s292 + $0x24] sm:$0xf] %v311
                %v313 = vld [vmem:[%s291 + $0x78] sm:$0xf]
                %314 = vst [vmem:[%s292 + $0x28] sm:$0xf] %v313
                %v315 = vld [vmem:[%s291 + $0x84] sm:$0xf]
                %316 = vst [vmem:[%s292 + $0x2c] sm:$0xf] %v315
                %v317 = vld [vmem:[%s291 + $0x90] sm:$0xf]
                %318 = vst [vmem:[%s292 + $0x30] sm:$0xf] %v317
                %v319 = vld [vmem:[%s291 + $0x9c] sm:$0xf]
                %320 = vst [vmem:[%s292 + $0x34] sm:$0xf] %v319
                %v321 = vld [vmem:[%s291 + $0xa8] sm:$0xf]
                %322 = vst [vmem:[%s292 + $0x38] sm:$0xf] %v321
                %v323 = vld [vmem:[%s291 + $0xb4] sm:$0xf]
                %324 = vst [vmem:[%s292 + $0x3c] sm:$0xf] %v323
              $region57: #{encoder_gin_forward.4} parent=51 // loop_footer
                %s290 = sadd.s32 1, %s286
              $region58: #{encoder_gin_forward.4} parent=51 // loop_footer_branch
                %285 = sbr.rel target = $region54
              $region59: #{encoder_gin_forward.4} parent=51 // loop_exit
                _
            $region52: #{encoder_gin_forward.4} parent=43 // pred_fallthru
              _
          $region44: #{encoder_gin_forward.4} parent=39 // pred_fallthru
            _
          %376 = vnop
        $region40: #{encoder_gin_forward.4} parent=35 // pred_fallthru
          _
      $region36: #{encoder_gin_forward.4} parent=5 // pred_fallthru
        _
      %p377 = scmp.le.s32.totalorder 1, %s26
      %p378 = scmp.lt.s32.totalorder %s26, 10
      %p379 = pnand %p377, %p378
      %p380 = pneg %p379
      // Predicated region
      $region78: #{encoder_gin_forward.4} parent=5 // pred_check
        _
      $region79: #{encoder_gin_forward.4} parent=5 // pred_check_branch
        %382 = sbr.rel (%p379) target = $region81
      $region80: #{encoder_gin_forward.4} parent=5 // pred_region
        %s383 = ssub.s32 %s26, 1
        %s384 = sand.u32 %s59, 1
        %s385 = sand.u32 %s59, 1
        %s386 = smul.addr %s385, 64
        %s387 = scalar_lea.vmem [#allocation6], %s386
        // Predicated region
        $region82: #{encoder_gin_forward.4} parent=80 // pred_check
          %p388 = pneg %p72
        $region83: #{encoder_gin_forward.4} parent=80 // pred_check_branch
          %390 = sbr.rel (%p388) target = $region85
        $region84: #{encoder_gin_forward.4} parent=80 // pred_region
          _
        $region85: #{encoder_gin_forward.4} parent=80 // pred_fallthru
          _
        %s391 = sand.u32 %s59, 1
        %s392 = sand.u32 %s59, 1
        %s393 = smul.addr %s392, 64
        %s394 = scalar_lea.vmem [#allocation6], %s393
        %p395 = pneg %p72
        %p396 = pneg %p69
        %p397 = pneg %p93
        %p398 = pneg %p90
        %p399 = pneg %p114
        %p400 = pneg %p111
        %p401 = pneg %p135
        %p402 = pneg %p132
        %p403 = pneg %p156
        %p404 = pneg %p153
        %p405 = pneg %p177
        %p406 = pneg %p174
        %p407 = pneg %p203
        %p408 = pneg %p200
        %s409 = smul.u32 16, %s35
        %p410 = scmp.lt.s32.totalorder %s409, 47
        %s411 = scalar_select %p410, %s409, 47
        %s412 = smul.addr %s411, 8
        %s413 = scalar_lea.vmem %s8, %s412
        %p414 = pneg %p229
        %p415 = pneg %p226
        %s416 = smul.u32 16, %s35
        %p417 = scmp.lt.s32.totalorder %s416, 47
        %s418 = scalar_select %p417, %s416, 47
        %s419 = smul.addr %s418, 4
        %s420 = scalar_lea.vmem %s9, %s419
        %s421 = smul.u32 %s35, 3
        %s422 = sadd.s32 %s421, %s36
        %s423 = sld [smem:[#allocation4 + %s422]]
        %s424 = smul.u32 16, %s35
        %s425 = smul.u32 16, %s35
        %p426 = scmp.lt.s32.totalorder %s425, 47
        %s427 = scalar_select %p426, %s425, 47
        %s428 = smul.addr %s427, 8
        %s429 = scalar_lea.vmem %s8, %s428
        %s430 = smul.u32 16, %s35
        %s431 = smul.u32 16, %s35
        %p432 = scmp.lt.s32.totalorder %s431, 47
        %s433 = scalar_select %p432, %s431, 47
        %s434 = smul.addr %s433, 4
        %s435 = scalar_lea.vmem %s9, %s434
        %s436 = smul.u32 16, %s35
        %p438 = scmp.eq.s32.totalorder %s36, 0
        // Predicated region
        $region86: #{encoder_gin_forward.4} parent=80 // pred_check
          %p439 = pneg %p438
        $region87: #{encoder_gin_forward.4} parent=80 // pred_check_branch
          %441 = sbr.rel (%p439) target = $region89
        $region88: #{encoder_gin_forward.4} parent=80 // pred_region
          %442 = vst [vmem:[#allocation2] sm:$0xff] 0.0
          %443 = vst [vmem:[#allocation2 + $0x8] sm:$0xff] 0.0
          %444 = vst [vmem:[#allocation2 + $0x10] sm:$0xff] 0.0
          %445 = vst [vmem:[#allocation2 + $0x18] sm:$0xff] 0.0
          %446 = vst [vmem:[#allocation2 + $0x20] sm:$0xff] 0.0
          %447 = vst [vmem:[#allocation2 + $0x28] sm:$0xff] 0.0
          %448 = vst [vmem:[#allocation2 + $0x30] sm:$0xff] 0.0
          %449 = vst [vmem:[#allocation2 + $0x38] sm:$0xff] 0.0
          %450 = vst [vmem:[#allocation2 + $0x40] sm:$0xff] 0.0
          %451 = vst [vmem:[#allocation2 + $0x48] sm:$0xff] 0.0
          %452 = vst [vmem:[#allocation2 + $0x50] sm:$0xff] 0.0
          %453 = vst [vmem:[#allocation2 + $0x58] sm:$0xff] 0.0
          %454 = vst [vmem:[#allocation2 + $0x60] sm:$0xff] 0.0
          %455 = vst [vmem:[#allocation2 + $0x68] sm:$0xff] 0.0
          %456 = vst [vmem:[#allocation2 + $0x70] sm:$0xff] 0.0
          %457 = vst [vmem:[#allocation2 + $0x78] sm:$0xff] 0.0
        $region89: #{encoder_gin_forward.4} parent=80 // pred_fallthru
          _
        %s458 = sld [smem:[#allocation5 + %s35]]
        %p459 = scmp.lt.s32.totalorder %s36, %s458
        // Predicated region
        $region90: #{encoder_gin_forward.4} parent=80 // pred_check
          %p460 = pneg %p459
        $region91: #{encoder_gin_forward.4} parent=80 // pred_check_branch
          %462 = sbr.rel (%p460) target = $region93
        $region92: #{encoder_gin_forward.4} parent=80 // pred_region
          %s463 = smul.u32 %s35, 3
          %s464 = sadd.s32 %s463, %s36
          %s465 = sld [smem:[#allocation4 + %s464]]
          %v466 = vld [vmem:[#allocation2] sm:$0xff]
          %v467 = vld [vmem:[#allocation2 + $0x8] sm:$0xff]
          %v468 = vld [vmem:[#allocation2 + $0x10] sm:$0xff]
          %v469 = vld [vmem:[#allocation2 + $0x18] sm:$0xff]
          %v470 = vld [vmem:[#allocation2 + $0x20] sm:$0xff]
          %v471 = vld [vmem:[#allocation2 + $0x28] sm:$0xff]
          %v472 = vld [vmem:[#allocation2 + $0x30] sm:$0xff]
          %v473 = vld [vmem:[#allocation2 + $0x38] sm:$0xff]
          %v474 = vld [vmem:[#allocation2 + $0x40] sm:$0xff]
          %v475 = vld [vmem:[#allocation2 + $0x48] sm:$0xff]
          %v476 = vld [vmem:[#allocation2 + $0x50] sm:$0xff]
          %v477 = vld [vmem:[#allocation2 + $0x58] sm:$0xff]
          %v478 = vld [vmem:[#allocation2 + $0x60] sm:$0xff]
          %v479 = vld [vmem:[#allocation2 + $0x68] sm:$0xff]
          %v480 = vld [vmem:[#allocation2 + $0x70] sm:$0xff]
          %v481 = vld [vmem:[#allocation2 + $0x78] sm:$0xff]
          %v482 = vld [vmem:[%s387] sm:$0xf]
          %v483 = vld [vmem:[%s387 + $0x4] sm:$0xf]
          %v484 = vld [vmem:[%s387 + $0x8] sm:$0xf]
          %v485 = vld [vmem:[%s387 + $0xc] sm:$0xf]
          %v486 = vld [vmem:[%s387 + $0x10] sm:$0xf]
          %v487 = vld [vmem:[%s387 + $0x14] sm:$0xf]
          %v488 = vld [vmem:[%s387 + $0x18] sm:$0xf]
          %v489 = vld [vmem:[%s387 + $0x1c] sm:$0xf]
          %v490 = vld [vmem:[%s387 + $0x20] sm:$0xf]
          %v491 = vld [vmem:[%s387 + $0x24] sm:$0xf]
          %v492 = vld [vmem:[%s387 + $0x28] sm:$0xf]
          %v493 = vld [vmem:[%s387 + $0x2c] sm:$0xf]
          %v494 = vld [vmem:[%s387 + $0x30] sm:$0xf]
          %v495 = vld [vmem:[%s387 + $0x34] sm:$0xf]
          %v496 = vld [vmem:[%s387 + $0x38] sm:$0xf]
          %v497 = vld [vmem:[%s387 + $0x3c] sm:$0xf]
          %s498 = smul.u32 %s465, 16
          %s499 = smul.addr %s498, 4
          %s500 = scalar_lea.vmem %s3, %s499
          %v501 = vld [vmem:[%s500] sm:$0xf]
          %v502 = vld [vmem:[%s500 + $0x4] sm:$0xf]
          %v503 = vld [vmem:[%s500 + $0x8] sm:$0xf]
          %v504 = vld [vmem:[%s500 + $0xc] sm:$0xf]
          %v505 = vld [vmem:[%s500 + $0x10] sm:$0xf]
          %v506 = vld [vmem:[%s500 + $0x14] sm:$0xf]
          %v507 = vld [vmem:[%s500 + $0x18] sm:$0xf]
          %v508 = vld [vmem:[%s500 + $0x1c] sm:$0xf]
          %v509 = vld [vmem:[%s500 + $0x20] sm:$0xf]
          %v510 = vld [vmem:[%s500 + $0x24] sm:$0xf]
          %v511 = vld [vmem:[%s500 + $0x28] sm:$0xf]
          %v512 = vld [vmem:[%s500 + $0x2c] sm:$0xf]
          %v513 = vld [vmem:[%s500 + $0x30] sm:$0xf]
          %v514 = vld [vmem:[%s500 + $0x34] sm:$0xf]
          %v515 = vld [vmem:[%s500 + $0x38] sm:$0xf]
          %v516 = vld [vmem:[%s500 + $0x3c] sm:$0xf]
          %v533 = vunpack.c.l.b16 %v482
          %v534 = vunpack.c.l.b16 %v483
          %v535 = vunpack.c.l.b16 %v484
          %v536 = vunpack.c.l.b16 %v485
          %v537 = vunpack.c.l.b16 %v486
          %v538 = vunpack.c.l.b16 %v487
          %v539 = vunpack.c.l.b16 %v488
          %v540 = vunpack.c.l.b16 %v489
          %v541 = vunpack.c.l.b16 %v490
          %v542 = vunpack.c.l.b16 %v491
          %v543 = vunpack.c.l.b16 %v492
          %v544 = vunpack.c.l.b16 %v493
          %v545 = vunpack.c.l.b16 %v494
          %v546 = vunpack.c.l.b16 %v495
          %v547 = vunpack.c.l.b16 %v496
          %v548 = vunpack.c.l.b16 %v497
          %v549 = vpack.c.b16 %v534, %v533
          %v550 = vpack.c.b16 %v536, %v535
          %v551 = vpack.c.b16 %v538, %v537
          %v552 = vpack.c.b16 %v540, %v539
          %v553 = vpack.c.b16 %v542, %v541
          %v554 = vpack.c.b16 %v544, %v543
          %v555 = vpack.c.b16 %v546, %v545
          %v556 = vpack.c.b16 %v548, %v547
          %v581 = vunpack.c.l.b16 %v501
          %v582 = vunpack.c.l.b16 %v502
          %v583 = vunpack.c.l.b16 %v503
          %v584 = vunpack.c.l.b16 %v504
          %v585 = vunpack.c.l.b16 %v505
          %v586 = vunpack.c.l.b16 %v506
          %v587 = vunpack.c.l.b16 %v507
          %v588 = vunpack.c.l.b16 %v508
          %v589 = vunpack.c.l.b16 %v509
          %v590 = vunpack.c.l.b16 %v510
          %v591 = vunpack.c.l.b16 %v511
          %v592 = vunpack.c.l.b16 %v512
          %v593 = vunpack.c.l.b16 %v513
          %v594 = vunpack.c.l.b16 %v514
          %v595 = vunpack.c.l.b16 %v515
          %v596 = vunpack.c.l.b16 %v516
          %v597 = vpack.c.b16 %v582, %v581
          %v598 = vpack.c.b16 %v584, %v583
          %v599 = vpack.c.b16 %v586, %v585
          %v600 = vpack.c.b16 %v588, %v587
          %v601 = vpack.c.b16 %v590, %v589
          %v602 = vpack.c.b16 %v592, %v591
          %v603 = vpack.c.b16 %v594, %v593
          %v604 = vpack.c.b16 %v596, %v595
          %613 = vmatprep.subr.bf16.mxu0 0
          %614 = vmatpush1.bf16.msra.mxu0 %v597
          %615 = vmatprep.subr.bf16.mxu0 0
          %616 = vmatpush1.bf16.msra.mxu0 %v598
          %617 = vmatprep.subr.bf16.mxu0 0
          %618 = vmatpush1.bf16.msra.mxu0 %v599
          %619 = vmatprep.subr.bf16.mxu0 0
          %620 = vmatpush1.bf16.msra.mxu0 %v600
          %621 = vmatprep.subr.bf16.mxu0 0
          %622 = vmatpush1.bf16.msra.mxu0 %v601
          %623 = vmatprep.subr.bf16.mxu0 0
          %624 = vmatpush1.bf16.msra.mxu0 %v602
          %625 = vmatprep.subr.bf16.mxu0 0
          %626 = vmatpush1.bf16.msra.mxu0 %v603
          %627 = vmatprep.subr.bf16.mxu0 0
          %628 = vmatpush1.bf16.msra.mxu0 %v604
          %629 = vmatprep.subr.bf16.mxu0 0
          %630 = vmatpush1.bf16.msra.mxu0 0
          %631 = vmatprep.subr.bf16.mxu0 0
          %632 = vmatpush1.bf16.msra.mxu0 0
          %633 = vmatprep.subr.bf16.mxu0 0
          %634 = vmatpush1.bf16.msra.mxu0 0
          %635 = vmatprep.subr.bf16.mxu0 0
          %636 = vmatpush1.bf16.msra.mxu0 0
          %637 = vmatprep.subr.bf16.mxu0 0
          %638 = vmatpush1.bf16.msra.mxu0 0
          %639 = vmatprep.subr.bf16.mxu0 0
          %640 = vmatpush1.bf16.msra.mxu0 0
          %641 = vmatprep.subr.bf16.mxu0 0
          %642 = vmatpush1.bf16.msra.mxu0 0
          %643 = vmatprep.subr.bf16.mxu0 0
          %644 = vmatpush1.bf16.msra.mxu0 0
          %645 = vmatprep.mubr.bf16.mxu0 0
          %646 = vmatmul.mubr.bf16.gmra.mrb[0].mxu0 %v549
          %v647 = vpop.f32.mrb[0].mxu0
          %v648 = vadd.f32 0.0, %v647
          %v649 = vpop.f32.mrb[0].mxu0
          %v650 = vpop.f32.mrb[0].mxu0
          %v651 = vadd.f32 0.0, %v650
          %v652 = vpop.f32.mrb[0].mxu0
          %653 = vmatprep.mubr.bf16.mxu0 0
          %654 = vmatmul.mubr.bf16.gmra.mrb[0].mxu0 %v550
          %v655 = vpop.f32.mrb[0].mxu0
          %v656 = vadd.f32 0.0, %v655
          %v657 = vpop.f32.mrb[0].mxu0
          %v658 = vpop.f32.mrb[0].mxu0
          %v659 = vadd.f32 0.0, %v658
          %v660 = vpop.f32.mrb[0].mxu0
          %661 = vmatprep.mubr.bf16.mxu0 0
          %662 = vmatmul.mubr.bf16.gmra.mrb[0].mxu0 %v551
          %v663 = vpop.f32.mrb[0].mxu0
          %v664 = vadd.f32 0.0, %v663
          %v665 = vpop.f32.mrb[0].mxu0
          %v666 = vpop.f32.mrb[0].mxu0
          %v667 = vadd.f32 0.0, %v666
          %v668 = vpop.f32.mrb[0].mxu0
          %669 = vmatprep.mubr.bf16.mxu0 0
          %670 = vmatmul.mubr.bf16.gmra.mrb[0].mxu0 %v552
          %v671 = vpop.f32.mrb[0].mxu0
          %v672 = vadd.f32 0.0, %v671
          %v673 = vpop.f32.mrb[0].mxu0
          %v674 = vpop.f32.mrb[0].mxu0
          %v675 = vadd.f32 0.0, %v674
          %v676 = vpop.f32.mrb[0].mxu0
          %677 = vmatprep.mubr.bf16.mxu0 0
          %678 = vmatmul.mubr.bf16.gmra.mrb[0].mxu0 %v553
          %v679 = vpop.f32.mrb[0].mxu0
          %v680 = vadd.f32 0.0, %v679
          %v681 = vpop.f32.mrb[0].mxu0
          %v682 = vpop.f32.mrb[0].mxu0
          %v683 = vadd.f32 0.0, %v682
          %v684 = vpop.f32.mrb[0].mxu0
          %685 = vmatprep.mubr.bf16.mxu0 0
          %686 = vmatmul.mubr.bf16.gmra.mrb[0].mxu0 %v554
          %v687 = vpop.f32.mrb[0].mxu0
          %v688 = vadd.f32 0.0, %v687
          %v689 = vpop.f32.mrb[0].mxu0
          %v690 = vpop.f32.mrb[0].mxu0
          %v691 = vadd.f32 0.0, %v690
          %v692 = vpop.f32.mrb[0].mxu0
          %693 = vmatprep.mubr.bf16.mxu0 0
          %694 = vmatmul.mubr.bf16.gmra.mrb[0].mxu0 %v555
          %v695 = vpop.f32.mrb[0].mxu0
          %v696 = vadd.f32 0.0, %v695
          %v697 = vpop.f32.mrb[0].mxu0
          %v698 = vpop.f32.mrb[0].mxu0
          %v699 = vadd.f32 0.0, %v698
          %v700 = vpop.f32.mrb[0].mxu0
          %701 = vmatprep.mubr.bf16.mxu0 0
          %702 = vmatmul.mubr.bf16.gmra.mrb[0].mxu0 %v556
          %v703 = vpop.f32.mrb[0].mxu0
          %v704 = vadd.f32 0.0, %v703
          %v705 = vpop.f32.mrb[0].mxu0
          %v706 = vpop.f32.mrb[0].mxu0
          %v707 = vadd.f32 0.0, %v706
          %v708 = vpop.f32.mrb[0].mxu0
          %709 = vdwg.mxu0
          %v710 = vadd.f32 %v466, %v648
          %v711 = vadd.f32 %v467, %v651
          %v712 = vadd.f32 %v468, %v656
          %v713 = vadd.f32 %v469, %v659
          %v714 = vadd.f32 %v470, %v664
          %v715 = vadd.f32 %v471, %v667
          %v716 = vadd.f32 %v472, %v672
          %v717 = vadd.f32 %v473, %v675
          %v718 = vadd.f32 %v474, %v680
          %v719 = vadd.f32 %v475, %v683
          %v720 = vadd.f32 %v476, %v688
          %v721 = vadd.f32 %v477, %v691
          %v722 = vadd.f32 %v478, %v696
          %v723 = vadd.f32 %v479, %v699
          %v724 = vadd.f32 %v480, %v704
          %v725 = vadd.f32 %v481, %v707
          %726 = vst [vmem:[#allocation2] sm:$0xff] %v710
          %727 = vst [vmem:[#allocation2 + $0x8] sm:$0xff] %v711
          %728 = vst [vmem:[#allocation2 + $0x10] sm:$0xff] %v712
          %729 = vst [vmem:[#allocation2 + $0x18] sm:$0xff] %v713
          %730 = vst [vmem:[#allocation2 + $0x20] sm:$0xff] %v714
          %731 = vst [vmem:[#allocation2 + $0x28] sm:$0xff] %v715
          %732 = vst [vmem:[#allocation2 + $0x30] sm:$0xff] %v716
          %733 = vst [vmem:[#allocation2 + $0x38] sm:$0xff] %v717
          %734 = vst [vmem:[#allocation2 + $0x40] sm:$0xff] %v718
          %735 = vst [vmem:[#allocation2 + $0x48] sm:$0xff] %v719
          %736 = vst [vmem:[#allocation2 + $0x50] sm:$0xff] %v720
          %737 = vst [vmem:[#allocation2 + $0x58] sm:$0xff] %v721
          %738 = vst [vmem:[#allocation2 + $0x60] sm:$0xff] %v722
          %739 = vst [vmem:[#allocation2 + $0x68] sm:$0xff] %v723
          %740 = vst [vmem:[#allocation2 + $0x70] sm:$0xff] %v724
          %741 = vst [vmem:[#allocation2 + $0x78] sm:$0xff] %v725
        $region93: #{encoder_gin_forward.4} parent=80 // pred_fallthru
          _
        %p742 = scmp.eq.s32.totalorder %s36, 2
        // Predicated region
        $region94: #{encoder_gin_forward.4} parent=80 // pred_check
          %p743 = pneg %p742
        $region95: #{encoder_gin_forward.4} parent=80 // pred_check_branch
          %745 = sbr.rel (%p743) target = $region97
        $region96: #{encoder_gin_forward.4} parent=80 // pred_region
          %v746 = vld [vmem:[#allocation2] sm:$0xff]
          %v747 = vld [vmem:[#allocation2 + $0x8] sm:$0xff]
          %v748 = vld [vmem:[#allocation2 + $0x10] sm:$0xff]
          %v749 = vld [vmem:[#allocation2 + $0x18] sm:$0xff]
          %v750 = vld [vmem:[#allocation2 + $0x20] sm:$0xff]
          %v751 = vld [vmem:[#allocation2 + $0x28] sm:$0xff]
          %v752 = vld [vmem:[#allocation2 + $0x30] sm:$0xff]
          %v753 = vld [vmem:[#allocation2 + $0x38] sm:$0xff]
          %v754 = vld [vmem:[#allocation2 + $0x40] sm:$0xff]
          %v755 = vld [vmem:[#allocation2 + $0x48] sm:$0xff]
          %v756 = vld [vmem:[#allocation2 + $0x50] sm:$0xff]
          %v757 = vld [vmem:[#allocation2 + $0x58] sm:$0xff]
          %v758 = vld [vmem:[#allocation2 + $0x60] sm:$0xff]
          %v759 = vld [vmem:[#allocation2 + $0x68] sm:$0xff]
          %v760 = vld [vmem:[#allocation2 + $0x70] sm:$0xff]
          %v761 = vld [vmem:[#allocation2 + $0x78] sm:$0xff]
          %v762 = vpack.c.bf16 %v747, %v746
          %v763 = vpack.c.bf16 %v749, %v748
          %v764 = vpack.c.bf16 %v751, %v750
          %v765 = vpack.c.bf16 %v753, %v752
          %v766 = vpack.c.bf16 %v755, %v754
          %v767 = vpack.c.bf16 %v757, %v756
          %v768 = vpack.c.bf16 %v759, %v758
          %v769 = vpack.c.bf16 %v761, %v760
          %v770 = vld [vmem:[%s4] sm:$0xf]
          %v771 = vld [vmem:[%s4 + $0x4] sm:$0xf]
          %v772 = vld [vmem:[%s4 + $0x8] sm:$0xf]
          %v773 = vld [vmem:[%s4 + $0xc] sm:$0xf]
          %v774 = vld [vmem:[%s4 + $0x10] sm:$0xf]
          %v775 = vld [vmem:[%s4 + $0x14] sm:$0xf]
          %v776 = vld [vmem:[%s4 + $0x18] sm:$0xf]
          %v777 = vld [vmem:[%s4 + $0x1c] sm:$0xf]
          %v778 = vld [vmem:[%s4 + $0x20] sm:$0xf]
          %v779 = vld [vmem:[%s4 + $0x24] sm:$0xf]
          %v780 = vld [vmem:[%s4 + $0x28] sm:$0xf]
          %v781 = vld [vmem:[%s4 + $0x2c] sm:$0xf]
          %v782 = vld [vmem:[%s4 + $0x30] sm:$0xf]
          %v783 = vld [vmem:[%s4 + $0x34] sm:$0xf]
          %v784 = vld [vmem:[%s4 + $0x38] sm:$0xf]
          %v785 = vld [vmem:[%s4 + $0x3c] sm:$0xf]
          %v786 = vld [vmem:[%s5] sm:$0x1]
          %v788 = vlaneseq
          %v789 = vshrl.u32 %v788, 7
          %v790 = vsub.s32 0, %v789
          %v791 = vrot.slane %v786, %v790
          %v809 = vunpack.c.l.b16 %v770
          %v810 = vunpack.c.l.b16 %v771
          %v811 = vunpack.c.l.b16 %v772
          %v812 = vunpack.c.l.b16 %v773
          %v813 = vunpack.c.l.b16 %v774
          %v814 = vunpack.c.l.b16 %v775
          %v815 = vunpack.c.l.b16 %v776
          %v816 = vunpack.c.l.b16 %v777
          %v817 = vunpack.c.l.b16 %v778
          %v818 = vunpack.c.l.b16 %v779
          %v819 = vunpack.c.l.b16 %v780
          %v820 = vunpack.c.l.b16 %v781
          %v821 = vunpack.c.l.b16 %v782
          %v822 = vunpack.c.l.b16 %v783
          %v823 = vunpack.c.l.b16 %v784
          %v824 = vunpack.c.l.b16 %v785
          %v825 = vpack.c.b16 %v810, %v809
          %v826 = vpack.c.b16 %v812, %v811
          %v827 = vpack.c.b16 %v814, %v813
          %v828 = vpack.c.b16 %v816, %v815
          %v829 = vpack.c.b16 %v818, %v817
          %v830 = vpack.c.b16 %v820, %v819
          %v831 = vpack.c.b16 %v822, %v821
          %v832 = vpack.c.b16 %v824, %v823
          %841 = vmatprep.subr.bf16.mxu0 0
          %842 = vmatpush1.bf16.msra.mxu0 %v825
          %843 = vmatprep.subr.bf16.mxu0 0
          %844 = vmatpush1.bf16.msra.mxu0 %v826
          %845 = vmatprep.subr.bf16.mxu0 0
          %846 = vmatpush1.bf16.msra.mxu0 %v827
          %847 = vmatprep.subr.bf16.mxu0 0
          %848 = vmatpush1.bf16.msra.mxu0 %v828
          %849 = vmatprep.subr.bf16.mxu0 0
          %850 = vmatpush1.bf16.msra.mxu0 %v829
          %851 = vmatprep.subr.bf16.mxu0 0
          %852 = vmatpush1.bf16.msra.mxu0 %v830
          %853 = vmatprep.subr.bf16.mxu0 0
          %854 = vmatpush1.bf16.msra.mxu0 %v831
          %855 = vmatprep.subr.bf16.mxu0 0
          %856 = vmatpush1.bf16.msra.mxu0 %v832
          %857 = vmatprep.subr.bf16.mxu0 0
          %858 = vmatpush1.bf16.msra.mxu0 0
          %859 = vmatprep.subr.bf16.mxu0 0
          %860 = vmatpush1.bf16.msra.mxu0 0
          %861 = vmatprep.subr.bf16.mxu0 0
          %862 = vmatpush1.bf16.msra.mxu0 0
          %863 = vmatprep.subr.bf16.mxu0 0
          %864 = vmatpush1.bf16.msra.mxu0 0
          %865 = vmatprep.subr.bf16.mxu0 0
          %866 = vmatpush1.bf16.msra.mxu0 0
          %867 = vmatprep.subr.bf16.mxu0 0
          %868 = vmatpush1.bf16.msra.mxu0 0
          %869 = vmatprep.subr.bf16.mxu0 0
          %870 = vmatpush1.bf16.msra.mxu0 0
          %871 = vmatprep.subr.bf16.mxu0 0
          %872 = vmatpush1.bf16.msra.mxu0 0
          %873 = vmatprep.mubr.bf16.mxu0 0
          %874 = vmatmul.mubr.bf16.gmra.mrb[0].mxu0 %v762
          %v875 = vpop.f32.mrb[0].mxu0
          %v876 = vadd.f32 %v791, %v875
          %v877 = vpop.f32.mrb[0].mxu0
          %v878 = vpop.f32.mrb[0].mxu0
          %v879 = vadd.f32 %v791, %v878
          %v880 = vpop.f32.mrb[0].mxu0
          %881 = vmatprep.mubr.bf16.mxu0 0
          %882 = vmatmul.mubr.bf16.gmra.mrb[0].mxu0 %v763
          %v883 = vpop.f32.mrb[0].mxu0
          %v884 = vadd.f32 %v791, %v883
          %v885 = vpop.f32.mrb[0].mxu0
          %v886 = vpop.f32.mrb[0].mxu0
          %v887 = vadd.f32 %v791, %v886
          %v888 = vpop.f32.mrb[0].mxu0
          %889 = vmatprep.mubr.bf16.mxu0 0
          %890 = vmatmul.mubr.bf16.gmra.mrb[0].mxu0 %v764
          %v891 = vpop.f32.mrb[0].mxu0
          %v892 = vadd.f32 %v791, %v891
          %v893 = vpop.f32.mrb[0].mxu0
          %v894 = vpop.f32.mrb[0].mxu0
          %v895 = vadd.f32 %v791, %v894
          %v896 = vpop.f32.mrb[0].mxu0
          %897 = vmatprep.mubr.bf16.mxu0 0
          %898 = vmatmul.mubr.bf16.gmra.mrb[0].mxu0 %v765
          %v899 = vpop.f32.mrb[0].mxu0
          %v900 = vadd.f32 %v791, %v899
          %v901 = vpop.f32.mrb[0].mxu0
          %v902 = vpop.f32.mrb[0].mxu0
          %v903 = vadd.f32 %v791, %v902
          %v904 = vpop.f32.mrb[0].mxu0
          %905 = vmatprep.mubr.bf16.mxu0 0
          %906 = vmatmul.mubr.bf16.gmra.mrb[0].mxu0 %v766
          %v907 = vpop.f32.mrb[0].mxu0
          %v908 = vadd.f32 %v791, %v907
          %v909 = vpop.f32.mrb[0].mxu0
          %v910 = vpop.f32.mrb[0].mxu0
          %v911 = vadd.f32 %v791, %v910
          %v912 = vpop.f32.mrb[0].mxu0
          %913 = vmatprep.mubr.bf16.mxu0 0
          %914 = vmatmul.mubr.bf16.gmra.mrb[0].mxu0 %v767
          %v915 = vpop.f32.mrb[0].mxu0
          %v916 = vadd.f32 %v791, %v915
          %v917 = vpop.f32.mrb[0].mxu0
          %v918 = vpop.f32.mrb[0].mxu0
          %v919 = vadd.f32 %v791, %v918
          %v920 = vpop.f32.mrb[0].mxu0
          %921 = vmatprep.mubr.bf16.mxu0 0
          %922 = vmatmul.mubr.bf16.gmra.mrb[0].mxu0 %v768
          %v923 = vpop.f32.mrb[0].mxu0
          %v924 = vadd.f32 %v791, %v923
          %v925 = vpop.f32.mrb[0].mxu0
          %v926 = vpop.f32.mrb[0].mxu0
          %v927 = vadd.f32 %v791, %v926
          %v928 = vpop.f32.mrb[0].mxu0
          %929 = vmatprep.mubr.bf16.mxu0 0
          %930 = vmatmul.mubr.bf16.gmra.mrb[0].mxu0 %v769
          %v931 = vpop.f32.mrb[0].mxu0
          %v932 = vadd.f32 %v791, %v931
          %v933 = vpop.f32.mrb[0].mxu0
          %v934 = vpop.f32.mrb[0].mxu0
          %v935 = vadd.f32 %v791, %v934
          %v936 = vpop.f32.mrb[0].mxu0
          %937 = vdwg.mxu0
          %v938 = vmax.f32 %v876, 0.0
          %v939 = vmax.f32 %v879, 0.0
          %v940 = vmax.f32 %v884, 0.0
          %v941 = vmax.f32 %v887, 0.0
          %v942 = vmax.f32 %v892, 0.0
          %v943 = vmax.f32 %v895, 0.0
          %v944 = vmax.f32 %v900, 0.0
          %v945 = vmax.f32 %v903, 0.0
          %v946 = vmax.f32 %v908, 0.0
          %v947 = vmax.f32 %v911, 0.0
          %v948 = vmax.f32 %v916, 0.0
          %v949 = vmax.f32 %v919, 0.0
          %v950 = vmax.f32 %v924, 0.0
          %v951 = vmax.f32 %v927, 0.0
          %v952 = vmax.f32 %v932, 0.0
          %v953 = vmax.f32 %v935, 0.0
          %v954 = vpack.c.bf16 %v939, %v938
          %v955 = vpack.c.bf16 %v941, %v940
          %v956 = vpack.c.bf16 %v943, %v942
          %v957 = vpack.c.bf16 %v945, %v944
          %v958 = vpack.c.bf16 %v947, %v946
          %v959 = vpack.c.bf16 %v949, %v948
          %v960 = vpack.c.bf16 %v951, %v950
          %v961 = vpack.c.bf16 %v953, %v952
          %v962 = vld [vmem:[%s6] sm:$0xf]
          %v963 = vld [vmem:[%s6 + $0x4] sm:$0xf]
          %v964 = vld [vmem:[%s6 + $0x8] sm:$0xf]
          %v965 = vld [vmem:[%s6 + $0xc] sm:$0xf]
          %v966 = vld [vmem:[%s6 + $0x10] sm:$0xf]
          %v967 = vld [vmem:[%s6 + $0x14] sm:$0xf]
          %v968 = vld [vmem:[%s6 + $0x18] sm:$0xf]
          %v969 = vld [vmem:[%s6 + $0x1c] sm:$0xf]
          %v970 = vld [vmem:[%s6 + $0x20] sm:$0xf]
          %v971 = vld [vmem:[%s6 + $0x24] sm:$0xf]
          %v972 = vld [vmem:[%s6 + $0x28] sm:$0xf]
          %v973 = vld [vmem:[%s6 + $0x2c] sm:$0xf]
          %v974 = vld [vmem:[%s6 + $0x30] sm:$0xf]
          %v975 = vld [vmem:[%s6 + $0x34] sm:$0xf]
          %v976 = vld [vmem:[%s6 + $0x38] sm:$0xf]
          %v977 = vld [vmem:[%s6 + $0x3c] sm:$0xf]
          %v978 = vld [vmem:[%s7] sm:$0x1]
          %v980 = vlaneseq
          %v981 = vshrl.u32 %v980, 7
          %v982 = vsub.s32 0, %v981
          %v983 = vrot.slane %v978, %v982
          %v1001 = vunpack.c.l.b16 %v962
          %v1002 = vunpack.c.l.b16 %v963
          %v1003 = vunpack.c.l.b16 %v964
          %v1004 = vunpack.c.l.b16 %v965
          %v1005 = vunpack.c.l.b16 %v966
          %v1006 = vunpack.c.l.b16 %v967
          %v1007 = vunpack.c.l.b16 %v968
          %v1008 = vunpack.c.l.b16 %v969
          %v1009 = vunpack.c.l.b16 %v970
          %v1010 = vunpack.c.l.b16 %v971
          %v1011 = vunpack.c.l.b16 %v972
          %v1012 = vunpack.c.l.b16 %v973
          %v1013 = vunpack.c.l.b16 %v974
          %v1014 = vunpack.c.l.b16 %v975
          %v1015 = vunpack.c.l.b16 %v976
          %v1016 = vunpack.c.l.b16 %v977
          %v1017 = vpack.c.b16 %v1002, %v1001
          %v1018 = vpack.c.b16 %v1004, %v1003
          %v1019 = vpack.c.b16 %v1006, %v1005
          %v1020 = vpack.c.b16 %v1008, %v1007
          %v1021 = vpack.c.b16 %v1010, %v1009
          %v1022 = vpack.c.b16 %v1012, %v1011
          %v1023 = vpack.c.b16 %v1014, %v1013
          %v1024 = vpack.c.b16 %v1016, %v1015
          %1033 = vmatprep.subr.bf16.mxu0 0
          %1034 = vmatpush1.bf16.msra.mxu0 %v1017
          %1035 = vmatprep.subr.bf16.mxu0 0
          %1036 = vmatpush1.bf16.msra.mxu0 %v1018
          %1037 = vmatprep.subr.bf16.mxu0 0
          %1038 = vmatpush1.bf16.msra.mxu0 %v1019
          %1039 = vmatprep.subr.bf16.mxu0 0
          %1040 = vmatpush1.bf16.msra.mxu0 %v1020
          %1041 = vmatprep.subr.bf16.mxu0 0
          %1042 = vmatpush1.bf16.msra.mxu0 %v1021
          %1043 = vmatprep.subr.bf16.mxu0 0
          %1044 = vmatpush1.bf16.msra.mxu0 %v1022
          %1045 = vmatprep.subr.bf16.mxu0 0
          %1046 = vmatpush1.bf16.msra.mxu0 %v1023
          %1047 = vmatprep.subr.bf16.mxu0 0
          %1048 = vmatpush1.bf16.msra.mxu0 %v1024
          %1049 = vmatprep.subr.bf16.mxu0 0
          %1050 = vmatpush1.bf16.msra.mxu0 0
          %1051 = vmatprep.subr.bf16.mxu0 0
          %1052 = vmatpush1.bf16.msra.mxu0 0
          %1053 = vmatprep.subr.bf16.mxu0 0
          %1054 = vmatpush1.bf16.msra.mxu0 0
          %1055 = vmatprep.subr.bf16.mxu0 0
          %1056 = vmatpush1.bf16.msra.mxu0 0
          %1057 = vmatprep.subr.bf16.mxu0 0
          %1058 = vmatpush1.bf16.msra.mxu0 0
          %1059 = vmatprep.subr.bf16.mxu0 0
          %1060 = vmatpush1.bf16.msra.mxu0 0
          %1061 = vmatprep.subr.bf16.mxu0 0
          %1062 = vmatpush1.bf16.msra.mxu0 0
          %1063 = vmatprep.subr.bf16.mxu0 0
          %1064 = vmatpush1.bf16.msra.mxu0 0
          %1065 = vmatprep.mubr.bf16.mxu0 0
          %1066 = vmatmul.mubr.bf16.gmra.mrb[0].mxu0 %v954
          %v1067 = vpop.f32.mrb[0].mxu0
          %v1068 = vadd.f32 %v983, %v1067
          %v1069 = vpop.f32.mrb[0].mxu0
          %v1070 = vpop.f32.mrb[0].mxu0
          %v1071 = vadd.f32 %v983, %v1070
          %v1072 = vpop.f32.mrb[0].mxu0
          %1073 = vmatprep.mubr.bf16.mxu0 0
          %1074 = vmatmul.mubr.bf16.gmra.mrb[0].mxu0 %v955
          %v1075 = vpop.f32.mrb[0].mxu0
          %v1076 = vadd.f32 %v983, %v1075
          %v1077 = vpop.f32.mrb[0].mxu0
          %v1078 = vpop.f32.mrb[0].mxu0
          %v1079 = vadd.f32 %v983, %v1078
          %v1080 = vpop.f32.mrb[0].mxu0
          %1081 = vmatprep.mubr.bf16.mxu0 0
          %1082 = vmatmul.mubr.bf16.gmra.mrb[0].mxu0 %v956
          %v1083 = vpop.f32.mrb[0].mxu0
          %v1084 = vadd.f32 %v983, %v1083
          %v1085 = vpop.f32.mrb[0].mxu0
          %v1086 = vpop.f32.mrb[0].mxu0
          %v1087 = vadd.f32 %v983, %v1086
          %v1088 = vpop.f32.mrb[0].mxu0
          %1089 = vmatprep.mubr.bf16.mxu0 0
          %1090 = vmatmul.mubr.bf16.gmra.mrb[0].mxu0 %v957
          %v1091 = vpop.f32.mrb[0].mxu0
          %v1092 = vadd.f32 %v983, %v1091
          %v1093 = vpop.f32.mrb[0].mxu0
          %v1094 = vpop.f32.mrb[0].mxu0
          %v1095 = vadd.f32 %v983, %v1094
          %v1096 = vpop.f32.mrb[0].mxu0
          %1097 = vmatprep.mubr.bf16.mxu0 0
          %1098 = vmatmul.mubr.bf16.gmra.mrb[0].mxu0 %v958
          %v1099 = vpop.f32.mrb[0].mxu0
          %v1100 = vadd.f32 %v983, %v1099
          %v1101 = vpop.f32.mrb[0].mxu0
          %v1102 = vpop.f32.mrb[0].mxu0
          %v1103 = vadd.f32 %v983, %v1102
          %v1104 = vpop.f32.mrb[0].mxu0
          %1105 = vmatprep.mubr.bf16.mxu0 0
          %1106 = vmatmul.mubr.bf16.gmra.mrb[0].mxu0 %v959
          %v1107 = vpop.f32.mrb[0].mxu0
          %v1108 = vadd.f32 %v983, %v1107
          %v1109 = vpop.f32.mrb[0].mxu0
          %v1110 = vpop.f32.mrb[0].mxu0
          %v1111 = vadd.f32 %v983, %v1110
          %v1112 = vpop.f32.mrb[0].mxu0
          %1113 = vmatprep.mubr.bf16.mxu0 0
          %1114 = vmatmul.mubr.bf16.gmra.mrb[0].mxu0 %v960
          %v1115 = vpop.f32.mrb[0].mxu0
          %v1116 = vadd.f32 %v983, %v1115
          %v1117 = vpop.f32.mrb[0].mxu0
          %v1118 = vpop.f32.mrb[0].mxu0
          %v1119 = vadd.f32 %v983, %v1118
          %v1120 = vpop.f32.mrb[0].mxu0
          %1121 = vmatprep.mubr.bf16.mxu0 0
          %1122 = vmatmul.mubr.bf16.gmra.mrb[0].mxu0 %v961
          %v1123 = vpop.f32.mrb[0].mxu0
          %v1124 = vadd.f32 %v983, %v1123
          %v1125 = vpop.f32.mrb[0].mxu0
          %v1126 = vpop.f32.mrb[0].mxu0
          %v1127 = vadd.f32 %v983, %v1126
          %v1128 = vpop.f32.mrb[0].mxu0
          %1129 = vdwg.mxu0
          %v1130 = vmax.f32 %v1068, 0.0
          %v1131 = vmax.f32 %v1071, 0.0
          %v1132 = vmax.f32 %v1076, 0.0
          %v1133 = vmax.f32 %v1079, 0.0
          %v1134 = vmax.f32 %v1084, 0.0
          %v1135 = vmax.f32 %v1087, 0.0
          %v1136 = vmax.f32 %v1092, 0.0
          %v1137 = vmax.f32 %v1095, 0.0
          %v1138 = vmax.f32 %v1100, 0.0
          %v1139 = vmax.f32 %v1103, 0.0
          %v1140 = vmax.f32 %v1108, 0.0
          %v1141 = vmax.f32 %v1111, 0.0
          %v1142 = vmax.f32 %v1116, 0.0
          %v1143 = vmax.f32 %v1119, 0.0
          %v1144 = vmax.f32 %v1124, 0.0
          %v1145 = vmax.f32 %v1127, 0.0
          %1146 = vst [vmem:[%s429] sm:$0xff] %v1130
          %1147 = vst [vmem:[%s429 + $0x8] sm:$0xff] %v1131
          %1148 = vst [vmem:[%s429 + $0x10] sm:$0xff] %v1132
          %1149 = vst [vmem:[%s429 + $0x18] sm:$0xff] %v1133
          %1150 = vst [vmem:[%s429 + $0x20] sm:$0xff] %v1134
          %1151 = vst [vmem:[%s429 + $0x28] sm:$0xff] %v1135
          %1152 = vst [vmem:[%s429 + $0x30] sm:$0xff] %v1136
          %1153 = vst [vmem:[%s429 + $0x38] sm:$0xff] %v1137
          %1154 = vst [vmem:[%s429 + $0x40] sm:$0xff] %v1138
          %1155 = vst [vmem:[%s429 + $0x48] sm:$0xff] %v1139
          %1156 = vst [vmem:[%s429 + $0x50] sm:$0xff] %v1140
          %1157 = vst [vmem:[%s429 + $0x58] sm:$0xff] %v1141
          %1158 = vst [vmem:[%s429 + $0x60] sm:$0xff] %v1142
          %1159 = vst [vmem:[%s429 + $0x68] sm:$0xff] %v1143
          %1160 = vst [vmem:[%s429 + $0x70] sm:$0xff] %v1144
          %1161 = vst [vmem:[%s429 + $0x78] sm:$0xff] %v1145
          %v1162 = vpack.c.bf16 %v1131, %v1130
          %v1163 = vpack.c.bf16 %v1133, %v1132
          %v1164 = vpack.c.bf16 %v1135, %v1134
          %v1165 = vpack.c.bf16 %v1137, %v1136
          %v1166 = vpack.c.bf16 %v1139, %v1138
          %v1167 = vpack.c.bf16 %v1141, %v1140
          %v1168 = vpack.c.bf16 %v1143, %v1142
          %v1169 = vpack.c.bf16 %v1145, %v1144
          %v1178 = vunpack.c.l.b16 %v1162
          %v1179 = vunpack.c.h.b16 %v1162
          %v1180 = vunpack.c.l.b16 %v1163
          %v1181 = vunpack.c.h.b16 %v1163
          %v1182 = vunpack.c.l.b16 %v1164
          %v1183 = vunpack.c.h.b16 %v1164
          %v1184 = vunpack.c.l.b16 %v1165
          %v1185 = vunpack.c.h.b16 %v1165
          %v1186 = vunpack.c.l.b16 %v1166
          %v1187 = vunpack.c.h.b16 %v1166
          %v1188 = vunpack.c.l.b16 %v1167
          %v1189 = vunpack.c.h.b16 %v1167
          %v1190 = vunpack.c.l.b16 %v1168
          %v1191 = vunpack.c.h.b16 %v1168
          %v1192 = vunpack.c.l.b16 %v1169
          %v1193 = vunpack.c.h.b16 %v1169
          %v1194 = vpack.c.b16 %v1178, %v1178
          %v1195 = vpack.c.b16 %v1179, %v1179
          %v1196 = vpack.c.b16 %v1180, %v1180
          %v1197 = vpack.c.b16 %v1181, %v1181
          %v1198 = vpack.c.b16 %v1182, %v1182
          %v1199 = vpack.c.b16 %v1183, %v1183
          %v1200 = vpack.c.b16 %v1184, %v1184
          %v1201 = vpack.c.b16 %v1185, %v1185
          %v1202 = vpack.c.b16 %v1186, %v1186
          %v1203 = vpack.c.b16 %v1187, %v1187
          %v1204 = vpack.c.b16 %v1188, %v1188
          %v1205 = vpack.c.b16 %v1189, %v1189
          %v1206 = vpack.c.b16 %v1190, %v1190
          %v1207 = vpack.c.b16 %v1191, %v1191
          %v1208 = vpack.c.b16 %v1192, %v1192
          %v1209 = vpack.c.b16 %v1193, %v1193
          %1226 = vst [vmem:[%s435] sm:$0xf] %v1194
          %1227 = vst [vmem:[%s435 + $0x4] sm:$0xf] %v1195
          %1228 = vst [vmem:[%s435 + $0x8] sm:$0xf] %v1196
          %1229 = vst [vmem:[%s435 + $0xc] sm:$0xf] %v1197
          %1230 = vst [vmem:[%s435 + $0x10] sm:$0xf] %v1198
          %1231 = vst [vmem:[%s435 + $0x14] sm:$0xf] %v1199
          %1232 = vst [vmem:[%s435 + $0x18] sm:$0xf] %v1200
          %1233 = vst [vmem:[%s435 + $0x1c] sm:$0xf] %v1201
          %1234 = vst [vmem:[%s435 + $0x20] sm:$0xf] %v1202
          %1235 = vst [vmem:[%s435 + $0x24] sm:$0xf] %v1203
          %1236 = vst [vmem:[%s435 + $0x28] sm:$0xf] %v1204
          %1237 = vst [vmem:[%s435 + $0x2c] sm:$0xf] %v1205
          %1238 = vst [vmem:[%s435 + $0x30] sm:$0xf] %v1206
          %1239 = vst [vmem:[%s435 + $0x34] sm:$0xf] %v1207
          %1240 = vst [vmem:[%s435 + $0x38] sm:$0xf] %v1208
          %1241 = vst [vmem:[%s435 + $0x3c] sm:$0xf] %v1209
        $region97: #{encoder_gin_forward.4} parent=80 // pred_fallthru
          _
        %s1242 = smul.u32 16, %s35
        %p1243 = scmp.lt.s32.totalorder %s1242, 47
        %s1244 = scalar_select %p1243, %s1242, 47
        %s1245 = smul.addr %s1244, 8
        %s1246 = scalar_lea.vmem %s8, %s1245
        %s1247 = smul.u32 16, %s35
        %p1248 = scmp.lt.s32.totalorder %s1247, 47
        %s1249 = scalar_select %p1248, %s1247, 47
        %s1250 = smul.addr %s1249, 4
        %s1251 = scalar_lea.vmem %s9, %s1250
        // Predicated region
        $region98: #{encoder_gin_forward.4} parent=80 // pred_check
          %p1252 = pneg %p200
        $region99: #{encoder_gin_forward.4} parent=80 // pred_check_branch
          %1254 = sbr.rel (%p1252) target = $region101
        $region100: #{encoder_gin_forward.4} parent=80 // pred_region
          %s1255 = smul.u32 16, %s35
        $region101: #{encoder_gin_forward.4} parent=80 // pred_fallthru
          _
        // Predicated region
        $region102: #{encoder_gin_forward.4} parent=80 // pred_check
          %p1256 = pneg %p226
        $region103: #{encoder_gin_forward.4} parent=80 // pred_check_branch
          %1258 = sbr.rel (%p1256) target = $region105
        $region104: #{encoder_gin_forward.4} parent=80 // pred_region
          %s1259 = smul.u32 16, %s35
        $region105: #{encoder_gin_forward.4} parent=80 // pred_fallthru
          _
      $region81: #{encoder_gin_forward.4} parent=5 // pred_fallthru
        _
      %p1260 = scmp.le.s32.totalorder 2, %s26
      // Predicated region
      $region106: #{encoder_gin_forward.4} parent=5 // pred_check
        %p1261 = pneg %p1260
      $region107: #{encoder_gin_forward.4} parent=5 // pred_check_branch
        %1263 = sbr.rel (%p1261) target = $region109
      $region108: #{encoder_gin_forward.4} parent=5 // pred_region
        %s1264 = ssub.s32 %s26, 2
        // Predicated region
        $region110: #{encoder_gin_forward.4} parent=108 // pred_check
          %p1265 = pneg %p206
        $region111: #{encoder_gin_forward.4} parent=108 // pred_check_branch
          %1267 = sbr.rel (%p1265) target = $region113
        $region112: #{encoder_gin_forward.4} parent=108 // pred_region
          %s1268 = smul.u32 16, %s37
          %p1269 = scmp.lt.s32.totalorder %s1268, 47
          %s1270 = scalar_select %p1269, %s1268, 47
          %s1271 = smul.addr %s1270, 8
          %s1272 = scalar_lea.vmem %s8, %s1271
        $region113: #{encoder_gin_forward.4} parent=108 // pred_fallthru
          _
        // Predicated region
        $region114: #{encoder_gin_forward.4} parent=108 // pred_check
          %p1273 = pneg %p232
        $region115: #{encoder_gin_forward.4} parent=108 // pred_check_branch
          %1275 = sbr.rel (%p1273) target = $region117
        $region116: #{encoder_gin_forward.4} parent=108 // pred_region
          %s1276 = smul.u32 16, %s37
          %p1277 = scmp.lt.s32.totalorder %s1276, 47
          %s1278 = scalar_select %p1277, %s1276, 47
          %s1279 = smul.addr %s1278, 4
          %s1280 = scalar_lea.vmem %s9, %s1279
        $region117: #{encoder_gin_forward.4} parent=108 // pred_fallthru
          _
      $region109: #{encoder_gin_forward.4} parent=5 // pred_fallthru
        _
    $region6: #{encoder_gin_forward.4} parent=1 // loop_footer
      %s30 = sadd.s32 1, %s26
    $region7: #{encoder_gin_forward.4} parent=1 // loop_footer_branch
      %25 = sbr.rel target = $region3
    $region8: #{encoder_gin_forward.4} parent=1 // loop_exit
      _

</llo_original>
